<compile_context>
chip_gen: v7x
topology: tpu7x:2x2x1
jax: 0.10.0
libtpu: 0.0.40
codegen_flags: <defaults>
</compile_context>

<pallas_src>
import functools

import numpy as np
import jax
import jax.numpy as jnp
from jax.experimental import pallas as pl
from jax.experimental.pallas import tpu as pltpu

_BUFFERED = getattr(pl, "Buffered", None)


# ---------------------------------------------------------------------------
# Pallas kernel: one grid step = block_b batch elements, whole layer fused.
# ---------------------------------------------------------------------------
def _decoder_layer_kernel(x_ref, cross_ref,
                          wq_ref, wkv_ref, wo_ref,
                          w1t_ref, w2t_ref, wp_ref,
                          x_out_ref, trend_out_ref, *, kernel_size):
    f32 = jnp.float32
    bf16 = jnp.bfloat16

    x = x_ref[...].astype(f32)          # (Bb, L, D)
    cross = cross_ref[...].astype(f32)  # (Bb, S, D)
    Bb, L, D = x.shape
    S = cross.shape[1]

    wq = wq_ref[...]     # (D, D)   bf16, 1/sqrt(D) already folded in
    wkv = wkv_ref[...]   # (D, 2D)  bf16, [Wk | Wv]
    wo = wo_ref[...]     # (D, D)
    w1t = w1t_ref[...]   # (D, F)
    w2t = w2t_ref[...]   # (F, D)
    wp = wp_ref[...]     # (3D, Cp) bf16, vstack(tap0,tap1,tap2), zero-padded cols

    def mm(a_f32, w_bf16):
        # bf16-operand MXU matmul with f32 accumulation.
        return jnp.dot(a_f32.astype(bf16), w_bf16, preferred_element_type=f32)

    # --- hoisted cross-side K/V projection (one fused matmul, shared by both
    # attention calls).  K is transposed once so the score matmul contracts on
    # RHS sublanes (MXU-native) instead of re-transposing K per call.
    kv = mm(cross.reshape(Bb * S, D), wkv)                           # (Bb*S, 2D)
    kT = jnp.swapaxes(kv[:, :D].reshape(Bb, S, D), 1, 2).astype(bf16)  # (Bb, D, S)
    v = kv[:, D:].reshape(Bb, S, D).astype(bf16)                     # (Bb, S, D)

    def attention(q_in):
        # stand-in for auto_correlation(q_in, cross, cross)[0]
        q = mm(q_in.reshape(Bb * L, D), wq).reshape(Bb, L, D).astype(bf16)
        s = jnp.einsum("bld,bds->bls", q, kT, preferred_element_type=f32)
        s = s - jnp.max(s, axis=-1, keepdims=True)
        p = jnp.exp(s)
        o = jnp.einsum("bls,bsd->bld", p.astype(bf16), v,
                       preferred_element_type=f32)
        o = o * pl.reciprocal(jnp.sum(p, axis=-1, keepdims=True), approx=True)
        return mm(o.reshape(Bb * L, D), wo).reshape(Bb, L, D)

    # --- series decomposition (replicate-padded moving average) ---------------
    pad = (kernel_size - 1) // 2
    inv_k = 1.0 / float(kernel_size)
    row = jax.lax.broadcasted_iota(jnp.int32, (Bb, L, D), 1)

    if pad <= 4:
        # Small window: O(pad) roll/select/add chain.  Edge-replicate masks are
        # built once here and shared by the three decompose calls.
        fwd_masks = [row >= (L - j) for j in range(1, pad + 1)]
        bwd_masks = [row < j for j in range(1, pad + 1)]

        def decompose(z):
            first = jnp.broadcast_to(z[:, 0:1, :], z.shape)
            last = jnp.broadcast_to(z[:, L - 1:L, :], z.shape)
            acc = z
            for j in range(1, pad + 1):
                fwd = jnp.where(fwd_masks[j - 1], last, jnp.roll(z, -j, axis=1))
                bwd = jnp.where(bwd_masks[j - 1], first, jnp.roll(z, j, axis=1))
                acc = acc + fwd + bwd
            trend = acc * inv_k
            return z - trend, trend
    else:
        # Large window (Autoformer default kernel_size=25): prefix-sum moving
        # average -> O(log L) shift-adds + closed-form edge corrections.
        shifts = []
        sh = 1
        while sh < L:
            shifts.append(sh)
            sh *= 2
        scan_masks = [row >= sh for sh in shifts]
        clip_hi = row >= (L - pad)              # c[t+pad] clipped to c[L-1]
        clip_lo = row <= pad                    # c[t-pad-1] clipped to 0
        left_cnt = jnp.maximum(pad - row, 0).astype(f32)
        right_cnt = jnp.maximum(row + pad - (L - 1), 0).astype(f32)

        def decompose(z):
            c = z
            for m, sh in zip(scan_masks, shifts):       # Hillis-Steele scan
                c = c + jnp.where(m, jnp.roll(c, sh, axis=1), 0.0)
            c_last = jnp.broadcast_to(c[:, L - 1:L, :], c.shape)
            hi = jnp.where(clip_hi, c_last, jnp.roll(c, -pad, axis=1))
            lo = jnp.where(clip_lo, 0.0, jnp.roll(c, pad + 1, axis=1))
            z0 = jnp.broadcast_to(z[:, 0:1, :], z.shape)
            zL = jnp.broadcast_to(z[:, L - 1:L, :], z.shape)
            trend = (hi - lo + left_cnt * z0 + right_cnt * zL) * inv_k
            return z - trend, trend

    # --- attention blocks + decompositions ------------------------------------
    x1, trend1 = decompose(x + attention(x))
    x2, trend2 = decompose(x1 + attention(x1))

    # --- feed-forward (two 1x1 convs over channels, ReLU) + decomposition 3 ---
    h = jnp.maximum(mm(x2.reshape(Bb * L, D), w1t), 0.0)     # (Bb*L, F)
    ff = mm(h, w2t).reshape(Bb, L, D)
    x3, trend3 = decompose(x2 + ff)

    x_out_ref[...] = x3.astype(x_out_ref.dtype)

    # --- trend projection: Conv1d(k=3, circular padding, no bias) --------------
    # K-stacked: one (Bb*L, 3D) @ (3D, Cp) matmul; LHS concatenates the three
    # circular taps over channels, RHS stacks the per-tap weights (zero-padded
    # to a lane-dense Cp=128 output; the true C columns are sliced outside).
    residual = trend1 + trend2 + trend3                      # (Bb, L, D)
    lhs = jnp.concatenate(
        [jnp.roll(residual, 1, axis=1), residual, jnp.roll(residual, -1, axis=1)],
        axis=-1)                                             # (Bb, L, 3D)
    proj = mm(lhs.reshape(Bb * L, 3 * D), wp)                # (Bb*L, Cp)
    trend_out_ref[...] = proj.reshape(Bb, L, proj.shape[-1]).astype(trend_out_ref.dtype)


# ---------------------------------------------------------------------------
# Wrapper
# ---------------------------------------------------------------------------
def _device_kind():
    try:
        return jax.devices()[0].device_kind.lower()
    except Exception:
        return ""


def _estimate_step_vmem(bb, L, S, D, F, Cp):
    # Rough f32 working-set estimate for one grid step (activations dominate).
    rows = bb * L
    acts = 4 * (14 * rows * D + 3 * rows * S + 2 * rows * F + 3 * rows * Cp
                + 4 * bb * S * D)
    io = 2 * 4 * (2 * bb * L * D + bb * S * D + bb * L * Cp)   # double-buffered I/O
    weights = 2 * (4 * D * D + 2 * D * F + 3 * D * Cp)
    return acts + io + weights


def _pick_block_b(B, L, S, D, F, Cp, budget, prefer_two_steps):
    divisors = [d for d in range(B, 0, -1) if B % d == 0]
    fitting = [d for d in divisors if _estimate_step_vmem(d, L, S, D, F, Cp) <= budget]
    if not fitting:
        return 1
    best = fitting[0]
    if prefer_two_steps and best == B and B >= 2:
        # v7x: keep >= 2 grid steps for the 2 TensorCores if the slab stays big.
        for d in fitting:
            if d < B and d * L >= 256:
                return d
    return best


def autoformer_decoder_layer(x, cross, params, kernel_size, *, block_b=None):
    B, L, D = x.shape
    S = cross.shape[1]
    F = params["w1t"].shape[1]
    C = params["wp0"].shape[1]
    Cp = ((C + 127) // 128) * 128            # lane-dense trend output width

    kind = _device_kind()
    is_v7 = ("v7" in kind) or ("tpu7" in kind)
    # v5e/v6e have 128 MiB physical VMEM; v7x only 64 MiB per TensorCore.
    vmem_limit = (40 if is_v7 else 64) * 1024 * 1024

    if block_b is None:
        block_b = _pick_block_b(B, L, S, D, F, Cp,
                                budget=int(0.6 * vmem_limit),
                                prefer_two_steps=is_v7)
    assert B % block_b == 0, "batch must be divisible by block_b"

    bf = jnp.bfloat16
    scale = 1.0 / float(D) ** 0.5
    wq = (params["wq"] * scale).astype(bf)              # attention scale folded in
    wkv = jnp.concatenate([params["wk"], params["wv"]], axis=1).astype(bf)
    wo = params["wo"].astype(bf)
    w1t = params["w1t"].astype(bf)
    w2t = params["w2t"].astype(bf)
    wp = jnp.pad(
        jnp.concatenate([params["wp0"], params["wp1"], params["wp2"]], axis=0),
        ((0, 0), (0, Cp - C))).astype(bf)               # (3D, Cp)

    kernel = functools.partial(_decoder_layer_kernel, kernel_size=kernel_size)

    def run(single_buffer_weights):
        def w_spec(shape):
            zeros = (0,) * len(shape)
            kwargs = {}
            if single_buffer_weights and _BUFFERED is not None:
                # Grid-invariant weights: single-buffer to halve their VMEM use.
                kwargs["pipeline_mode"] = _BUFFERED(1)
            return pl.BlockSpec(shape, lambda b, _z=zeros: _z, **kwargs)

        grid_spec = pltpu.PrefetchScalarGridSpec(
            num_scalar_prefetch=0,
            grid=(B // block_b,),
            in_specs=[
                pl.BlockSpec((block_b, L, D), lambda b: (b, 0, 0)),   # x
                pl.BlockSpec((block_b, S, D), lambda b: (b, 0, 0)),   # cross
                w_spec((D, D)),          # wq (pre-scaled)
                w_spec((D, 2 * D)),      # [wk | wv]
                w_spec((D, D)),          # wo
                w_spec((D, F)),          # ff conv1 (1x1) W^T
                w_spec((F, D)),          # ff conv2 (1x1) W^T
                w_spec((3 * D, Cp)),     # K-stacked 3-tap projection
            ],
            out_specs=[
                pl.BlockSpec((block_b, L, D), lambda b: (b, 0, 0)),   # seasonal
                pl.BlockSpec((block_b, L, Cp), lambda b: (b, 0, 0)),  # padded trend
            ],
        )
        return pl.pallas_call(
            kernel,
            out_shape=(
                jax.ShapeDtypeStruct((B, L, D), x.dtype),
                jax.ShapeDtypeStruct((B, L, Cp), x.dtype),
            ),
            grid_spec=grid_spec,
            compiler_params=pltpu.CompilerParams(
                dimension_semantics=("parallel",),
                vmem_limit_bytes=vmem_limit,
            ),
        )(x, cross, wq, wkv, wo, w1t, w2t, wp)

    try:
        x_out, trend_pad = run(single_buffer_weights=True)
    except Exception:
        # pl.Buffered(1) not supported by this JAX build -> default pipelining.
        x_out, trend_pad = run(single_buffer_weights=False)

    return x_out, trend_pad[:, :, :C]


# ---------------------------------------------------------------------------
# Parameter construction (deterministic) + plain-JAX reference
# ---------------------------------------------------------------------------
def make_params(key, model_dim, ff_dim, output_feature_dim):
    ks = jax.random.split(key, 9)
    scale = 1.0 / np.sqrt(model_dim)
    return {
        "wq": jax.random.normal(ks[0], (model_dim, model_dim), jnp.float32) * scale,
        "wk": jax.random.normal(ks[1], (model_dim, model_dim), jnp.float32) * scale,
        "wv": jax.random.normal(ks[2], (model_dim, model_dim), jnp.float32) * scale,
        "wo": jax.random.normal(ks[3], (model_dim, model_dim), jnp.float32) * scale,
        "w1t": jax.random.normal(ks[4], (model_dim, ff_dim), jnp.float32) * scale,
        "w2t": jax.random.normal(ks[5], (ff_dim, model_dim), jnp.float32) / np.sqrt(ff_dim),
        # Conv1d(model_dim -> output_feature_dim, k=3) weight (C, D, 3) split per
        # tap, stored transposed as (D, C) for (rows, D) @ (D, C) matmuls.
        "wp0": jax.random.normal(ks[6], (model_dim, output_feature_dim), jnp.float32) * scale,
        "wp1": jax.random.normal(ks[7], (model_dim, output_feature_dim), jnp.float32) * scale,
        "wp2": jax.random.normal(ks[8], (model_dim, output_feature_dim), jnp.float32) * scale,
    }


def reference(x, cross, p, kernel_size):
    """Plain-JAX reference (same bf16-operand / f32-accumulate matmul precision)."""
    D = x.shape[-1]
    bf = jnp.bfloat16
    scale = 1.0 / float(D) ** 0.5

    def mm(a, w):
        return jnp.dot(a.astype(bf), w.astype(bf), preferred_element_type=jnp.float32)

    k = mm(cross, p["wk"]).astype(bf)
    v = mm(cross, p["wv"]).astype(bf)

    def attn(q_in):
        q = (mm(q_in, p["wq"]) * scale).astype(bf)
        s = jnp.einsum("bld,bsd->bls", q, k, preferred_element_type=jnp.float32)
        s = s - jnp.max(s, axis=-1, keepdims=True)
        pr = jnp.exp(s)
        o = jnp.einsum("bls,bsd->bld", pr.astype(bf), v,
                       preferred_element_type=jnp.float32)
        o = o / jnp.sum(pr, axis=-1, keepdims=True)
        return mm(o, p["wo"])

    def moving_avg(z):
        pad = (kernel_size - 1) // 2
        L = z.shape[1]
        zp = jnp.pad(z, ((0, 0), (pad, pad), (0, 0)), mode="edge")
        return jnp.mean(jnp.stack([zp[:, j:j + L, :] for j in range(kernel_size)], 0), 0)

    def decomp(z):
        t = moving_avg(z)
        return z - t, t

    x1, t1 = decomp(x + attn(x))
    x2, t2 = decomp(x1 + attn(x1))
    h = jnp.maximum(mm(x2, p["w1t"]), 0.0)
    ff = mm(h, p["w2t"])
    x3, t3 = decomp(x2 + ff)
    r = t1 + t2 + t3
    out = (mm(jnp.roll(r, 1, axis=1), p["wp0"])
           + mm(r, p["wp1"])
           + mm(jnp.roll(r, -1, axis=1), p["wp2"]))
    return x3, out


# ---------------------------------------------------------------------------
if __name__ == "__main__":
    B, L, S = 4, 8, 8          # batch, decoder seq, encoder (cross) seq
    model_dim = 32
    ff_dim = 4 * model_dim
    output_feature_dim = 8

    key = jax.random.PRNGKey(0)
    kx, kc, kp = jax.random.split(key, 3)
    x = jax.random.normal(kx, (B, L, model_dim), jnp.float32)
    cross = jax.random.normal(kc, (B, S, model_dim), jnp.float32)
    params = make_params(kp, model_dim, ff_dim, output_feature_dim)

    # kernel_size=5 exercises the roll-chain decomposition; kernel_size=25 (the
    # Autoformer default) exercises the prefix-sum path with heavy edge clipping.
    for kernel_size in (5, 25):
        x_out, trend_out = autoformer_decoder_layer(x, cross, params, kernel_size)
        x_out = jax.block_until_ready(x_out)
        trend_out = jax.block_until_ready(trend_out)

        x_ref, trend_ref = reference(x, cross, params, kernel_size)
        assert x_out.shape == (B, L, model_dim)
        assert trend_out.shape == (B, L, output_feature_dim)
        np.testing.assert_allclose(np.asarray(x_out), np.asarray(x_ref),
                                   rtol=2e-2, atol=2e-2)
        np.testing.assert_allclose(np.asarray(trend_out), np.asarray(trend_ref),
                                   rtol=2e-2, atol=2e-2)

    print("KERNEL_OK")
</pallas_src>

<mosaic_0001>
module attributes {stable_mosaic.version = 11 : i64} {
  func.func @_decoder_layer_kernel(%arg0: i32, %arg1: memref<4x8x32xf32, #tpu.memory_space<vmem>>, %arg2: memref<4x8x32xf32, #tpu.memory_space<vmem>>, %arg3: memref<32x32xbf16, #tpu.memory_space<vmem>>, %arg4: memref<32x64xbf16, #tpu.memory_space<vmem>>, %arg5: memref<32x32xbf16, #tpu.memory_space<vmem>>, %arg6: memref<32x128xbf16, #tpu.memory_space<vmem>>, %arg7: memref<128x32xbf16, #tpu.memory_space<vmem>>, %arg8: memref<96x128xbf16, #tpu.memory_space<vmem>>, %arg9: memref<4x8x32xf32, #tpu.memory_space<vmem>>, %arg10: memref<4x8x128xf32, #tpu.memory_space<vmem>>) attributes {dimension_semantics = [#tpu.dimension_semantics<parallel>], iteration_bounds = array<i64: 1>, scalar_prefetch = 0 : i64, scratch_operands = 0 : i64, tpu.core_type = #tpu.core_type<tc>, window_params = [{transform_indices = @transform_0, window_bounds = array<i64: 4, 8, 32>}, {transform_indices = @transform_1, window_bounds = array<i64: 4, 8, 32>}, {pipeline_mode = #tpu.pipeline_mode<synchronous>, transform_indices = @transform_2, window_bounds = array<i64: 32, 32>}, {pipeline_mode = #tpu.pipeline_mode<synchronous>, transform_indices = @transform_3, window_bounds = array<i64: 32, 64>}, {pipeline_mode = #tpu.pipeline_mode<synchronous>, transform_indices = @transform_4, window_bounds = array<i64: 32, 32>}, {pipeline_mode = #tpu.pipeline_mode<synchronous>, transform_indices = @transform_5, window_bounds = array<i64: 32, 128>}, {pipeline_mode = #tpu.pipeline_mode<synchronous>, transform_indices = @transform_6, window_bounds = array<i64: 128, 32>}, {pipeline_mode = #tpu.pipeline_mode<synchronous>, transform_indices = @transform_7, window_bounds = array<i64: 96, 128>}, {transform_indices = @transform_8, window_bounds = array<i64: 4, 8, 32>}, {transform_indices = @transform_9, window_bounds = array<i64: 4, 8, 128>}]} {
    %c0 = arith.constant 0 : index
    %c0_0 = arith.constant 0 : index
    %c0_1 = arith.constant 0 : index
    %0 = vector.load %arg1[%c0, %c0_0, %c0_1] : memref<4x8x32xf32, #tpu.memory_space<vmem>>, vector<4x8x32xf32>
    %c0_2 = arith.constant 0 : index
    %c0_3 = arith.constant 0 : index
    %c0_4 = arith.constant 0 : index
    %1 = vector.load %arg2[%c0_2, %c0_3, %c0_4] : memref<4x8x32xf32, #tpu.memory_space<vmem>>, vector<4x8x32xf32>
    %c0_5 = arith.constant 0 : index
    %c0_6 = arith.constant 0 : index
    %2 = vector.load %arg3[%c0_5, %c0_6] : memref<32x32xbf16, #tpu.memory_space<vmem>>, vector<32x32xbf16>
    %c0_7 = arith.constant 0 : index
    %c0_8 = arith.constant 0 : index
    %3 = vector.load %arg4[%c0_7, %c0_8] : memref<32x64xbf16, #tpu.memory_space<vmem>>, vector<32x64xbf16>
    %c0_9 = arith.constant 0 : index
    %c0_10 = arith.constant 0 : index
    %4 = vector.load %arg5[%c0_9, %c0_10] : memref<32x32xbf16, #tpu.memory_space<vmem>>, vector<32x32xbf16>
    %c0_11 = arith.constant 0 : index
    %c0_12 = arith.constant 0 : index
    %5 = vector.load %arg6[%c0_11, %c0_12] : memref<32x128xbf16, #tpu.memory_space<vmem>>, vector<32x128xbf16>
    %c0_13 = arith.constant 0 : index
    %c0_14 = arith.constant 0 : index
    %6 = vector.load %arg7[%c0_13, %c0_14] : memref<128x32xbf16, #tpu.memory_space<vmem>>, vector<128x32xbf16>
    %c0_15 = arith.constant 0 : index
    %c0_16 = arith.constant 0 : index
    %7 = vector.load %arg8[%c0_15, %c0_16] : memref<96x128xbf16, #tpu.memory_space<vmem>>, vector<96x128xbf16>
    %8 = vector.shape_cast %1 : vector<4x8x32xf32> to vector<32x32xf32>
    %9 = arith.truncf %8 : vector<32x32xf32> to vector<32x32xbf16>
    %cst = arith.constant dense<0.000000e+00> : vector<32x64xf32>
    %10 = tpu.matmul %9, %3, %cst {dimension_numbers = #tpu.dot_dimension_numbers<[1], [0], [0], [1], [0, 0, 1, 1], [], []>} : vector<32x32xbf16>, vector<32x64xbf16>, vector<32x64xf32> -> vector<32x64xf32>
    %11 = vector.extract_strided_slice %10 {offsets = [0, 0], sizes = [32, 32], strides = [1, 1]} : vector<32x64xf32> to vector<32x32xf32>
    %12 = vector.shape_cast %11 : vector<32x32xf32> to vector<4x8x32xf32>
    %13 = tpu.transpose %12, [0, 2, 1] : vector<4x8x32xf32> -> vector<4x32x8xf32>
    %14 = arith.truncf %13 : vector<4x32x8xf32> to vector<4x32x8xbf16>
    %15 = vector.extract_strided_slice %10 {offsets = [0, 32], sizes = [32, 32], strides = [1, 1]} : vector<32x64xf32> to vector<32x32xf32>
    %16 = vector.shape_cast %15 : vector<32x32xf32> to vector<4x8x32xf32>
    %17 = arith.truncf %16 : vector<4x8x32xf32> to vector<4x8x32xbf16>
    %18 = tpu.iota {dimensions = array<i32: 1>} : vector<4x8x32xi32>
    %c7_i32 = arith.constant 7 : i32
    %19 = vector.broadcast %c7_i32 : i32 to vector<4x8x32xi32>
    %20 = arith.cmpi sge, %18, %19 : vector<4x8x32xi32>
    %c6_i32 = arith.constant 6 : i32
    %21 = vector.broadcast %c6_i32 : i32 to vector<4x8x32xi32>
    %22 = arith.cmpi sge, %18, %21 : vector<4x8x32xi32>
    %c1_i32 = arith.constant 1 : i32
    %23 = vector.broadcast %c1_i32 : i32 to vector<4x8x32xi32>
    %24 = arith.cmpi slt, %18, %23 : vector<4x8x32xi32>
    %c2_i32 = arith.constant 2 : i32
    %25 = vector.broadcast %c2_i32 : i32 to vector<4x8x32xi32>
    %26 = arith.cmpi slt, %18, %25 : vector<4x8x32xi32>
    %27 = vector.shape_cast %0 : vector<4x8x32xf32> to vector<32x32xf32>
    %28 = arith.truncf %27 : vector<32x32xf32> to vector<32x32xbf16>
    %cst_17 = arith.constant dense<0.000000e+00> : vector<32x32xf32>
    %29 = tpu.matmul %28, %2, %cst_17 {dimension_numbers = #tpu.dot_dimension_numbers<[1], [0], [0], [1], [0, 0, 1, 1], [], []>} : vector<32x32xbf16>, vector<32x32xbf16>, vector<32x32xf32> -> vector<32x32xf32>
    %30 = vector.shape_cast %29 : vector<32x32xf32> to vector<4x8x32xf32>
    %31 = arith.truncf %30 : vector<4x8x32xf32> to vector<4x8x32xbf16>
    "tpu.trace_start"() <{level = 10 : i32, message = "bld,bds->bls"}> : () -> ()
    %cst_18 = arith.constant dense<0.000000e+00> : vector<4x8x8xf32>
    %32 = tpu.matmul %31, %14, %cst_18 {dimension_numbers = #tpu.dot_dimension_numbers<[2], [1], [1], [2], [0, 0, 0, 1, 1, 2], [0], [0]>} : vector<4x8x32xbf16>, vector<4x32x8xbf16>, vector<4x8x8xf32> -> vector<4x8x8xf32>
    "tpu.trace_stop"() : () -> ()
    %cst_19 = arith.constant dense<0xFF800000> : vector<4x8xf32>
    %33 = vector.multi_reduction <maximumf>, %32, %cst_19 [2] : vector<4x8x8xf32> to vector<4x8xf32>
    %34 = vector.shape_cast %33 : vector<4x8xf32> to vector<4x8x1xf32>
    %35 = vector.broadcast %34 : vector<4x8x1xf32> to vector<4x8x8xf32>
    %36 = arith.subf %32, %35 : vector<4x8x8xf32>
    %37 = math.exp %36 : vector<4x8x8xf32>
    %38 = arith.truncf %37 : vector<4x8x8xf32> to vector<4x8x8xbf16>
    "tpu.trace_start"() <{level = 10 : i32, message = "bls,bsd->bld"}> : () -> ()
    %cst_20 = arith.constant dense<0.000000e+00> : vector<4x8x32xf32>
    %39 = tpu.matmul %38, %17, %cst_20 {dimension_numbers = #tpu.dot_dimension_numbers<[2], [1], [1], [2], [0, 0, 0, 1, 1, 2], [0], [0]>} : vector<4x8x8xbf16>, vector<4x8x32xbf16>, vector<4x8x32xf32> -> vector<4x8x32xf32>
    "tpu.trace_stop"() : () -> ()
    %cst_21 = arith.constant dense<0.000000e+00> : vector<4x8xf32>
    %40 = vector.multi_reduction <add>, %37, %cst_21 [2] : vector<4x8x8xf32> to vector<4x8xf32>
    %41 = vector.shape_cast %40 : vector<4x8xf32> to vector<4x8x1xf32>
    %42 = tpu.reciprocal %41 {approx = true} : vector<4x8x1xf32> -> vector<4x8x1xf32>
    %43 = vector.broadcast %42 : vector<4x8x1xf32> to vector<4x8x32xf32>
    %44 = arith.mulf %39, %43 : vector<4x8x32xf32>
    %45 = vector.shape_cast %44 : vector<4x8x32xf32> to vector<32x32xf32>
    %46 = arith.truncf %45 : vector<32x32xf32> to vector<32x32xbf16>
    %cst_22 = arith.constant dense<0.000000e+00> : vector<32x32xf32>
    %47 = tpu.matmul %46, %4, %cst_22 {dimension_numbers = #tpu.dot_dimension_numbers<[1], [0], [0], [1], [0, 0, 1, 1], [], []>} : vector<32x32xbf16>, vector<32x32xbf16>, vector<32x32xf32> -> vector<32x32xf32>
    %48 = vector.shape_cast %47 : vector<32x32xf32> to vector<4x8x32xf32>
    %49 = arith.addf %0, %48 : vector<4x8x32xf32>
    %50 = vector.extract_strided_slice %49 {offsets = [0, 0, 0], sizes = [4, 1, 32], strides = [1, 1, 1]} : vector<4x8x32xf32> to vector<4x1x32xf32>
    %51 = vector.shape_cast %50 : vector<4x1x32xf32> to vector<4x1x32xf32>
    %52 = vector.broadcast %51 : vector<4x1x32xf32> to vector<4x8x32xf32>
    %53 = vector.extract_strided_slice %49 {offsets = [0, 7, 0], sizes = [4, 1, 32], strides = [1, 1, 1]} : vector<4x8x32xf32> to vector<4x1x32xf32>
    %54 = vector.shape_cast %53 : vector<4x1x32xf32> to vector<4x1x32xf32>
    %55 = vector.broadcast %54 : vector<4x1x32xf32> to vector<4x8x32xf32>
    %56 = vector.extract_strided_slice %49 {offsets = [0, 1, 0], sizes = [4, 7, 32], strides = [1, 1, 1]} : vector<4x8x32xf32> to vector<4x7x32xf32>
    %57 = vector.extract_strided_slice %49 {offsets = [0, 0, 0], sizes = [4, 1, 32], strides = [1, 1, 1]} : vector<4x8x32xf32> to vector<4x1x32xf32>
    %58 = tpu.concatenate %56, %57 in 1 : vector<4x7x32xf32>, vector<4x1x32xf32> -> vector<4x8x32xf32>
    %59 = arith.select %20, %55, %58 : vector<4x8x32xi1>, vector<4x8x32xf32>
    %60 = vector.extract_strided_slice %49 {offsets = [0, 7, 0], sizes = [4, 1, 32], strides = [1, 1, 1]} : vector<4x8x32xf32> to vector<4x1x32xf32>
    %61 = vector.extract_strided_slice %49 {offsets = [0, 0, 0], sizes = [4, 7, 32], strides = [1, 1, 1]} : vector<4x8x32xf32> to vector<4x7x32xf32>
    %62 = tpu.concatenate %60, %61 in 1 : vector<4x1x32xf32>, vector<4x7x32xf32> -> vector<4x8x32xf32>
    %63 = arith.select %24, %52, %62 : vector<4x8x32xi1>, vector<4x8x32xf32>
    %64 = arith.addf %49, %59 : vector<4x8x32xf32>
    %65 = arith.addf %64, %63 : vector<4x8x32xf32>
    %66 = vector.extract_strided_slice %49 {offsets = [0, 2, 0], sizes = [4, 6, 32], strides = [1, 1, 1]} : vector<4x8x32xf32> to vector<4x6x32xf32>
    %67 = vector.extract_strided_slice %49 {offsets = [0, 0, 0], sizes = [4, 2, 32], strides = [1, 1, 1]} : vector<4x8x32xf32> to vector<4x2x32xf32>
    %68 = tpu.concatenate %66, %67 in 1 : vector<4x6x32xf32>, vector<4x2x32xf32> -> vector<4x8x32xf32>
    %69 = arith.select %22, %55, %68 : vector<4x8x32xi1>, vector<4x8x32xf32>
    %70 = vector.extract_strided_slice %49 {offsets = [0, 6, 0], sizes = [4, 2, 32], strides = [1, 1, 1]} : vector<4x8x32xf32> to vector<4x2x32xf32>
    %71 = vector.extract_strided_slice %49 {offsets = [0, 0, 0], sizes = [4, 6, 32], strides = [1, 1, 1]} : vector<4x8x32xf32> to vector<4x6x32xf32>
    %72 = tpu.concatenate %70, %71 in 1 : vector<4x2x32xf32>, vector<4x6x32xf32> -> vector<4x8x32xf32>
    %73 = arith.select %26, %52, %72 : vector<4x8x32xi1>, vector<4x8x32xf32>
    %74 = arith.addf %65, %69 : vector<4x8x32xf32>
    %75 = arith.addf %74, %73 : vector<4x8x32xf32>
    %cst_23 = arith.constant 2.000000e-01 : f32
    %76 = vector.broadcast %cst_23 : f32 to vector<4x8x32xf32>
    %77 = arith.mulf %75, %76 : vector<4x8x32xf32>
    %78 = arith.subf %49, %77 : vector<4x8x32xf32>
    %79 = vector.shape_cast %78 : vector<4x8x32xf32> to vector<32x32xf32>
    %80 = arith.truncf %79 : vector<32x32xf32> to vector<32x32xbf16>
    %cst_24 = arith.constant dense<0.000000e+00> : vector<32x32xf32>
    %81 = tpu.matmul %80, %2, %cst_24 {dimension_numbers = #tpu.dot_dimension_numbers<[1], [0], [0], [1], [0, 0, 1, 1], [], []>} : vector<32x32xbf16>, vector<32x32xbf16>, vector<32x32xf32> -> vector<32x32xf32>
    %82 = vector.shape_cast %81 : vector<32x32xf32> to vector<4x8x32xf32>
    %83 = arith.truncf %82 : vector<4x8x32xf32> to vector<4x8x32xbf16>
    "tpu.trace_start"() <{level = 10 : i32, message = "bld,bds->bls"}> : () -> ()
    %cst_25 = arith.constant dense<0.000000e+00> : vector<4x8x8xf32>
    %84 = tpu.matmul %83, %14, %cst_25 {dimension_numbers = #tpu.dot_dimension_numbers<[2], [1], [1], [2], [0, 0, 0, 1, 1, 2], [0], [0]>} : vector<4x8x32xbf16>, vector<4x32x8xbf16>, vector<4x8x8xf32> -> vector<4x8x8xf32>
    "tpu.trace_stop"() : () -> ()
    %cst_26 = arith.constant dense<0xFF800000> : vector<4x8xf32>
    %85 = vector.multi_reduction <maximumf>, %84, %cst_26 [2] : vector<4x8x8xf32> to vector<4x8xf32>
    %86 = vector.shape_cast %85 : vector<4x8xf32> to vector<4x8x1xf32>
    %87 = vector.broadcast %86 : vector<4x8x1xf32> to vector<4x8x8xf32>
    %88 = arith.subf %84, %87 : vector<4x8x8xf32>
    %89 = math.exp %88 : vector<4x8x8xf32>
    %90 = arith.truncf %89 : vector<4x8x8xf32> to vector<4x8x8xbf16>
    "tpu.trace_start"() <{level = 10 : i32, message = "bls,bsd->bld"}> : () -> ()
    %cst_27 = arith.constant dense<0.000000e+00> : vector<4x8x32xf32>
    %91 = tpu.matmul %90, %17, %cst_27 {dimension_numbers = #tpu.dot_dimension_numbers<[2], [1], [1], [2], [0, 0, 0, 1, 1, 2], [0], [0]>} : vector<4x8x8xbf16>, vector<4x8x32xbf16>, vector<4x8x32xf32> -> vector<4x8x32xf32>
    "tpu.trace_stop"() : () -> ()
    %cst_28 = arith.constant dense<0.000000e+00> : vector<4x8xf32>
    %92 = vector.multi_reduction <add>, %89, %cst_28 [2] : vector<4x8x8xf32> to vector<4x8xf32>
    %93 = vector.shape_cast %92 : vector<4x8xf32> to vector<4x8x1xf32>
    %94 = tpu.reciprocal %93 {approx = true} : vector<4x8x1xf32> -> vector<4x8x1xf32>
    %95 = vector.broadcast %94 : vector<4x8x1xf32> to vector<4x8x32xf32>
    %96 = arith.mulf %91, %95 : vector<4x8x32xf32>
    %97 = vector.shape_cast %96 : vector<4x8x32xf32> to vector<32x32xf32>
    %98 = arith.truncf %97 : vector<32x32xf32> to vector<32x32xbf16>
    %cst_29 = arith.constant dense<0.000000e+00> : vector<32x32xf32>
    %99 = tpu.matmul %98, %4, %cst_29 {dimension_numbers = #tpu.dot_dimension_numbers<[1], [0], [0], [1], [0, 0, 1, 1], [], []>} : vector<32x32xbf16>, vector<32x32xbf16>, vector<32x32xf32> -> vector<32x32xf32>
    %100 = vector.shape_cast %99 : vector<32x32xf32> to vector<4x8x32xf32>
    %101 = arith.addf %78, %100 : vector<4x8x32xf32>
    %102 = vector.extract_strided_slice %101 {offsets = [0, 0, 0], sizes = [4, 1, 32], strides = [1, 1, 1]} : vector<4x8x32xf32> to vector<4x1x32xf32>
    %103 = vector.shape_cast %102 : vector<4x1x32xf32> to vector<4x1x32xf32>
    %104 = vector.broadcast %103 : vector<4x1x32xf32> to vector<4x8x32xf32>
    %105 = vector.extract_strided_slice %101 {offsets = [0, 7, 0], sizes = [4, 1, 32], strides = [1, 1, 1]} : vector<4x8x32xf32> to vector<4x1x32xf32>
    %106 = vector.shape_cast %105 : vector<4x1x32xf32> to vector<4x1x32xf32>
    %107 = vector.broadcast %106 : vector<4x1x32xf32> to vector<4x8x32xf32>
    %108 = vector.extract_strided_slice %101 {offsets = [0, 1, 0], sizes = [4, 7, 32], strides = [1, 1, 1]} : vector<4x8x32xf32> to vector<4x7x32xf32>
    %109 = vector.extract_strided_slice %101 {offsets = [0, 0, 0], sizes = [4, 1, 32], strides = [1, 1, 1]} : vector<4x8x32xf32> to vector<4x1x32xf32>
    %110 = tpu.concatenate %108, %109 in 1 : vector<4x7x32xf32>, vector<4x1x32xf32> -> vector<4x8x32xf32>
    %111 = arith.select %20, %107, %110 : vector<4x8x32xi1>, vector<4x8x32xf32>
    %112 = vector.extract_strided_slice %101 {offsets = [0, 7, 0], sizes = [4, 1, 32], strides = [1, 1, 1]} : vector<4x8x32xf32> to vector<4x1x32xf32>
    %113 = vector.extract_strided_slice %101 {offsets = [0, 0, 0], sizes = [4, 7, 32], strides = [1, 1, 1]} : vector<4x8x32xf32> to vector<4x7x32xf32>
    %114 = tpu.concatenate %112, %113 in 1 : vector<4x1x32xf32>, vector<4x7x32xf32> -> vector<4x8x32xf32>
    %115 = arith.select %24, %104, %114 : vector<4x8x32xi1>, vector<4x8x32xf32>
    %116 = arith.addf %101, %111 : vector<4x8x32xf32>
    %117 = arith.addf %116, %115 : vector<4x8x32xf32>
    %118 = vector.extract_strided_slice %101 {offsets = [0, 2, 0], sizes = [4, 6, 32], strides = [1, 1, 1]} : vector<4x8x32xf32> to vector<4x6x32xf32>
    %119 = vector.extract_strided_slice %101 {offsets = [0, 0, 0], sizes = [4, 2, 32], strides = [1, 1, 1]} : vector<4x8x32xf32> to vector<4x2x32xf32>
    %120 = tpu.concatenate %118, %119 in 1 : vector<4x6x32xf32>, vector<4x2x32xf32> -> vector<4x8x32xf32>
    %121 = arith.select %22, %107, %120 : vector<4x8x32xi1>, vector<4x8x32xf32>
    %122 = vector.extract_strided_slice %101 {offsets = [0, 6, 0], sizes = [4, 2, 32], strides = [1, 1, 1]} : vector<4x8x32xf32> to vector<4x2x32xf32>
    %123 = vector.extract_strided_slice %101 {offsets = [0, 0, 0], sizes = [4, 6, 32], strides = [1, 1, 1]} : vector<4x8x32xf32> to vector<4x6x32xf32>
    %124 = tpu.concatenate %122, %123 in 1 : vector<4x2x32xf32>, vector<4x6x32xf32> -> vector<4x8x32xf32>
    %125 = arith.select %26, %104, %124 : vector<4x8x32xi1>, vector<4x8x32xf32>
    %126 = arith.addf %117, %121 : vector<4x8x32xf32>
    %127 = arith.addf %126, %125 : vector<4x8x32xf32>
    %cst_30 = arith.constant 2.000000e-01 : f32
    %128 = vector.broadcast %cst_30 : f32 to vector<4x8x32xf32>
    %129 = arith.mulf %127, %128 : vector<4x8x32xf32>
    %130 = arith.subf %101, %129 : vector<4x8x32xf32>
    %131 = vector.shape_cast %130 : vector<4x8x32xf32> to vector<32x32xf32>
    %132 = arith.truncf %131 : vector<32x32xf32> to vector<32x32xbf16>
    %cst_31 = arith.constant dense<0.000000e+00> : vector<32x128xf32>
    %133 = tpu.matmul %132, %5, %cst_31 {dimension_numbers = #tpu.dot_dimension_numbers<[1], [0], [0], [1], [0, 0, 1, 1], [], []>} : vector<32x32xbf16>, vector<32x128xbf16>, vector<32x128xf32> -> vector<32x128xf32>
    %cst_32 = arith.constant 0.000000e+00 : f32
    %134 = vector.broadcast %cst_32 : f32 to vector<32x128xf32>
    %135 = arith.maximumf %133, %134 : vector<32x128xf32>
    %136 = arith.truncf %135 : vector<32x128xf32> to vector<32x128xbf16>
    %cst_33 = arith.constant dense<0.000000e+00> : vector<32x32xf32>
    %137 = tpu.matmul %136, %6, %cst_33 {dimension_numbers = #tpu.dot_dimension_numbers<[1], [0], [0], [1], [0, 0, 1, 1], [], []>} : vector<32x128xbf16>, vector<128x32xbf16>, vector<32x32xf32> -> vector<32x32xf32>
    %138 = vector.shape_cast %137 : vector<32x32xf32> to vector<4x8x32xf32>
    %139 = arith.addf %130, %138 : vector<4x8x32xf32>
    %140 = vector.extract_strided_slice %139 {offsets = [0, 0, 0], sizes = [4, 1, 32], strides = [1, 1, 1]} : vector<4x8x32xf32> to vector<4x1x32xf32>
    %141 = vector.shape_cast %140 : vector<4x1x32xf32> to vector<4x1x32xf32>
    %142 = vector.broadcast %141 : vector<4x1x32xf32> to vector<4x8x32xf32>
    %143 = vector.extract_strided_slice %139 {offsets = [0, 7, 0], sizes = [4, 1, 32], strides = [1, 1, 1]} : vector<4x8x32xf32> to vector<4x1x32xf32>
    %144 = vector.shape_cast %143 : vector<4x1x32xf32> to vector<4x1x32xf32>
    %145 = vector.broadcast %144 : vector<4x1x32xf32> to vector<4x8x32xf32>
    %146 = vector.extract_strided_slice %139 {offsets = [0, 1, 0], sizes = [4, 7, 32], strides = [1, 1, 1]} : vector<4x8x32xf32> to vector<4x7x32xf32>
    %147 = vector.extract_strided_slice %139 {offsets = [0, 0, 0], sizes = [4, 1, 32], strides = [1, 1, 1]} : vector<4x8x32xf32> to vector<4x1x32xf32>
    %148 = tpu.concatenate %146, %147 in 1 : vector<4x7x32xf32>, vector<4x1x32xf32> -> vector<4x8x32xf32>
    %149 = arith.select %20, %145, %148 : vector<4x8x32xi1>, vector<4x8x32xf32>
    %150 = vector.extract_strided_slice %139 {offsets = [0, 7, 0], sizes = [4, 1, 32], strides = [1, 1, 1]} : vector<4x8x32xf32> to vector<4x1x32xf32>
    %151 = vector.extract_strided_slice %139 {offsets = [0, 0, 0], sizes = [4, 7, 32], strides = [1, 1, 1]} : vector<4x8x32xf32> to vector<4x7x32xf32>
    %152 = tpu.concatenate %150, %151 in 1 : vector<4x1x32xf32>, vector<4x7x32xf32> -> vector<4x8x32xf32>
    %153 = arith.select %24, %142, %152 : vector<4x8x32xi1>, vector<4x8x32xf32>
    %154 = arith.addf %139, %149 : vector<4x8x32xf32>
    %155 = arith.addf %154, %153 : vector<4x8x32xf32>
    %156 = vector.extract_strided_slice %139 {offsets = [0, 2, 0], sizes = [4, 6, 32], strides = [1, 1, 1]} : vector<4x8x32xf32> to vector<4x6x32xf32>
    %157 = vector.extract_strided_slice %139 {offsets = [0, 0, 0], sizes = [4, 2, 32], strides = [1, 1, 1]} : vector<4x8x32xf32> to vector<4x2x32xf32>
    %158 = tpu.concatenate %156, %157 in 1 : vector<4x6x32xf32>, vector<4x2x32xf32> -> vector<4x8x32xf32>
    %159 = arith.select %22, %145, %158 : vector<4x8x32xi1>, vector<4x8x32xf32>
    %160 = vector.extract_strided_slice %139 {offsets = [0, 6, 0], sizes = [4, 2, 32], strides = [1, 1, 1]} : vector<4x8x32xf32> to vector<4x2x32xf32>
    %161 = vector.extract_strided_slice %139 {offsets = [0, 0, 0], sizes = [4, 6, 32], strides = [1, 1, 1]} : vector<4x8x32xf32> to vector<4x6x32xf32>
    %162 = tpu.concatenate %160, %161 in 1 : vector<4x2x32xf32>, vector<4x6x32xf32> -> vector<4x8x32xf32>
    %163 = arith.select %26, %142, %162 : vector<4x8x32xi1>, vector<4x8x32xf32>
    %164 = arith.addf %155, %159 : vector<4x8x32xf32>
    %165 = arith.addf %164, %163 : vector<4x8x32xf32>
    %cst_34 = arith.constant 2.000000e-01 : f32
    %166 = vector.broadcast %cst_34 : f32 to vector<4x8x32xf32>
    %167 = arith.mulf %165, %166 : vector<4x8x32xf32>
    %168 = arith.subf %139, %167 : vector<4x8x32xf32>
    %c0_35 = arith.constant 0 : index
    %c0_36 = arith.constant 0 : index
    %c0_37 = arith.constant 0 : index
    %169 = vector.load %arg9[%c0_35, %c0_36, %c0_37] : memref<4x8x32xf32, #tpu.memory_space<vmem>>, vector<4x8x32xf32>
    tpu.vector_store %arg9[%c0_35, %c0_36, %c0_37], %168 {strides = array<i32>} : memref<4x8x32xf32, #tpu.memory_space<vmem>>, vector<4x8x32xf32>,
    %170 = arith.addf %77, %129 : vector<4x8x32xf32>
    %171 = arith.addf %170, %167 : vector<4x8x32xf32>
    %172 = vector.extract_strided_slice %171 {offsets = [0, 7, 0], sizes = [4, 1, 32], strides = [1, 1, 1]} : vector<4x8x32xf32> to vector<4x1x32xf32>
    %173 = vector.extract_strided_slice %171 {offsets = [0, 0, 0], sizes = [4, 7, 32], strides = [1, 1, 1]} : vector<4x8x32xf32> to vector<4x7x32xf32>
    %174 = tpu.concatenate %172, %173 in 1 : vector<4x1x32xf32>, vector<4x7x32xf32> -> vector<4x8x32xf32>
    %175 = vector.extract_strided_slice %171 {offsets = [0, 1, 0], sizes = [4, 7, 32], strides = [1, 1, 1]} : vector<4x8x32xf32> to vector<4x7x32xf32>
    %176 = vector.extract_strided_slice %171 {offsets = [0, 0, 0], sizes = [4, 1, 32], strides = [1, 1, 1]} : vector<4x8x32xf32> to vector<4x1x32xf32>
    %177 = tpu.concatenate %175, %176 in 1 : vector<4x7x32xf32>, vector<4x1x32xf32> -> vector<4x8x32xf32>
    %178 = tpu.concatenate %174, %171, %177 in 2 : vector<4x8x32xf32>, vector<4x8x32xf32>, vector<4x8x32xf32> -> vector<4x8x96xf32>
    %179 = vector.shape_cast %178 : vector<4x8x96xf32> to vector<32x96xf32>
    %180 = arith.truncf %179 : vector<32x96xf32> to vector<32x96xbf16>
    %cst_38 = arith.constant dense<0.000000e+00> : vector<32x128xf32>
    %181 = tpu.matmul %180, %7, %cst_38 {dimension_numbers = #tpu.dot_dimension_numbers<[1], [0], [0], [1], [0, 0, 1, 1], [], []>} : vector<32x96xbf16>, vector<96x128xbf16>, vector<32x128xf32> -> vector<32x128xf32>
    %182 = vector.shape_cast %181 : vector<32x128xf32> to vector<4x8x128xf32>
    %c0_39 = arith.constant 0 : index
    %c0_40 = arith.constant 0 : index
    %c0_41 = arith.constant 0 : index
    %183 = vector.load %arg10[%c0_39, %c0_40, %c0_41] : memref<4x8x128xf32, #tpu.memory_space<vmem>>, vector<4x8x128xf32>
    tpu.vector_store %arg10[%c0_39, %c0_40, %c0_41], %182 {strides = array<i32>} : memref<4x8x128xf32, #tpu.memory_space<vmem>>, vector<4x8x128xf32>,
    return
  }
  func.func @transform_0(%arg0: i32) -> (i32, i32, i32) {
    %c0_i32 = arith.constant 0 : i32
    %c0_i32_0 = arith.constant 0 : i32
    %c0_i32_1 = arith.constant 0 : i32
    return %arg0, %c0_i32, %c0_i32_0 : i32, i32, i32
  }
  func.func @transform_1(%arg0: i32) -> (i32, i32, i32) {
    %c0_i32 = arith.constant 0 : i32
    %c0_i32_0 = arith.constant 0 : i32
    %c0_i32_1 = arith.constant 0 : i32
    return %arg0, %c0_i32, %c0_i32_0 : i32, i32, i32
  }
  func.func @transform_2(%arg0: i32) -> (i32, i32) {
    %c0_i32 = arith.constant 0 : i32
    %c0_i32_0 = arith.constant 0 : i32
    %c0_i32_1 = arith.constant 0 : i32
    return %c0_i32, %c0_i32_0 : i32, i32
  }
  func.func @transform_3(%arg0: i32) -> (i32, i32) {
    %c0_i32 = arith.constant 0 : i32
    %c0_i32_0 = arith.constant 0 : i32
    %c0_i32_1 = arith.constant 0 : i32
    return %c0_i32, %c0_i32_0 : i32, i32
  }
  func.func @transform_4(%arg0: i32) -> (i32, i32) {
    %c0_i32 = arith.constant 0 : i32
    %c0_i32_0 = arith.constant 0 : i32
    %c0_i32_1 = arith.constant 0 : i32
    return %c0_i32, %c0_i32_0 : i32, i32
  }
  func.func @transform_5(%arg0: i32) -> (i32, i32) {
    %c0_i32 = arith.constant 0 : i32
    %c0_i32_0 = arith.constant 0 : i32
    %c0_i32_1 = arith.constant 0 : i32
    return %c0_i32, %c0_i32_0 : i32, i32
  }
  func.func @transform_6(%arg0: i32) -> (i32, i32) {
    %c0_i32 = arith.constant 0 : i32
    %c0_i32_0 = arith.constant 0 : i32
    %c0_i32_1 = arith.constant 0 : i32
    return %c0_i32, %c0_i32_0 : i32, i32
  }
  func.func @transform_7(%arg0: i32) -> (i32, i32) {
    %c0_i32 = arith.constant 0 : i32
    %c0_i32_0 = arith.constant 0 : i32
    %c0_i32_1 = arith.constant 0 : i32
    return %c0_i32, %c0_i32_0 : i32, i32
  }
  func.func @transform_8(%arg0: i32) -> (i32, i32, i32) {
    %c0_i32 = arith.constant 0 : i32
    %c0_i32_0 = arith.constant 0 : i32
    %c0_i32_1 = arith.constant 0 : i32
    return %arg0, %c0_i32, %c0_i32_0 : i32, i32, i32
  }
  func.func @transform_9(%arg0: i32) -> (i32, i32, i32) {
    %c0_i32 = arith.constant 0 : i32
    %c0_i32_0 = arith.constant 0 : i32
    %c0_i32_1 = arith.constant 0 : i32
    return %arg0, %c0_i32, %c0_i32_0 : i32, i32, i32
  }
}

module attributes {stable_mosaic.version = 11 : i64} {
  func.func @_decoder_layer_kernel(%arg0: i32, %arg1: memref<4x8x32xf32, #tpu.memory_space<vmem>>, %arg2: memref<4x8x32xf32, #tpu.memory_space<vmem>>, %arg3: memref<32x32xbf16, #tpu.memory_space<vmem>>, %arg4: memref<32x64xbf16, #tpu.memory_space<vmem>>, %arg5: memref<32x32xbf16, #tpu.memory_space<vmem>>, %arg6: memref<32x128xbf16, #tpu.memory_space<vmem>>, %arg7: memref<128x32xbf16, #tpu.memory_space<vmem>>, %arg8: memref<96x128xbf16, #tpu.memory_space<vmem>>, %arg9: memref<4x8x32xf32, #tpu.memory_space<vmem>>, %arg10: memref<4x8x128xf32, #tpu.memory_space<vmem>>) attributes {dimension_semantics = [#tpu.dimension_semantics<parallel>], iteration_bounds = array<i64: 1>, scalar_prefetch = 0 : i64, scratch_operands = 0 : i64, tpu.core_type = #tpu.core_type<tc>, window_params = [{transform_indices = @transform_0, window_bounds = array<i64: 4, 8, 32>}, {transform_indices = @transform_1, window_bounds = array<i64: 4, 8, 32>}, {pipeline_mode = #tpu.pipeline_mode<synchronous>, transform_indices = @transform_2, window_bounds = array<i64: 32, 32>}, {pipeline_mode = #tpu.pipeline_mode<synchronous>, transform_indices = @transform_3, window_bounds = array<i64: 32, 64>}, {pipeline_mode = #tpu.pipeline_mode<synchronous>, transform_indices = @transform_4, window_bounds = array<i64: 32, 32>}, {pipeline_mode = #tpu.pipeline_mode<synchronous>, transform_indices = @transform_5, window_bounds = array<i64: 32, 128>}, {pipeline_mode = #tpu.pipeline_mode<synchronous>, transform_indices = @transform_6, window_bounds = array<i64: 128, 32>}, {pipeline_mode = #tpu.pipeline_mode<synchronous>, transform_indices = @transform_7, window_bounds = array<i64: 96, 128>}, {transform_indices = @transform_8, window_bounds = array<i64: 4, 8, 32>}, {transform_indices = @transform_9, window_bounds = array<i64: 4, 8, 128>}]} {
    %c0 = arith.constant 0 : index
    %c0_0 = arith.constant 0 : index
    %c0_1 = arith.constant 0 : index
    %0 = vector.load %arg1[%c0, %c0_0, %c0_1] : memref<4x8x32xf32, #tpu.memory_space<vmem>>, vector<4x8x32xf32>
    %c0_2 = arith.constant 0 : index
    %c0_3 = arith.constant 0 : index
    %c0_4 = arith.constant 0 : index
    %1 = vector.load %arg2[%c0_2, %c0_3, %c0_4] : memref<4x8x32xf32, #tpu.memory_space<vmem>>, vector<4x8x32xf32>
    %c0_5 = arith.constant 0 : index
    %c0_6 = arith.constant 0 : index
    %2 = vector.load %arg3[%c0_5, %c0_6] : memref<32x32xbf16, #tpu.memory_space<vmem>>, vector<32x32xbf16>
    %c0_7 = arith.constant 0 : index
    %c0_8 = arith.constant 0 : index
    %3 = vector.load %arg4[%c0_7, %c0_8] : memref<32x64xbf16, #tpu.memory_space<vmem>>, vector<32x64xbf16>
    %c0_9 = arith.constant 0 : index
    %c0_10 = arith.constant 0 : index
    %4 = vector.load %arg5[%c0_9, %c0_10] : memref<32x32xbf16, #tpu.memory_space<vmem>>, vector<32x32xbf16>
    %c0_11 = arith.constant 0 : index
    %c0_12 = arith.constant 0 : index
    %5 = vector.load %arg6[%c0_11, %c0_12] : memref<32x128xbf16, #tpu.memory_space<vmem>>, vector<32x128xbf16>
    %c0_13 = arith.constant 0 : index
    %c0_14 = arith.constant 0 : index
    %6 = vector.load %arg7[%c0_13, %c0_14] : memref<128x32xbf16, #tpu.memory_space<vmem>>, vector<128x32xbf16>
    %c0_15 = arith.constant 0 : index
    %c0_16 = arith.constant 0 : index
    %7 = vector.load %arg8[%c0_15, %c0_16] : memref<96x128xbf16, #tpu.memory_space<vmem>>, vector<96x128xbf16>
    %8 = vector.shape_cast %1 : vector<4x8x32xf32> to vector<32x32xf32>
    %9 = arith.truncf %8 : vector<32x32xf32> to vector<32x32xbf16>
    %cst = arith.constant dense<0.000000e+00> : vector<32x64xf32>
    %10 = tpu.matmul %9, %3, %cst {dimension_numbers = #tpu.dot_dimension_numbers<[1], [0], [0], [1], [0, 0, 1, 1], [], []>} : vector<32x32xbf16>, vector<32x64xbf16>, vector<32x64xf32> -> vector<32x64xf32>
    %11 = vector.extract_strided_slice %10 {offsets = [0, 0], sizes = [32, 32], strides = [1, 1]} : vector<32x64xf32> to vector<32x32xf32>
    %12 = vector.shape_cast %11 : vector<32x32xf32> to vector<4x8x32xf32>
    %13 = tpu.transpose %12, [0, 2, 1] : vector<4x8x32xf32> -> vector<4x32x8xf32>
    %14 = arith.truncf %13 : vector<4x32x8xf32> to vector<4x32x8xbf16>
    %15 = vector.extract_strided_slice %10 {offsets = [0, 32], sizes = [32, 32], strides = [1, 1]} : vector<32x64xf32> to vector<32x32xf32>
    %16 = vector.shape_cast %15 : vector<32x32xf32> to vector<4x8x32xf32>
    %17 = arith.truncf %16 : vector<4x8x32xf32> to vector<4x8x32xbf16>
    %18 = tpu.iota {dimensions = array<i32: 1>} : vector<4x8x32xi32>
    %c7_i32 = arith.constant 7 : i32
    %19 = vector.broadcast %c7_i32 : i32 to vector<4x8x32xi32>
    %20 = arith.cmpi sge, %18, %19 : vector<4x8x32xi32>
    %c6_i32 = arith.constant 6 : i32
    %21 = vector.broadcast %c6_i32 : i32 to vector<4x8x32xi32>
    %22 = arith.cmpi sge, %18, %21 : vector<4x8x32xi32>
    %c1_i32 = arith.constant 1 : i32
    %23 = vector.broadcast %c1_i32 : i32 to vector<4x8x32xi32>
    %24 = arith.cmpi slt, %18, %23 : vector<4x8x32xi32>
    %c2_i32 = arith.constant 2 : i32
    %25 = vector.broadcast %c2_i32 : i32 to vector<4x8x32xi32>
    %26 = arith.cmpi slt, %18, %25 : vector<4x8x32xi32>
    %27 = vector.shape_cast %0 : vector<4x8x32xf32> to vector<32x32xf32>
    %28 = arith.truncf %27 : vector<32x32xf32> to vector<32x32xbf16>
    %cst_17 = arith.constant dense<0.000000e+00> : vector<32x32xf32>
    %29 = tpu.matmul %28, %2, %cst_17 {dimension_numbers = #tpu.dot_dimension_numbers<[1], [0], [0], [1], [0, 0, 1, 1], [], []>} : vector<32x32xbf16>, vector<32x32xbf16>, vector<32x32xf32> -> vector<32x32xf32>
    %30 = vector.shape_cast %29 : vector<32x32xf32> to vector<4x8x32xf32>
    %31 = arith.truncf %30 : vector<4x8x32xf32> to vector<4x8x32xbf16>
    "tpu.trace_start"() <{level = 10 : i32, message = "bld,bds->bls"}> : () -> ()
    %cst_18 = arith.constant dense<0.000000e+00> : vector<4x8x8xf32>
    %32 = tpu.matmul %31, %14, %cst_18 {dimension_numbers = #tpu.dot_dimension_numbers<[2], [1], [1], [2], [0, 0, 0, 1, 1, 2], [0], [0]>} : vector<4x8x32xbf16>, vector<4x32x8xbf16>, vector<4x8x8xf32> -> vector<4x8x8xf32>
    "tpu.trace_stop"() : () -> ()
    %cst_19 = arith.constant dense<0xFF800000> : vector<4x8xf32>
    %33 = vector.multi_reduction <maximumf>, %32, %cst_19 [2] : vector<4x8x8xf32> to vector<4x8xf32>
    %34 = vector.shape_cast %33 : vector<4x8xf32> to vector<4x8x1xf32>
    %35 = vector.broadcast %34 : vector<4x8x1xf32> to vector<4x8x8xf32>
    %36 = arith.subf %32, %35 : vector<4x8x8xf32>
    %37 = math.exp %36 : vector<4x8x8xf32>
    %38 = arith.truncf %37 : vector<4x8x8xf32> to vector<4x8x8xbf16>
    "tpu.trace_start"() <{level = 10 : i32, message = "bls,bsd->bld"}> : () -> ()
    %cst_20 = arith.constant dense<0.000000e+00> : vector<4x8x32xf32>
    %39 = tpu.matmul %38, %17, %cst_20 {dimension_numbers = #tpu.dot_dimension_numbers<[2], [1], [1], [2], [0, 0, 0, 1, 1, 2], [0], [0]>} : vector<4x8x8xbf16>, vector<4x8x32xbf16>, vector<4x8x32xf32> -> vector<4x8x32xf32>
    "tpu.trace_stop"() : () -> ()
    %cst_21 = arith.constant dense<0.000000e+00> : vector<4x8xf32>
    %40 = vector.multi_reduction <add>, %37, %cst_21 [2] : vector<4x8x8xf32> to vector<4x8xf32>
    %41 = vector.shape_cast %40 : vector<4x8xf32> to vector<4x8x1xf32>
    %42 = tpu.reciprocal %41 {approx = true} : vector<4x8x1xf32> -> vector<4x8x1xf32>
    %43 = vector.broadcast %42 : vector<4x8x1xf32> to vector<4x8x32xf32>
    %44 = arith.mulf %39, %43 : vector<4x8x32xf32>
    %45 = vector.shape_cast %44 : vector<4x8x32xf32> to vector<32x32xf32>
    %46 = arith.truncf %45 : vector<32x32xf32> to vector<32x32xbf16>
    %cst_22 = arith.constant dense<0.000000e+00> : vector<32x32xf32>
    %47 = tpu.matmul %46, %4, %cst_22 {dimension_numbers = #tpu.dot_dimension_numbers<[1], [0], [0], [1], [0, 0, 1, 1], [], []>} : vector<32x32xbf16>, vector<32x32xbf16>, vector<32x32xf32> -> vector<32x32xf32>
    %48 = vector.shape_cast %47 : vector<32x32xf32> to vector<4x8x32xf32>
    %49 = arith.addf %0, %48 : vector<4x8x32xf32>
    %50 = vector.extract_strided_slice %49 {offsets = [0, 0, 0], sizes = [4, 1, 32], strides = [1, 1, 1]} : vector<4x8x32xf32> to vector<4x1x32xf32>
    %51 = vector.shape_cast %50 : vector<4x1x32xf32> to vector<4x1x32xf32>
    %52 = vector.broadcast %51 : vector<4x1x32xf32> to vector<4x8x32xf32>
    %53 = vector.extract_strided_slice %49 {offsets = [0, 7, 0], sizes = [4, 1, 32], strides = [1, 1, 1]} : vector<4x8x32xf32> to vector<4x1x32xf32>
    %54 = vector.shape_cast %53 : vector<4x1x32xf32> to vector<4x1x32xf32>
    %55 = vector.broadcast %54 : vector<4x1x32xf32> to vector<4x8x32xf32>
    %56 = vector.extract_strided_slice %49 {offsets = [0, 1, 0], sizes = [4, 7, 32], strides = [1, 1, 1]} : vector<4x8x32xf32> to vector<4x7x32xf32>
    %57 = vector.extract_strided_slice %49 {offsets = [0, 0, 0], sizes = [4, 1, 32], strides = [1, 1, 1]} : vector<4x8x32xf32> to vector<4x1x32xf32>
    %58 = tpu.concatenate %56, %57 in 1 : vector<4x7x32xf32>, vector<4x1x32xf32> -> vector<4x8x32xf32>
    %59 = arith.select %20, %55, %58 : vector<4x8x32xi1>, vector<4x8x32xf32>
    %60 = vector.extract_strided_slice %49 {offsets = [0, 7, 0], sizes = [4, 1, 32], strides = [1, 1, 1]} : vector<4x8x32xf32> to vector<4x1x32xf32>
    %61 = vector.extract_strided_slice %49 {offsets = [0, 0, 0], sizes = [4, 7, 32], strides = [1, 1, 1]} : vector<4x8x32xf32> to vector<4x7x32xf32>
    %62 = tpu.concatenate %60, %61 in 1 : vector<4x1x32xf32>, vector<4x7x32xf32> -> vector<4x8x32xf32>
    %63 = arith.select %24, %52, %62 : vector<4x8x32xi1>, vector<4x8x32xf32>
    %64 = arith.addf %49, %59 : vector<4x8x32xf32>
    %65 = arith.addf %64, %63 : vector<4x8x32xf32>
    %66 = vector.extract_strided_slice %49 {offsets = [0, 2, 0], sizes = [4, 6, 32], strides = [1, 1, 1]} : vector<4x8x32xf32> to vector<4x6x32xf32>
    %67 = vector.extract_strided_slice %49 {offsets = [0, 0, 0], sizes = [4, 2, 32], strides = [1, 1, 1]} : vector<4x8x32xf32> to vector<4x2x32xf32>
    %68 = tpu.concatenate %66, %67 in 1 : vector<4x6x32xf32>, vector<4x2x32xf32> -> vector<4x8x32xf32>
    %69 = arith.select %22, %55, %68 : vector<4x8x32xi1>, vector<4x8x32xf32>
    %70 = vector.extract_strided_slice %49 {offsets = [0, 6, 0], sizes = [4, 2, 32], strides = [1, 1, 1]} : vector<4x8x32xf32> to vector<4x2x32xf32>
    %71 = vector.extract_strided_slice %49 {offsets = [0, 0, 0], sizes = [4, 6, 32], strides = [1, 1, 1]} : vector<4x8x32xf32> to vector<4x6x32xf32>
    %72 = tpu.concatenate %70, %71 in 1 : vector<4x2x32xf32>, vector<4x6x32xf32> -> vector<4x8x32xf32>
    %73 = arith.select %26, %52, %72 : vector<4x8x32xi1>, vector<4x8x32xf32>
    %74 = arith.addf %65, %69 : vector<4x8x32xf32>
    %75 = arith.addf %74, %73 : vector<4x8x32xf32>
    %cst_23 = arith.constant 2.000000e-01 : f32
    %76 = vector.broadcast %cst_23 : f32 to vector<4x8x32xf32>
    %77 = arith.mulf %75, %76 : vector<4x8x32xf32>
    %78 = arith.subf %49, %77 : vector<4x8x32xf32>
    %79 = vector.shape_cast %78 : vector<4x8x32xf32> to vector<32x32xf32>
    %80 = arith.truncf %79 : vector<32x32xf32> to vector<32x32xbf16>
    %cst_24 = arith.constant dense<0.000000e+00> : vector<32x32xf32>
    %81 = tpu.matmul %80, %2, %cst_24 {dimension_numbers = #tpu.dot_dimension_numbers<[1], [0], [0], [1], [0, 0, 1, 1], [], []>} : vector<32x32xbf16>, vector<32x32xbf16>, vector<32x32xf32> -> vector<32x32xf32>
    %82 = vector.shape_cast %81 : vector<32x32xf32> to vector<4x8x32xf32>
    %83 = arith.truncf %82 : vector<4x8x32xf32> to vector<4x8x32xbf16>
    "tpu.trace_start"() <{level = 10 : i32, message = "bld,bds->bls"}> : () -> ()
    %cst_25 = arith.constant dense<0.000000e+00> : vector<4x8x8xf32>
    %84 = tpu.matmul %83, %14, %cst_25 {dimension_numbers = #tpu.dot_dimension_numbers<[2], [1], [1], [2], [0, 0, 0, 1, 1, 2], [0], [0]>} : vector<4x8x32xbf16>, vector<4x32x8xbf16>, vector<4x8x8xf32> -> vector<4x8x8xf32>
    "tpu.trace_stop"() : () -> ()
    %cst_26 = arith.constant dense<0xFF800000> : vector<4x8xf32>
    %85 = vector.multi_reduction <maximumf>, %84, %cst_26 [2] : vector<4x8x8xf32> to vector<4x8xf32>
    %86 = vector.shape_cast %85 : vector<4x8xf32> to vector<4x8x1xf32>
    %87 = vector.broadcast %86 : vector<4x8x1xf32> to vector<4x8x8xf32>
    %88 = arith.subf %84, %87 : vector<4x8x8xf32>
    %89 = math.exp %88 : vector<4x8x8xf32>
    %90 = arith.truncf %89 : vector<4x8x8xf32> to vector<4x8x8xbf16>
    "tpu.trace_start"() <{level = 10 : i32, message = "bls,bsd->bld"}> : () -> ()
    %cst_27 = arith.constant dense<0.000000e+00> : vector<4x8x32xf32>
    %91 = tpu.matmul %90, %17, %cst_27 {dimension_numbers = #tpu.dot_dimension_numbers<[2], [1], [1], [2], [0, 0, 0, 1, 1, 2], [0], [0]>} : vector<4x8x8xbf16>, vector<4x8x32xbf16>, vector<4x8x32xf32> -> vector<4x8x32xf32>
    "tpu.trace_stop"() : () -> ()
    %cst_28 = arith.constant dense<0.000000e+00> : vector<4x8xf32>
    %92 = vector.multi_reduction <add>, %89, %cst_28 [2] : vector<4x8x8xf32> to vector<4x8xf32>
    %93 = vector.shape_cast %92 : vector<4x8xf32> to vector<4x8x1xf32>
    %94 = tpu.reciprocal %93 {approx = true} : vector<4x8x1xf32> -> vector<4x8x1xf32>
    %95 = vector.broadcast %94 : vector<4x8x1xf32> to vector<4x8x32xf32>
    %96 = arith.mulf %91, %95 : vector<4x8x32xf32>
    %97 = vector.shape_cast %96 : vector<4x8x32xf32> to vector<32x32xf32>
    %98 = arith.truncf %97 : vector<32x32xf32> to vector<32x32xbf16>
    %cst_29 = arith.constant dense<0.000000e+00> : vector<32x32xf32>
    %99 = tpu.matmul %98, %4, %cst_29 {dimension_numbers = #tpu.dot_dimension_numbers<[1], [0], [0], [1], [0, 0, 1, 1], [], []>} : vector<32x32xbf16>, vector<32x32xbf16>, vector<32x32xf32> -> vector<32x32xf32>
    %100 = vector.shape_cast %99 : vector<32x32xf32> to vector<4x8x32xf32>
    %101 = arith.addf %78, %100 : vector<4x8x32xf32>
    %102 = vector.extract_strided_slice %101 {offsets = [0, 0, 0], sizes = [4, 1, 32], strides = [1, 1, 1]} : vector<4x8x32xf32> to vector<4x1x32xf32>
    %103 = vector.shape_cast %102 : vector<4x1x32xf32> to vector<4x1x32xf32>
    %104 = vector.broadcast %103 : vector<4x1x32xf32> to vector<4x8x32xf32>
    %105 = vector.extract_strided_slice %101 {offsets = [0, 7, 0], sizes = [4, 1, 32], strides = [1, 1, 1]} : vector<4x8x32xf32> to vector<4x1x32xf32>
    %106 = vector.shape_cast %105 : vector<4x1x32xf32> to vector<4x1x32xf32>
    %107 = vector.broadcast %106 : vector<4x1x32xf32> to vector<4x8x32xf32>
    %108 = vector.extract_strided_slice %101 {offsets = [0, 1, 0], sizes = [4, 7, 32], strides = [1, 1, 1]} : vector<4x8x32xf32> to vector<4x7x32xf32>
    %109 = vector.extract_strided_slice %101 {offsets = [0, 0, 0], sizes = [4, 1, 32], strides = [1, 1, 1]} : vector<4x8x32xf32> to vector<4x1x32xf32>
    %110 = tpu.concatenate %108, %109 in 1 : vector<4x7x32xf32>, vector<4x1x32xf32> -> vector<4x8x32xf32>
    %111 = arith.select %20, %107, %110 : vector<4x8x32xi1>, vector<4x8x32xf32>
    %112 = vector.extract_strided_slice %101 {offsets = [0, 7, 0], sizes = [4, 1, 32], strides = [1, 1, 1]} : vector<4x8x32xf32> to vector<4x1x32xf32>
    %113 = vector.extract_strided_slice %101 {offsets = [0, 0, 0], sizes = [4, 7, 32], strides = [1, 1, 1]} : vector<4x8x32xf32> to vector<4x7x32xf32>
    %114 = tpu.concatenate %112, %113 in 1 : vector<4x1x32xf32>, vector<4x7x32xf32> -> vector<4x8x32xf32>
    %115 = arith.select %24, %104, %114 : vector<4x8x32xi1>, vector<4x8x32xf32>
    %116 = arith.addf %101, %111 : vector<4x8x32xf32>
    %117 = arith.addf %116, %115 : vector<4x8x32xf32>
    %118 = vector.extract_strided_slice %101 {offsets = [0, 2, 0], sizes = [4, 6, 32], strides = [1, 1, 1]} : vector<4x8x32xf32> to vector<4x6x32xf32>
    %119 = vector.extract_strided_slice %101 {offsets = [0, 0, 0], sizes = [4, 2, 32], strides = [1, 1, 1]} : vector<4x8x32xf32> to vector<4x2x32xf32>
    %120 = tpu.concatenate %118, %119 in 1 : vector<4x6x32xf32>, vector<4x2x32xf32> -> vector<4x8x32xf32>
    %121 = arith.select %22, %107, %120 : vector<4x8x32xi1>, vector<4x8x32xf32>
    %122 = vector.extract_strided_slice %101 {offsets = [0, 6, 0], sizes = [4, 2, 32], strides = [1, 1, 1]} : vector<4x8x32xf32> to vector<4x2x32xf32>
    %123 = vector.extract_strided_slice %101 {offsets = [0, 0, 0], sizes = [4, 6, 32], strides = [1, 1, 1]} : vector<4x8x32xf32> to vector<4x6x32xf32>
    %124 = tpu.concatenate %122, %123 in 1 : vector<4x2x32xf32>, vector<4x6x32xf32> -> vector<4x8x32xf32>
    %125 = arith.select %26, %104, %124 : vector<4x8x32xi1>, vector<4x8x32xf32>
    %126 = arith.addf %117, %121 : vector<4x8x32xf32>
    %127 = arith.addf %126, %125 : vector<4x8x32xf32>
    %cst_30 = arith.constant 2.000000e-01 : f32
    %128 = vector.broadcast %cst_30 : f32 to vector<4x8x32xf32>
    %129 = arith.mulf %127, %128 : vector<4x8x32xf32>
    %130 = arith.subf %101, %129 : vector<4x8x32xf32>
    %131 = vector.shape_cast %130 : vector<4x8x32xf32> to vector<32x32xf32>
    %132 = arith.truncf %131 : vector<32x32xf32> to vector<32x32xbf16>
    %cst_31 = arith.constant dense<0.000000e+00> : vector<32x128xf32>
    %133 = tpu.matmul %132, %5, %cst_31 {dimension_numbers = #tpu.dot_dimension_numbers<[1], [0], [0], [1], [0, 0, 1, 1], [], []>} : vector<32x32xbf16>, vector<32x128xbf16>, vector<32x128xf32> -> vector<32x128xf32>
    %cst_32 = arith.constant 0.000000e+00 : f32
    %134 = vector.broadcast %cst_32 : f32 to vector<32x128xf32>
    %135 = arith.maximumf %133, %134 : vector<32x128xf32>
    %136 = arith.truncf %135 : vector<32x128xf32> to vector<32x128xbf16>
    %cst_33 = arith.constant dense<0.000000e+00> : vector<32x32xf32>
    %137 = tpu.matmul %136, %6, %cst_33 {dimension_numbers = #tpu.dot_dimension_numbers<[1], [0], [0], [1], [0, 0, 1, 1], [], []>} : vector<32x128xbf16>, vector<128x32xbf16>, vector<32x32xf32> -> vector<32x32xf32>
    %138 = vector.shape_cast %137 : vector<32x32xf32> to vector<4x8x32xf32>
    %139 = arith.addf %130, %138 : vector<4x8x32xf32>
    %140 = vector.extract_strided_slice %139 {offsets = [0, 0, 0], sizes = [4, 1, 32], strides = [1, 1, 1]} : vector<4x8x32xf32> to vector<4x1x32xf32>
    %141 = vector.shape_cast %140 : vector<4x1x32xf32> to vector<4x1x32xf32>
    %142 = vector.broadcast %141 : vector<4x1x32xf32> to vector<4x8x32xf32>
    %143 = vector.extract_strided_slice %139 {offsets = [0, 7, 0], sizes = [4, 1, 32], strides = [1, 1, 1]} : vector<4x8x32xf32> to vector<4x1x32xf32>
    %144 = vector.shape_cast %143 : vector<4x1x32xf32> to vector<4x1x32xf32>
    %145 = vector.broadcast %144 : vector<4x1x32xf32> to vector<4x8x32xf32>
    %146 = vector.extract_strided_slice %139 {offsets = [0, 1, 0], sizes = [4, 7, 32], strides = [1, 1, 1]} : vector<4x8x32xf32> to vector<4x7x32xf32>
    %147 = vector.extract_strided_slice %139 {offsets = [0, 0, 0], sizes = [4, 1, 32], strides = [1, 1, 1]} : vector<4x8x32xf32> to vector<4x1x32xf32>
    %148 = tpu.concatenate %146, %147 in 1 : vector<4x7x32xf32>, vector<4x1x32xf32> -> vector<4x8x32xf32>
    %149 = arith.select %20, %145, %148 : vector<4x8x32xi1>, vector<4x8x32xf32>
    %150 = vector.extract_strided_slice %139 {offsets = [0, 7, 0], sizes = [4, 1, 32], strides = [1, 1, 1]} : vector<4x8x32xf32> to vector<4x1x32xf32>
    %151 = vector.extract_strided_slice %139 {offsets = [0, 0, 0], sizes = [4, 7, 32], strides = [1, 1, 1]} : vector<4x8x32xf32> to vector<4x7x32xf32>
    %152 = tpu.concatenate %150, %151 in 1 : vector<4x1x32xf32>, vector<4x7x32xf32> -> vector<4x8x32xf32>
    %153 = arith.select %24, %142, %152 : vector<4x8x32xi1>, vector<4x8x32xf32>
    %154 = arith.addf %139, %149 : vector<4x8x32xf32>
    %155 = arith.addf %154, %153 : vector<4x8x32xf32>
    %156 = vector.extract_strided_slice %139 {offsets = [0, 2, 0], sizes = [4, 6, 32], strides = [1, 1, 1]} : vector<4x8x32xf32> to vector<4x6x32xf32>
    %157 = vector.extract_strided_slice %139 {offsets = [0, 0, 0], sizes = [4, 2, 32], strides = [1, 1, 1]} : vector<4x8x32xf32> to vector<4x2x32xf32>
    %158 = tpu.concatenate %156, %157 in 1 : vector<4x6x32xf32>, vector<4x2x32xf32> -> vector<4x8x32xf32>
    %159 = arith.select %22, %145, %158 : vector<4x8x32xi1>, vector<4x8x32xf32>
    %160 = vector.extract_strided_slice %139 {offsets = [0, 6, 0], sizes = [4, 2, 32], strides = [1, 1, 1]} : vector<4x8x32xf32> to vector<4x2x32xf32>
    %161 = vector.extract_strided_slice %139 {offsets = [0, 0, 0], sizes = [4, 6, 32], strides = [1, 1, 1]} : vector<4x8x32xf32> to vector<4x6x32xf32>
    %162 = tpu.concatenate %160, %161 in 1 : vector<4x2x32xf32>, vector<4x6x32xf32> -> vector<4x8x32xf32>
    %163 = arith.select %26, %142, %162 : vector<4x8x32xi1>, vector<4x8x32xf32>
    %164 = arith.addf %155, %159 : vector<4x8x32xf32>
    %165 = arith.addf %164, %163 : vector<4x8x32xf32>
    %cst_34 = arith.constant 2.000000e-01 : f32
    %166 = vector.broadcast %cst_34 : f32 to vector<4x8x32xf32>
    %167 = arith.mulf %165, %166 : vector<4x8x32xf32>
    %168 = arith.subf %139, %167 : vector<4x8x32xf32>
    %c0_35 = arith.constant 0 : index
    %c0_36 = arith.constant 0 : index
    %c0_37 = arith.constant 0 : index
    %169 = vector.load %arg9[%c0_35, %c0_36, %c0_37] : memref<4x8x32xf32, #tpu.memory_space<vmem>>, vector<4x8x32xf32>
    tpu.vector_store %arg9[%c0_35, %c0_36, %c0_37], %168 {strides = array<i32>} : memref<4x8x32xf32, #tpu.memory_space<vmem>>, vector<4x8x32xf32>,
    %170 = arith.addf %77, %129 : vector<4x8x32xf32>
    %171 = arith.addf %170, %167 : vector<4x8x32xf32>
    %172 = vector.extract_strided_slice %171 {offsets = [0, 7, 0], sizes = [4, 1, 32], strides = [1, 1, 1]} : vector<4x8x32xf32> to vector<4x1x32xf32>
    %173 = vector.extract_strided_slice %171 {offsets = [0, 0, 0], sizes = [4, 7, 32], strides = [1, 1, 1]} : vector<4x8x32xf32> to vector<4x7x32xf32>
    %174 = tpu.concatenate %172, %173 in 1 : vector<4x1x32xf32>, vector<4x7x32xf32> -> vector<4x8x32xf32>
    %175 = vector.extract_strided_slice %171 {offsets = [0, 1, 0], sizes = [4, 7, 32], strides = [1, 1, 1]} : vector<4x8x32xf32> to vector<4x7x32xf32>
    %176 = vector.extract_strided_slice %171 {offsets = [0, 0, 0], sizes = [4, 1, 32], strides = [1, 1, 1]} : vector<4x8x32xf32> to vector<4x1x32xf32>
    %177 = tpu.concatenate %175, %176 in 1 : vector<4x7x32xf32>, vector<4x1x32xf32> -> vector<4x8x32xf32>
    %178 = tpu.concatenate %174, %171, %177 in 2 : vector<4x8x32xf32>, vector<4x8x32xf32>, vector<4x8x32xf32> -> vector<4x8x96xf32>
    %179 = vector.shape_cast %178 : vector<4x8x96xf32> to vector<32x96xf32>
    %180 = arith.truncf %179 : vector<32x96xf32> to vector<32x96xbf16>
    %cst_38 = arith.constant dense<0.000000e+00> : vector<32x128xf32>
    %181 = tpu.matmul %180, %7, %cst_38 {dimension_numbers = #tpu.dot_dimension_numbers<[1], [0], [0], [1], [0, 0, 1, 1], [], []>} : vector<32x96xbf16>, vector<96x128xbf16>, vector<32x128xf32> -> vector<32x128xf32>
    %182 = vector.shape_cast %181 : vector<32x128xf32> to vector<4x8x128xf32>
    %c0_39 = arith.constant 0 : index
    %c0_40 = arith.constant 0 : index
    %c0_41 = arith.constant 0 : index
    %183 = vector.load %arg10[%c0_39, %c0_40, %c0_41] : memref<4x8x128xf32, #tpu.memory_space<vmem>>, vector<4x8x128xf32>
    tpu.vector_store %arg10[%c0_39, %c0_40, %c0_41], %182 {strides = array<i32>} : memref<4x8x128xf32, #tpu.memory_space<vmem>>, vector<4x8x128xf32>,
    return
  }
  func.func @transform_0(%arg0: i32) -> (i32, i32, i32) {
    %c0_i32 = arith.constant 0 : i32
    %c0_i32_0 = arith.constant 0 : i32
    %c0_i32_1 = arith.constant 0 : i32
    return %arg0, %c0_i32, %c0_i32_0 : i32, i32, i32
  }
  func.func @transform_1(%arg0: i32) -> (i32, i32, i32) {
    %c0_i32 = arith.constant 0 : i32
    %c0_i32_0 = arith.constant 0 : i32
    %c0_i32_1 = arith.constant 0 : i32
    return %arg0, %c0_i32, %c0_i32_0 : i32, i32, i32
  }
  func.func @transform_2(%arg0: i32) -> (i32, i32) {
    %c0_i32 = arith.constant 0 : i32
    %c0_i32_0 = arith.constant 0 : i32
    %c0_i32_1 = arith.constant 0 : i32
    return %c0_i32, %c0_i32_0 : i32, i32
  }
  func.func @transform_3(%arg0: i32) -> (i32, i32) {
    %c0_i32 = arith.constant 0 : i32
    %c0_i32_0 = arith.constant 0 : i32
    %c0_i32_1 = arith.constant 0 : i32
    return %c0_i32, %c0_i32_0 : i32, i32
  }
  func.func @transform_4(%arg0: i32) -> (i32, i32) {
    %c0_i32 = arith.constant 0 : i32
    %c0_i32_0 = arith.constant 0 : i32
    %c0_i32_1 = arith.constant 0 : i32
    return %c0_i32, %c0_i32_0 : i32, i32
  }
  func.func @transform_5(%arg0: i32) -> (i32, i32) {
    %c0_i32 = arith.constant 0 : i32
    %c0_i32_0 = arith.constant 0 : i32
    %c0_i32_1 = arith.constant 0 : i32
    return %c0_i32, %c0_i32_0 : i32, i32
  }
  func.func @transform_6(%arg0: i32) -> (i32, i32) {
    %c0_i32 = arith.constant 0 : i32
    %c0_i32_0 = arith.constant 0 : i32
    %c0_i32_1 = arith.constant 0 : i32
    return %c0_i32, %c0_i32_0 : i32, i32
  }
  func.func @transform_7(%arg0: i32) -> (i32, i32) {
    %c0_i32 = arith.constant 0 : i32
    %c0_i32_0 = arith.constant 0 : i32
    %c0_i32_1 = arith.constant 0 : i32
    return %c0_i32, %c0_i32_0 : i32, i32
  }
  func.func @transform_8(%arg0: i32) -> (i32, i32, i32) {
    %c0_i32 = arith.constant 0 : i32
    %c0_i32_0 = arith.constant 0 : i32
    %c0_i32_1 = arith.constant 0 : i32
    return %arg0, %c0_i32, %c0_i32_0 : i32, i32, i32
  }
  func.func @transform_9(%arg0: i32) -> (i32, i32, i32) {
    %c0_i32 = arith.constant 0 : i32
    %c0_i32_0 = arith.constant 0 : i32
    %c0_i32_1 = arith.constant 0 : i32
    return %arg0, %c0_i32, %c0_i32_0 : i32, i32, i32
  }
}

</mosaic_0001>

<llo_original>
// kernel: tpu_custom_call.1
$region0: #{tpu_custom_call.1}
  #allocation0 [shape = 'u32[]', space=smem, size = 0x4, offset = 0x4, fixed_abs, tag = 'smem constant byte address 0x4 - core index']
  #allocation1 [shape = 'u32[144,128]{1,0:T(1,128)}', space=vmem, size = 0x12000, scoped, tag = 'internal scratch']
  %s0 = inlined_call_operand.hbm [shape: f32[4,8,32], index: 0, kind: input, shape index: {}]
  %s1 = inlined_call_operand.hbm [shape: f32[4,8,32], index: 1, kind: input, shape index: {}]
  %s2 = inlined_call_operand.hbm [shape: bf16[32,32], index: 2, kind: input, shape index: {}]
  %s3 = inlined_call_operand.hbm [shape: bf16[32,64], index: 3, kind: input, shape index: {}]
  %s4 = inlined_call_operand.hbm [shape: bf16[32,32], index: 4, kind: input, shape index: {}]
  %s5 = inlined_call_operand.hbm [shape: bf16[32,128], index: 5, kind: input, shape index: {}]
  %s6 = inlined_call_operand.hbm [shape: bf16[128,32], index: 6, kind: input, shape index: {}]
  %s7 = inlined_call_operand.hbm [shape: bf16[96,128], index: 7, kind: input, shape index: {}]
  %s8 = inlined_call_operand.hbm [shape: f32[4,8,32], index: 8, kind: output, shape index: {0}]
  %s9 = inlined_call_operand.hbm [shape: f32[4,8,128], index: 9, kind: output, shape index: {1}]
  %10 = xla_tuple %s8, %s9
  %s11 = sld [smem:[#allocation0]]
  $region82: #{tpu_custom_call.1} parent=0
    _
  %s13 = ssub.s32 1, %s11
  %s14 = scalar_select 0, %s13, %s11
  $region1: #{tpu_custom_call.1} parent=0
    #allocation2 [shape = 'u8[16384]{0}', space=vmem, size = 0x4000, scoped, tag = 'input window, operand 0, single buffered']
    #allocation3 [shape = 's32[1]{0}', space=sflag, size = 0x4, scoped, tag = 'scoped memory for tpu_custom_call.1']
    #allocation4 [shape = 's32[1]{0}', space=sflag, size = 0x4, scoped, tag = 'scoped memory for tpu_custom_call.1']
    #allocation5 [shape = 'u8[16384]{0}', space=vmem, size = 0x4000, scoped, tag = 'input window, operand 1, single buffered']
    #allocation6 [shape = 's32[1]{0}', space=sflag, size = 0x4, scoped, tag = 'scoped memory for tpu_custom_call.1']
    #allocation7 [shape = 'u8[8192]{0}', space=vmem, size = 0x2000, scoped, tag = 'input window, operand 2, single buffered']
    #allocation8 [shape = 'u8[8192]{0}', space=vmem, size = 0x2000, scoped, tag = 'input window, operand 3, single buffered']
    #allocation9 [shape = 's32[1]{0}', space=sflag, size = 0x4, scoped, tag = 'scoped memory for tpu_custom_call.1']
    #allocation10 [shape = 'u8[8192]{0}', space=vmem, size = 0x2000, scoped, tag = 'input window, operand 4, single buffered']
    #allocation11 [shape = 'u8[8192]{0}', space=vmem, size = 0x2000, scoped, tag = 'input window, operand 5, single buffered']
    #allocation12 [shape = 's32[1]{0}', space=sflag, size = 0x4, scoped, tag = 'scoped memory for tpu_custom_call.1']
    #allocation13 [shape = 'u8[32768]{0}', space=vmem, size = 0x8000, scoped, tag = 'input window, operand 6, single buffered']
    #allocation14 [shape = 'u8[24576]{0}', space=vmem, size = 0x6000, scoped, tag = 'input window, operand 7, single buffered']
    #allocation15 [shape = 's32[1]{0}', space=sflag, size = 0x4, scoped, tag = 'scoped memory for tpu_custom_call.1']
    #allocation16 [shape = 'u8[16384]{0}', space=vmem, size = 0x4000, scoped, tag = 'output window, operand 0, single buffered']
    #allocation17 [shape = 'u8[16384]{0}', space=vmem, size = 0x4000, scoped, tag = 'output window, operand 1, single buffered']
    #allocation18 [shape = 's32[1]{0}', space=sflag, size = 0x4, scoped, tag = 'scoped memory for tpu_custom_call.1']
    %15 = vsyncpa [#allocation3], 0
    %16 = vsyncpa [#allocation6], 0
    %17 = vsyncpa [#allocation9], 0
    %18 = vsyncpa [#allocation12], 0
    %19 = vsyncpa [#allocation15], 0
    %20 = vsyncpa [#allocation4], 0
    %21 = vsyncpa [#allocation18], 0
    // Predicated region
    $region2: #{tpu_custom_call.1} parent=1 // pred_check
      _
    $region3: #{tpu_custom_call.1} parent=1 // pred_check_branch
      %23 = sbr.rel (0) target = $region5
    $region4: #{tpu_custom_call.1} parent=1 // pred_region
      %s25 = ssub.s32 512, 512
      %26 = vsyncadd [#allocation3], %s25
      %s27 = sshll.u32 [#allocation2], 4
      %s28 = int_to_ptr.vmem [resolvable:$true] %s27
      %33 = dma.hbm_to_vmem [thread:$0]  %s0, 512, %s28, [#allocation3], 128, 128, 8
    $region5: #{tpu_custom_call.1} parent=1 // pred_fallthru
      _
    // Predicated region
    $region6: #{tpu_custom_call.1} parent=1 // pred_check
      _
    $region7: #{tpu_custom_call.1} parent=1 // pred_check_branch
      %35 = sbr.rel (0) target = $region9
    $region8: #{tpu_custom_call.1} parent=1 // pred_region
      %s37 = ssub.s32 512, 512
      %38 = vsyncadd [#allocation6], %s37
      %s39 = sshll.u32 [#allocation5], 4
      %s40 = int_to_ptr.vmem [resolvable:$true] %s39
      %45 = dma.hbm_to_vmem [thread:$0]  %s1, 512, %s40, [#allocation6], 128, 128, 8
    $region9: #{tpu_custom_call.1} parent=1 // pred_fallthru
      _
    // Predicated region
    $region10: #{tpu_custom_call.1} parent=1 // pred_check
      _
    $region11: #{tpu_custom_call.1} parent=1 // pred_check_branch
      %47 = sbr.rel (0) target = $region13
    $region12: #{tpu_custom_call.1} parent=1 // pred_region
      %s49 = ssub.s32 256, 256
      %50 = vsyncadd [#allocation6], %s49
      %s51 = sshll.u32 [#allocation7], 4
      %s52 = int_to_ptr.vmem [resolvable:$true] %s51
      %57 = dma.hbm_to_vmem [thread:$0]  %s2, 256, %s52, [#allocation6], 64, 64, 4
    $region13: #{tpu_custom_call.1} parent=1 // pred_fallthru
      _
    // Predicated region
    $region14: #{tpu_custom_call.1} parent=1 // pred_check
      _
    $region15: #{tpu_custom_call.1} parent=1 // pred_check_branch
      %59 = sbr.rel (0) target = $region17
    $region16: #{tpu_custom_call.1} parent=1 // pred_region
      %s61 = ssub.s32 256, 256
      %62 = vsyncadd [#allocation9], %s61
      %s63 = sshll.u32 [#allocation8], 4
      %s64 = int_to_ptr.vmem [resolvable:$true] %s63
      %69 = dma.hbm_to_vmem [thread:$0]  %s3, 256, %s64, [#allocation9], 64, 64, 4
    $region17: #{tpu_custom_call.1} parent=1 // pred_fallthru
      _
    // Predicated region
    $region18: #{tpu_custom_call.1} parent=1 // pred_check
      _
    $region19: #{tpu_custom_call.1} parent=1 // pred_check_branch
      %71 = sbr.rel (0) target = $region21
    $region20: #{tpu_custom_call.1} parent=1 // pred_region
      %s73 = ssub.s32 256, 256
      %74 = vsyncadd [#allocation9], %s73
      %s75 = sshll.u32 [#allocation10], 4
      %s76 = int_to_ptr.vmem [resolvable:$true] %s75
      %81 = dma.hbm_to_vmem [thread:$0]  %s4, 256, %s76, [#allocation9], 64, 64, 4
    $region21: #{tpu_custom_call.1} parent=1 // pred_fallthru
      _
    // Predicated region
    $region22: #{tpu_custom_call.1} parent=1 // pred_check
      _
    $region23: #{tpu_custom_call.1} parent=1 // pred_check_branch
      %83 = sbr.rel (0) target = $region25
    $region24: #{tpu_custom_call.1} parent=1 // pred_region
      %s85 = ssub.s32 256, 256
      %86 = vsyncadd [#allocation12], %s85
      %s87 = sshll.u32 [#allocation11], 4
      %s88 = int_to_ptr.vmem [resolvable:$true] %s87
      %93 = dma.hbm_to_vmem [thread:$0]  %s5, 256, %s88, [#allocation12], 64, 64, 4
    $region25: #{tpu_custom_call.1} parent=1 // pred_fallthru
      _
    // Predicated region
    $region26: #{tpu_custom_call.1} parent=1 // pred_check
      _
    $region27: #{tpu_custom_call.1} parent=1 // pred_check_branch
      %95 = sbr.rel (0) target = $region29
    $region28: #{tpu_custom_call.1} parent=1 // pred_region
      %s97 = ssub.s32 1024, 1024
      %98 = vsyncadd [#allocation12], %s97
      %s99 = sshll.u32 [#allocation13], 4
      %s100 = int_to_ptr.vmem [resolvable:$true] %s99
      %105 = dma.hbm_to_vmem [thread:$0]  %s6, 1024, %s100, [#allocation12], 64, 64, 4
    $region29: #{tpu_custom_call.1} parent=1 // pred_fallthru
      _
    // Predicated region
    $region30: #{tpu_custom_call.1} parent=1 // pred_check
      _
    $region31: #{tpu_custom_call.1} parent=1 // pred_check_branch
      %107 = sbr.rel (0) target = $region33
    $region32: #{tpu_custom_call.1} parent=1 // pred_region
      %s109 = ssub.s32 768, 768
      %110 = vsyncadd [#allocation15], %s109
      %s111 = sshll.u32 [#allocation14], 4
      %s112 = int_to_ptr.vmem [resolvable:$true] %s111
      %117 = dma.hbm_to_vmem [thread:$0]  %s7, 768, %s112, [#allocation15], 64, 64, 4
    $region33: #{tpu_custom_call.1} parent=1 // pred_fallthru
      _
    // Predicated region
    $region34: #{tpu_custom_call.1} parent=1 // pred_check
      _
    $region35: #{tpu_custom_call.1} parent=1 // pred_check_branch
      %119 = sbr.rel (0) target = $region37
    $region36: #{tpu_custom_call.1} parent=1 // pred_region
      %120 = dma.done [#allocation3], 512
    $region37: #{tpu_custom_call.1} parent=1 // pred_fallthru
      _
    // Predicated region
    $region38: #{tpu_custom_call.1} parent=1 // pred_check
      _
    $region39: #{tpu_custom_call.1} parent=1 // pred_check_branch
      %122 = sbr.rel (0) target = $region41
    $region40: #{tpu_custom_call.1} parent=1 // pred_region
      %123 = dma.done [#allocation6], 512
    $region41: #{tpu_custom_call.1} parent=1 // pred_fallthru
      _
    // Predicated region
    $region42: #{tpu_custom_call.1} parent=1 // pred_check
      _
    $region43: #{tpu_custom_call.1} parent=1 // pred_check_branch
      %125 = sbr.rel (0) target = $region45
    $region44: #{tpu_custom_call.1} parent=1 // pred_region
      %126 = dma.done [#allocation6], 256
    $region45: #{tpu_custom_call.1} parent=1 // pred_fallthru
      _
    // Predicated region
    $region46: #{tpu_custom_call.1} parent=1 // pred_check
      _
    $region47: #{tpu_custom_call.1} parent=1 // pred_check_branch
      %128 = sbr.rel (0) target = $region49
    $region48: #{tpu_custom_call.1} parent=1 // pred_region
      %129 = dma.done [#allocation9], 256
    $region49: #{tpu_custom_call.1} parent=1 // pred_fallthru
      _
    // Predicated region
    $region50: #{tpu_custom_call.1} parent=1 // pred_check
      _
    $region51: #{tpu_custom_call.1} parent=1 // pred_check_branch
      %131 = sbr.rel (0) target = $region53
    $region52: #{tpu_custom_call.1} parent=1 // pred_region
      %132 = dma.done [#allocation9], 256
    $region53: #{tpu_custom_call.1} parent=1 // pred_fallthru
      _
    // Predicated region
    $region54: #{tpu_custom_call.1} parent=1 // pred_check
      _
    $region55: #{tpu_custom_call.1} parent=1 // pred_check_branch
      %134 = sbr.rel (0) target = $region57
    $region56: #{tpu_custom_call.1} parent=1 // pred_region
      %135 = dma.done [#allocation12], 256
    $region57: #{tpu_custom_call.1} parent=1 // pred_fallthru
      _
    // Predicated region
    $region58: #{tpu_custom_call.1} parent=1 // pred_check
      _
    $region59: #{tpu_custom_call.1} parent=1 // pred_check_branch
      %137 = sbr.rel (0) target = $region61
    $region60: #{tpu_custom_call.1} parent=1 // pred_region
      %138 = dma.done [#allocation12], 1024
    $region61: #{tpu_custom_call.1} parent=1 // pred_fallthru
      _
    // Predicated region
    $region62: #{tpu_custom_call.1} parent=1 // pred_check
      _
    $region63: #{tpu_custom_call.1} parent=1 // pred_check_branch
      %140 = sbr.rel (0) target = $region65
    $region64: #{tpu_custom_call.1} parent=1 // pred_region
      %141 = dma.done [#allocation15], 768
    $region65: #{tpu_custom_call.1} parent=1 // pred_fallthru
      _
    %v143 = vld [vmem:[#allocation2] sm:$0xff]
    %v144 = vld [vmem:[#allocation2 + $0x8] sm:$0xff]
    %v145 = vld [vmem:[#allocation2 + $0x10] sm:$0xff]
    %v146 = vld [vmem:[#allocation2 + $0x18] sm:$0xff]
    %v147 = vld [vmem:[#allocation5] sm:$0xff]
    %v148 = vld [vmem:[#allocation5 + $0x8] sm:$0xff]
    %v149 = vld [vmem:[#allocation5 + $0x10] sm:$0xff]
    %v150 = vld [vmem:[#allocation5 + $0x18] sm:$0xff]
    %v151 = vld [vmem:[#allocation7] sm:$0xf]
    %v152 = vld [vmem:[#allocation7 + $0x4] sm:$0xf]
    %v153 = vld [vmem:[#allocation7 + $0x8] sm:$0xf]
    %v154 = vld [vmem:[#allocation7 + $0xc] sm:$0xf]
    %v155 = vld [vmem:[#allocation8] sm:$0xf]
    %v156 = vld [vmem:[#allocation8 + $0x4] sm:$0xf]
    %v157 = vld [vmem:[#allocation8 + $0x8] sm:$0xf]
    %v158 = vld [vmem:[#allocation8 + $0xc] sm:$0xf]
    %v159 = vld [vmem:[#allocation10] sm:$0xf]
    %v160 = vld [vmem:[#allocation10 + $0x4] sm:$0xf]
    %v161 = vld [vmem:[#allocation10 + $0x8] sm:$0xf]
    %v162 = vld [vmem:[#allocation10 + $0xc] sm:$0xf]
    %v163 = vld [vmem:[#allocation11] sm:$0xf]
    %v164 = vld [vmem:[#allocation11 + $0x4] sm:$0xf]
    %v165 = vld [vmem:[#allocation11 + $0x8] sm:$0xf]
    %v166 = vld [vmem:[#allocation11 + $0xc] sm:$0xf]
    %v167 = vld [vmem:[#allocation13] sm:$0xf]
    %v168 = vld [vmem:[#allocation13 + $0x4] sm:$0xf]
    %v169 = vld [vmem:[#allocation13 + $0x8] sm:$0xf]
    %v170 = vld [vmem:[#allocation13 + $0xc] sm:$0xf]
    %v171 = vld [vmem:[#allocation13 + $0x10] sm:$0xf]
    %v172 = vld [vmem:[#allocation13 + $0x14] sm:$0xf]
    %v173 = vld [vmem:[#allocation13 + $0x18] sm:$0xf]
    %v174 = vld [vmem:[#allocation13 + $0x1c] sm:$0xf]
    %v175 = vld [vmem:[#allocation13 + $0x20] sm:$0xf]
    %v176 = vld [vmem:[#allocation13 + $0x24] sm:$0xf]
    %v177 = vld [vmem:[#allocation13 + $0x28] sm:$0xf]
    %v178 = vld [vmem:[#allocation13 + $0x2c] sm:$0xf]
    %v179 = vld [vmem:[#allocation13 + $0x30] sm:$0xf]
    %v180 = vld [vmem:[#allocation13 + $0x34] sm:$0xf]
    %v181 = vld [vmem:[#allocation13 + $0x38] sm:$0xf]
    %v182 = vld [vmem:[#allocation13 + $0x3c] sm:$0xf]
    %v183 = vld [vmem:[#allocation14] sm:$0xf]
    %v184 = vld [vmem:[#allocation14 + $0x4] sm:$0xf]
    %v185 = vld [vmem:[#allocation14 + $0x8] sm:$0xf]
    %v186 = vld [vmem:[#allocation14 + $0xc] sm:$0xf]
    %v187 = vld [vmem:[#allocation14 + $0x10] sm:$0xf]
    %v188 = vld [vmem:[#allocation14 + $0x14] sm:$0xf]
    %v189 = vld [vmem:[#allocation14 + $0x18] sm:$0xf]
    %v190 = vld [vmem:[#allocation14 + $0x1c] sm:$0xf]
    %v191 = vld [vmem:[#allocation14 + $0x20] sm:$0xf]
    %v192 = vld [vmem:[#allocation14 + $0x24] sm:$0xf]
    %v193 = vld [vmem:[#allocation14 + $0x28] sm:$0xf]
    %v194 = vld [vmem:[#allocation14 + $0x2c] sm:$0xf]
    %v195 = vpack.c.bf16 %v148, %v147
    %v196 = vpack.c.bf16 %v150, %v149
    %v201 = vunpack.c.l.b16 %v155
    %v202 = vunpack.c.l.b16 %v156
    %v203 = vunpack.c.l.b16 %v157
    %v204 = vunpack.c.l.b16 %v158
    %v205 = vpack.c.b16 %v202, %v201
    %v206 = vpack.c.b16 %v204, %v203
    %vm209 = vcmask 261120
    %v211 = vsel %vm209, %v195, 0
    %v214 = vsel %vm209, %v196, 0
    %216 = vmatprep.subr.bf16.mxu0 0
    %217 = vmatpush1.bf16.msra.mxu0 %v205
    %218 = vmatprep.subr.bf16.mxu0 0
    %219 = vmatpush1.bf16.msra.mxu0 %v206
    %220 = vmatprep.subr.bf16.mxu0 0
    %221 = vmatpush1.bf16.msra.mxu0 0
    %222 = vmatprep.subr.bf16.mxu0 0
    %223 = vmatpush1.bf16.msra.mxu0 0
    %224 = vmatprep.subr.bf16.mxu0 0
    %225 = vmatpush1.bf16.msra.mxu0 0
    %226 = vmatprep.subr.bf16.mxu0 0
    %227 = vmatpush1.bf16.msra.mxu0 0
    %228 = vmatprep.subr.bf16.mxu0 0
    %229 = vmatpush1.bf16.msra.mxu0 0
    %230 = vmatprep.subr.bf16.mxu0 0
    %231 = vmatpush1.bf16.msra.mxu0 0
    %232 = vmatprep.subr.bf16.mxu0 0
    %233 = vmatpush1.bf16.msra.mxu0 0
    %234 = vmatprep.subr.bf16.mxu0 0
    %235 = vmatpush1.bf16.msra.mxu0 0
    %236 = vmatprep.subr.bf16.mxu0 0
    %237 = vmatpush1.bf16.msra.mxu0 0
    %238 = vmatprep.subr.bf16.mxu0 0
    %239 = vmatpush1.bf16.msra.mxu0 0
    %240 = vmatprep.subr.bf16.mxu0 0
    %241 = vmatpush1.bf16.msra.mxu0 0
    %242 = vmatprep.subr.bf16.mxu0 0
    %243 = vmatpush1.bf16.msra.mxu0 0
    %244 = vmatprep.subr.bf16.mxu0 0
    %245 = vmatpush1.bf16.msra.mxu0 0
    %246 = vmatprep.subr.bf16.mxu0 0
    %247 = vmatpush1.bf16.msra.mxu0 0
    %248 = vmatprep.mubr.bf16.mxu0 0
    %249 = vmatmul.mubr.bf16.gmra.mrb[0].mxu0 %v211
    %v250 = vpop.f32.mrb[0].mxu0
    %v251 = vadd.f32 0.0, %v250
    %v252 = vpop.f32.mrb[0].mxu0
    %v253 = vpop.f32.mrb[0].mxu0
    %v254 = vadd.f32 0.0, %v253
    %v255 = vpop.f32.mrb[0].mxu0
    %256 = vmatprep.mubr.bf16.mxu0 0
    %257 = vmatmul.mubr.bf16.gmra.mrb[0].mxu0 %v214
    %v258 = vpop.f32.mrb[0].mxu0
    %v259 = vadd.f32 0.0, %v258
    %v260 = vpop.f32.mrb[0].mxu0
    %v261 = vpop.f32.mrb[0].mxu0
    %v262 = vadd.f32 0.0, %v261
    %v263 = vpop.f32.mrb[0].mxu0
    %264 = vdwg.mxu0
    %265 = vxpose.xlu0.b32.start [1/16] %v251, 128
    %266 = vxpose.xlu0.b32.cont [2/16] 0.0, 128
    %267 = vxpose.xlu0.b32.cont [3/16] 0.0, 128
    %268 = vxpose.xlu0.b32.cont [4/16] 0.0, 128
    %269 = vxpose.xlu0.b32.cont [5/16] 0.0, 128
    %270 = vxpose.xlu0.b32.cont [6/16] 0.0, 128
    %271 = vxpose.xlu0.b32.cont [7/16] 0.0, 128
    %272 = vxpose.xlu0.b32.cont [8/16] 0.0, 128
    %273 = vxpose.xlu0.b32.cont [9/16] 0.0, 128
    %274 = vxpose.xlu0.b32.cont [10/16] 0.0, 128
    %275 = vxpose.xlu0.b32.cont [11/16] 0.0, 128
    %276 = vxpose.xlu0.b32.cont [12/16] 0.0, 128
    %277 = vxpose.xlu0.b32.cont [13/16] 0.0, 128
    %278 = vxpose.xlu0.b32.cont [14/16] 0.0, 128
    %279 = vxpose.xlu0.b32.cont [15/16] 0.0, 128
    %280 = vxpose.xlu0.b32.end [16/16] 0.0, 128
    %v281 = vpop.trf.xlu0
    %v282 = vpop.trf.xlu0
    %v283 = vpop.trf.xlu0
    %v284 = vpop.trf.xlu0
    %v285 = vpop.trf.xlu0
    %v286 = vpop.trf.xlu0
    %v287 = vpop.trf.xlu0
    %v288 = vpop.trf.xlu0
    %v289 = vpop.trf.xlu0
    %v290 = vpop.trf.xlu0
    %v291 = vpop.trf.xlu0
    %v292 = vpop.trf.xlu0
    %v293 = vpop.trf.xlu0
    %v294 = vpop.trf.xlu0
    %v295 = vpop.trf.xlu0
    %v296 = vpop.trf.xlu0
    %297 = vxpose.xlu0.b32.start [1/16] %v254, 128
    %298 = vxpose.xlu0.b32.cont [2/16] 0.0, 128
    %299 = vxpose.xlu0.b32.cont [3/16] 0.0, 128
    %300 = vxpose.xlu0.b32.cont [4/16] 0.0, 128
    %301 = vxpose.xlu0.b32.cont [5/16] 0.0, 128
    %302 = vxpose.xlu0.b32.cont [6/16] 0.0, 128
    %303 = vxpose.xlu0.b32.cont [7/16] 0.0, 128
    %304 = vxpose.xlu0.b32.cont [8/16] 0.0, 128
    %305 = vxpose.xlu0.b32.cont [9/16] 0.0, 128
    %306 = vxpose.xlu0.b32.cont [10/16] 0.0, 128
    %307 = vxpose.xlu0.b32.cont [11/16] 0.0, 128
    %308 = vxpose.xlu0.b32.cont [12/16] 0.0, 128
    %309 = vxpose.xlu0.b32.cont [13/16] 0.0, 128
    %310 = vxpose.xlu0.b32.cont [14/16] 0.0, 128
    %311 = vxpose.xlu0.b32.cont [15/16] 0.0, 128
    %312 = vxpose.xlu0.b32.end [16/16] 0.0, 128
    %v313 = vpop.trf.xlu0
    %v314 = vpop.trf.xlu0
    %v315 = vpop.trf.xlu0
    %v316 = vpop.trf.xlu0
    %v317 = vpop.trf.xlu0
    %v318 = vpop.trf.xlu0
    %v319 = vpop.trf.xlu0
    %v320 = vpop.trf.xlu0
    %v321 = vpop.trf.xlu0
    %v322 = vpop.trf.xlu0
    %v323 = vpop.trf.xlu0
    %v324 = vpop.trf.xlu0
    %v325 = vpop.trf.xlu0
    %v326 = vpop.trf.xlu0
    %v327 = vpop.trf.xlu0
    %v328 = vpop.trf.xlu0
    %329 = vxpose.xlu0.b32.start [1/16] %v259, 128
    %330 = vxpose.xlu0.b32.cont [2/16] 0.0, 128
    %331 = vxpose.xlu0.b32.cont [3/16] 0.0, 128
    %332 = vxpose.xlu0.b32.cont [4/16] 0.0, 128
    %333 = vxpose.xlu0.b32.cont [5/16] 0.0, 128
    %334 = vxpose.xlu0.b32.cont [6/16] 0.0, 128
    %335 = vxpose.xlu0.b32.cont [7/16] 0.0, 128
    %336 = vxpose.xlu0.b32.cont [8/16] 0.0, 128
    %337 = vxpose.xlu0.b32.cont [9/16] 0.0, 128
    %338 = vxpose.xlu0.b32.cont [10/16] 0.0, 128
    %339 = vxpose.xlu0.b32.cont [11/16] 0.0, 128
    %340 = vxpose.xlu0.b32.cont [12/16] 0.0, 128
    %341 = vxpose.xlu0.b32.cont [13/16] 0.0, 128
    %342 = vxpose.xlu0.b32.cont [14/16] 0.0, 128
    %343 = vxpose.xlu0.b32.cont [15/16] 0.0, 128
    %344 = vxpose.xlu0.b32.end [16/16] 0.0, 128
    %v345 = vpop.trf.xlu0
    %v346 = vpop.trf.xlu0
    %v347 = vpop.trf.xlu0
    %v348 = vpop.trf.xlu0
    %v349 = vpop.trf.xlu0
    %v350 = vpop.trf.xlu0
    %v351 = vpop.trf.xlu0
    %v352 = vpop.trf.xlu0
    %v353 = vpop.trf.xlu0
    %v354 = vpop.trf.xlu0
    %v355 = vpop.trf.xlu0
    %v356 = vpop.trf.xlu0
    %v357 = vpop.trf.xlu0
    %v358 = vpop.trf.xlu0
    %v359 = vpop.trf.xlu0
    %v360 = vpop.trf.xlu0
    %361 = vxpose.xlu0.b32.start [1/16] %v262, 128
    %362 = vxpose.xlu0.b32.cont [2/16] 0.0, 128
    %363 = vxpose.xlu0.b32.cont [3/16] 0.0, 128
    %364 = vxpose.xlu0.b32.cont [4/16] 0.0, 128
    %365 = vxpose.xlu0.b32.cont [5/16] 0.0, 128
    %366 = vxpose.xlu0.b32.cont [6/16] 0.0, 128
    %367 = vxpose.xlu0.b32.cont [7/16] 0.0, 128
    %368 = vxpose.xlu0.b32.cont [8/16] 0.0, 128
    %369 = vxpose.xlu0.b32.cont [9/16] 0.0, 128
    %370 = vxpose.xlu0.b32.cont [10/16] 0.0, 128
    %371 = vxpose.xlu0.b32.cont [11/16] 0.0, 128
    %372 = vxpose.xlu0.b32.cont [12/16] 0.0, 128
    %373 = vxpose.xlu0.b32.cont [13/16] 0.0, 128
    %374 = vxpose.xlu0.b32.cont [14/16] 0.0, 128
    %375 = vxpose.xlu0.b32.cont [15/16] 0.0, 128
    %376 = vxpose.xlu0.b32.end [16/16] 0.0, 128
    %v377 = vpop.trf.xlu0
    %v378 = vpop.trf.xlu0
    %v379 = vpop.trf.xlu0
    %v380 = vpop.trf.xlu0
    %v381 = vpop.trf.xlu0
    %v382 = vpop.trf.xlu0
    %v383 = vpop.trf.xlu0
    %v384 = vpop.trf.xlu0
    %v385 = vpop.trf.xlu0
    %v386 = vpop.trf.xlu0
    %v387 = vpop.trf.xlu0
    %v388 = vpop.trf.xlu0
    %v389 = vpop.trf.xlu0
    %v390 = vpop.trf.xlu0
    %v391 = vpop.trf.xlu0
    %v392 = vpop.trf.xlu0
    %v393 = vpack.c.bf16 %v282, %v281
    %v394 = vpack.c.bf16 %v284, %v283
    %v395 = vpack.c.bf16 %v314, %v313
    %v396 = vpack.c.bf16 %v316, %v315
    %v397 = vpack.c.bf16 %v346, %v345
    %v398 = vpack.c.bf16 %v348, %v347
    %v399 = vpack.c.bf16 %v378, %v377
    %v400 = vpack.c.bf16 %v380, %v379
    %v401 = vpack.c.bf16 %v251, %v251
    %v402 = vpack.c.bf16 %v254, %v254
    %v403 = vpack.c.bf16 %v259, %v259
    %v404 = vpack.c.bf16 %v262, %v262
    %v405 = vlaneseq
    %v406 = vshrl.u32 %v405, 7
    %vm407 = vcmp.ge.s32.totalorder %v406, 7
    %vm408 = vcmp.ge.s32.totalorder %v406, 6
    %vm409 = vcmp.lt.s32.totalorder %v406, 1
    %vm410 = vcmp.lt.s32.totalorder %v406, 2
    %v411 = vpack.c.bf16 %v144, %v143
    %v412 = vpack.c.bf16 %v146, %v145
    %v417 = vunpack.c.l.b16 %v151
    %v418 = vunpack.c.l.b16 %v152
    %v419 = vunpack.c.l.b16 %v153
    %v420 = vunpack.c.l.b16 %v154
    %v421 = vpack.c.b16 %v418, %v417
    %v422 = vpack.c.b16 %v420, %v419
    %v426 = vsel %vm209, %v411, 0
    %v429 = vsel %vm209, %v412, 0
    %431 = vmatprep.subr.bf16.mxu0 0
    %432 = vmatpush1.bf16.msra.mxu0 %v421
    %433 = vmatprep.subr.bf16.mxu0 0
    %434 = vmatpush1.bf16.msra.mxu0 %v422
    %435 = vmatprep.subr.bf16.mxu0 0
    %436 = vmatpush1.bf16.msra.mxu0 0
    %437 = vmatprep.subr.bf16.mxu0 0
    %438 = vmatpush1.bf16.msra.mxu0 0
    %439 = vmatprep.subr.bf16.mxu0 0
    %440 = vmatpush1.bf16.msra.mxu0 0
    %441 = vmatprep.subr.bf16.mxu0 0
    %442 = vmatpush1.bf16.msra.mxu0 0
    %443 = vmatprep.subr.bf16.mxu0 0
    %444 = vmatpush1.bf16.msra.mxu0 0
    %445 = vmatprep.subr.bf16.mxu0 0
    %446 = vmatpush1.bf16.msra.mxu0 0
    %447 = vmatprep.subr.bf16.mxu0 0
    %448 = vmatpush1.bf16.msra.mxu0 0
    %449 = vmatprep.subr.bf16.mxu0 0
    %450 = vmatpush1.bf16.msra.mxu0 0
    %451 = vmatprep.subr.bf16.mxu0 0
    %452 = vmatpush1.bf16.msra.mxu0 0
    %453 = vmatprep.subr.bf16.mxu0 0
    %454 = vmatpush1.bf16.msra.mxu0 0
    %455 = vmatprep.subr.bf16.mxu0 0
    %456 = vmatpush1.bf16.msra.mxu0 0
    %457 = vmatprep.subr.bf16.mxu0 0
    %458 = vmatpush1.bf16.msra.mxu0 0
    %459 = vmatprep.subr.bf16.mxu0 0
    %460 = vmatpush1.bf16.msra.mxu0 0
    %461 = vmatprep.subr.bf16.mxu0 0
    %462 = vmatpush1.bf16.msra.mxu0 0
    %463 = vmatprep.mubr.bf16.mxu0 0
    %464 = vmatmul.mubr.bf16.gmra.mrb[0].mxu0 %v426
    %v465 = vpop.f32.mrb[0].mxu0
    %v466 = vadd.f32 0.0, %v465
    %v467 = vpop.f32.mrb[0].mxu0
    %v468 = vpop.f32.mrb[0].mxu0
    %v469 = vadd.f32 0.0, %v468
    %v470 = vpop.f32.mrb[0].mxu0
    %471 = vmatprep.mubr.bf16.mxu0 0
    %472 = vmatmul.mubr.bf16.gmra.mrb[0].mxu0 %v429
    %v473 = vpop.f32.mrb[0].mxu0
    %v474 = vadd.f32 0.0, %v473
    %v475 = vpop.f32.mrb[0].mxu0
    %v476 = vpop.f32.mrb[0].mxu0
    %v477 = vadd.f32 0.0, %v476
    %v478 = vpop.f32.mrb[0].mxu0
    %479 = vdwg.mxu0
    %v480 = vpack.c.bf16 %v466, %v466
    %v481 = vpack.c.bf16 %v469, %v469
    %v482 = vpack.c.bf16 %v474, %v474
    %v483 = vpack.c.bf16 %v477, %v477
    %v485 = vsel %vm209, %v480, 0
    %487 = vmatprep.subr.bf16.mxu0 0
    %488 = vmatpush1.bf16.msra.mxu0 %v393
    %489 = vmatprep.subr.bf16.mxu0 0
    %490 = vmatpush1.bf16.msra.mxu0 %v394
    %491 = vmatprep.subr.bf16.mxu0 0
    %492 = vmatpush1.bf16.msra.mxu0 0
    %493 = vmatprep.subr.bf16.mxu0 0
    %494 = vmatpush1.bf16.msra.mxu0 0
    %495 = vmatprep.subr.bf16.mxu0 0
    %496 = vmatpush1.bf16.msra.mxu0 0
    %497 = vmatprep.subr.bf16.mxu0 0
    %498 = vmatpush1.bf16.msra.mxu0 0
    %499 = vmatprep.subr.bf16.mxu0 0
    %500 = vmatpush1.bf16.msra.mxu0 0
    %501 = vmatprep.subr.bf16.mxu0 0
    %502 = vmatpush1.bf16.msra.mxu0 0
    %503 = vmatprep.subr.bf16.mxu0 0
    %504 = vmatpush1.bf16.msra.mxu0 0
    %505 = vmatprep.subr.bf16.mxu0 0
    %506 = vmatpush1.bf16.msra.mxu0 0
    %507 = vmatprep.subr.bf16.mxu0 0
    %508 = vmatpush1.bf16.msra.mxu0 0
    %509 = vmatprep.subr.bf16.mxu0 0
    %510 = vmatpush1.bf16.msra.mxu0 0
    %511 = vmatprep.subr.bf16.mxu0 0
    %512 = vmatpush1.bf16.msra.mxu0 0
    %513 = vmatprep.subr.bf16.mxu0 0
    %514 = vmatpush1.bf16.msra.mxu0 0
    %515 = vmatprep.subr.bf16.mxu0 0
    %516 = vmatpush1.bf16.msra.mxu0 0
    %517 = vmatprep.subr.bf16.mxu0 0
    %518 = vmatpush1.bf16.msra.mxu0 0
    %519 = vmatprep.mubr.bf16.mxu0 0
    %520 = vmatmul.mubr.bf16.gmra.mrb[0].mxu0 %v485
    %v521 = vpop.f32.mrb[0].mxu0
    %v522 = vadd.f32 0.0, %v521
    %v523 = vpop.f32.mrb[0].mxu0
    %v524 = vpop.f32.mrb[0].mxu0
    %v525 = vpop.f32.mrb[0].mxu0
    %526 = vdwg.mxu0
    %v528 = vsel %vm209, %v481, 0
    %530 = vmatprep.subr.bf16.mxu0 0
    %531 = vmatpush1.bf16.msra.mxu0 %v395
    %532 = vmatprep.subr.bf16.mxu0 0
    %533 = vmatpush1.bf16.msra.mxu0 %v396
    %534 = vmatprep.subr.bf16.mxu0 0
    %535 = vmatpush1.bf16.msra.mxu0 0
    %536 = vmatprep.subr.bf16.mxu0 0
    %537 = vmatpush1.bf16.msra.mxu0 0
    %538 = vmatprep.subr.bf16.mxu0 0
    %539 = vmatpush1.bf16.msra.mxu0 0
    %540 = vmatprep.subr.bf16.mxu0 0
    %541 = vmatpush1.bf16.msra.mxu0 0
    %542 = vmatprep.subr.bf16.mxu0 0
    %543 = vmatpush1.bf16.msra.mxu0 0
    %544 = vmatprep.subr.bf16.mxu0 0
    %545 = vmatpush1.bf16.msra.mxu0 0
    %546 = vmatprep.subr.bf16.mxu0 0
    %547 = vmatpush1.bf16.msra.mxu0 0
    %548 = vmatprep.subr.bf16.mxu0 0
    %549 = vmatpush1.bf16.msra.mxu0 0
    %550 = vmatprep.subr.bf16.mxu0 0
    %551 = vmatpush1.bf16.msra.mxu0 0
    %552 = vmatprep.subr.bf16.mxu0 0
    %553 = vmatpush1.bf16.msra.mxu0 0
    %554 = vmatprep.subr.bf16.mxu0 0
    %555 = vmatpush1.bf16.msra.mxu0 0
    %556 = vmatprep.subr.bf16.mxu0 0
    %557 = vmatpush1.bf16.msra.mxu0 0
    %558 = vmatprep.subr.bf16.mxu0 0
    %559 = vmatpush1.bf16.msra.mxu0 0
    %560 = vmatprep.subr.bf16.mxu0 0
    %561 = vmatpush1.bf16.msra.mxu0 0
    %562 = vmatprep.mubr.bf16.mxu0 0
    %563 = vmatmul.mubr.bf16.gmra.mrb[0].mxu0 %v528
    %v564 = vpop.f32.mrb[0].mxu0
    %v565 = vadd.f32 0.0, %v564
    %v566 = vpop.f32.mrb[0].mxu0
    %v567 = vpop.f32.mrb[0].mxu0
    %v568 = vpop.f32.mrb[0].mxu0
    %569 = vdwg.mxu0
    %v571 = vsel %vm209, %v482, 0
    %573 = vmatprep.subr.bf16.mxu0 0
    %574 = vmatpush1.bf16.msra.mxu0 %v397
    %575 = vmatprep.subr.bf16.mxu0 0
    %576 = vmatpush1.bf16.msra.mxu0 %v398
    %577 = vmatprep.subr.bf16.mxu0 0
    %578 = vmatpush1.bf16.msra.mxu0 0
    %579 = vmatprep.subr.bf16.mxu0 0
    %580 = vmatpush1.bf16.msra.mxu0 0
    %581 = vmatprep.subr.bf16.mxu0 0
    %582 = vmatpush1.bf16.msra.mxu0 0
    %583 = vmatprep.subr.bf16.mxu0 0
    %584 = vmatpush1.bf16.msra.mxu0 0
    %585 = vmatprep.subr.bf16.mxu0 0
    %586 = vmatpush1.bf16.msra.mxu0 0
    %587 = vmatprep.subr.bf16.mxu0 0
    %588 = vmatpush1.bf16.msra.mxu0 0
    %589 = vmatprep.subr.bf16.mxu0 0
    %590 = vmatpush1.bf16.msra.mxu0 0
    %591 = vmatprep.subr.bf16.mxu0 0
    %592 = vmatpush1.bf16.msra.mxu0 0
    %593 = vmatprep.subr.bf16.mxu0 0
    %594 = vmatpush1.bf16.msra.mxu0 0
    %595 = vmatprep.subr.bf16.mxu0 0
    %596 = vmatpush1.bf16.msra.mxu0 0
    %597 = vmatprep.subr.bf16.mxu0 0
    %598 = vmatpush1.bf16.msra.mxu0 0
    %599 = vmatprep.subr.bf16.mxu0 0
    %600 = vmatpush1.bf16.msra.mxu0 0
    %601 = vmatprep.subr.bf16.mxu0 0
    %602 = vmatpush1.bf16.msra.mxu0 0
    %603 = vmatprep.subr.bf16.mxu0 0
    %604 = vmatpush1.bf16.msra.mxu0 0
    %605 = vmatprep.mubr.bf16.mxu0 0
    %606 = vmatmul.mubr.bf16.gmra.mrb[0].mxu0 %v571
    %v607 = vpop.f32.mrb[0].mxu0
    %v608 = vadd.f32 0.0, %v607
    %v609 = vpop.f32.mrb[0].mxu0
    %v610 = vpop.f32.mrb[0].mxu0
    %v611 = vpop.f32.mrb[0].mxu0
    %612 = vdwg.mxu0
    %v614 = vsel %vm209, %v483, 0
    %616 = vmatprep.subr.bf16.mxu0 0
    %617 = vmatpush1.bf16.msra.mxu0 %v399
    %618 = vmatprep.subr.bf16.mxu0 0
    %619 = vmatpush1.bf16.msra.mxu0 %v400
    %620 = vmatprep.subr.bf16.mxu0 0
    %621 = vmatpush1.bf16.msra.mxu0 0
    %622 = vmatprep.subr.bf16.mxu0 0
    %623 = vmatpush1.bf16.msra.mxu0 0
    %624 = vmatprep.subr.bf16.mxu0 0
    %625 = vmatpush1.bf16.msra.mxu0 0
    %626 = vmatprep.subr.bf16.mxu0 0
    %627 = vmatpush1.bf16.msra.mxu0 0
    %628 = vmatprep.subr.bf16.mxu0 0
    %629 = vmatpush1.bf16.msra.mxu0 0
    %630 = vmatprep.subr.bf16.mxu0 0
    %631 = vmatpush1.bf16.msra.mxu0 0
    %632 = vmatprep.subr.bf16.mxu0 0
    %633 = vmatpush1.bf16.msra.mxu0 0
    %634 = vmatprep.subr.bf16.mxu0 0
    %635 = vmatpush1.bf16.msra.mxu0 0
    %636 = vmatprep.subr.bf16.mxu0 0
    %637 = vmatpush1.bf16.msra.mxu0 0
    %638 = vmatprep.subr.bf16.mxu0 0
    %639 = vmatpush1.bf16.msra.mxu0 0
    %640 = vmatprep.subr.bf16.mxu0 0
    %641 = vmatpush1.bf16.msra.mxu0 0
    %642 = vmatprep.subr.bf16.mxu0 0
    %643 = vmatpush1.bf16.msra.mxu0 0
    %644 = vmatprep.subr.bf16.mxu0 0
    %645 = vmatpush1.bf16.msra.mxu0 0
    %646 = vmatprep.subr.bf16.mxu0 0
    %647 = vmatpush1.bf16.msra.mxu0 0
    %648 = vmatprep.mubr.bf16.mxu0 0
    %649 = vmatmul.mubr.bf16.gmra.mrb[0].mxu0 %v614
    %v650 = vpop.f32.mrb[0].mxu0
    %v651 = vadd.f32 0.0, %v650
    %v652 = vpop.f32.mrb[0].mxu0
    %v653 = vpop.f32.mrb[0].mxu0
    %v654 = vpop.f32.mrb[0].mxu0
    %655 = vdwg.mxu0
    %vm656 = vcmask 64512
    %v657 = vsel %vm656, %v522, -inf
    %658 = vmax.xlane.f32.xlu0 %v657
    %v659 = vpop.xlane.xlu0 %658
    %v660 = vsel %vm656, %v565, -inf
    %661 = vmax.xlane.f32.xlu0 %v660
    %v662 = vpop.xlane.xlu0 %661
    %v663 = vsel %vm656, %v608, -inf
    %664 = vmax.xlane.f32.xlu0 %v663
    %v665 = vpop.xlane.xlu0 %664
    %v666 = vsel %vm656, %v651, -inf
    %667 = vmax.xlane.f32.xlu0 %v666
    %v668 = vpop.xlane.xlu0 %667
    %v669 = vsub.f32 %v522, %v659
    %v670 = vsub.f32 %v565, %v662
    %v671 = vsub.f32 %v608, %v665
    %v672 = vsub.f32 %v651, %v668
    %v673 = vmul.f32 %v669, 1.442695
    %v674 = vpow.pop %v673
    %v675 = vmul.f32 %v670, 1.442695
    %v676 = vpow.pop %v675
    %v677 = vmul.f32 %v671, 1.442695
    %v678 = vpow.pop %v677
    %v679 = vmul.f32 %v672, 1.442695
    %v680 = vpow.pop %v679
    %v681 = vpack.c.bf16 %v674, %v674
    %v682 = vpack.c.bf16 %v676, %v676
    %v683 = vpack.c.bf16 %v678, %v678
    %v684 = vpack.c.bf16 %v680, %v680
    %686 = vrot.lane.b32.xlu0 %v401, 96
    %v687 = vpop.permute.xlu0 %686
    %v689 = vsel %vm656, %v681, 0
    %vm691 = vcmask 1043456
    %v693 = vsel %vm691, %v687, 0
    %695 = vmatprep.subr.bf16.mxu0 0
    %696 = vmatpush1.bf16.msra.mxu0 %v693
    %697 = vmatprep.subr.bf16.mxu0 0
    %698 = vmatpush1.bf16.msra.mxu0 0
    %699 = vmatprep.subr.bf16.mxu0 0
    %700 = vmatpush1.bf16.msra.mxu0 0
    %701 = vmatprep.subr.bf16.mxu0 0
    %702 = vmatpush1.bf16.msra.mxu0 0
    %703 = vmatprep.subr.bf16.mxu0 0
    %704 = vmatpush1.bf16.msra.mxu0 0
    %705 = vmatprep.subr.bf16.mxu0 0
    %706 = vmatpush1.bf16.msra.mxu0 0
    %707 = vmatprep.subr.bf16.mxu0 0
    %708 = vmatpush1.bf16.msra.mxu0 0
    %709 = vmatprep.subr.bf16.mxu0 0
    %710 = vmatpush1.bf16.msra.mxu0 0
    %711 = vmatprep.subr.bf16.mxu0 0
    %712 = vmatpush1.bf16.msra.mxu0 0
    %713 = vmatprep.subr.bf16.mxu0 0
    %714 = vmatpush1.bf16.msra.mxu0 0
    %715 = vmatprep.subr.bf16.mxu0 0
    %716 = vmatpush1.bf16.msra.mxu0 0
    %717 = vmatprep.subr.bf16.mxu0 0
    %718 = vmatpush1.bf16.msra.mxu0 0
    %719 = vmatprep.subr.bf16.mxu0 0
    %720 = vmatpush1.bf16.msra.mxu0 0
    %721 = vmatprep.subr.bf16.mxu0 0
    %722 = vmatpush1.bf16.msra.mxu0 0
    %723 = vmatprep.subr.bf16.mxu0 0
    %724 = vmatpush1.bf16.msra.mxu0 0
    %725 = vmatprep.subr.bf16.mxu0 0
    %726 = vmatpush1.bf16.msra.mxu0 0
    %727 = vmatprep.mubr.bf16.mxu0 0
    %728 = vmatmul.mubr.bf16.gmra.mrb[0].mxu0 %v689
    %v729 = vpop.f32.mrb[0].mxu0
    %v730 = vadd.f32 0.0, %v729
    %v731 = vpop.f32.mrb[0].mxu0
    %v732 = vpop.f32.mrb[0].mxu0
    %v733 = vpop.f32.mrb[0].mxu0
    %734 = vdwg.mxu0
    %736 = vrot.lane.b32.xlu0 %v402, 96
    %v737 = vpop.permute.xlu0 %736
    %v739 = vsel %vm656, %v682, 0
    %v742 = vsel %vm691, %v737, 0
    %744 = vmatprep.subr.bf16.mxu0 0
    %745 = vmatpush1.bf16.msra.mxu0 %v742
    %746 = vmatprep.subr.bf16.mxu0 0
    %747 = vmatpush1.bf16.msra.mxu0 0
    %748 = vmatprep.subr.bf16.mxu0 0
    %749 = vmatpush1.bf16.msra.mxu0 0
    %750 = vmatprep.subr.bf16.mxu0 0
    %751 = vmatpush1.bf16.msra.mxu0 0
    %752 = vmatprep.subr.bf16.mxu0 0
    %753 = vmatpush1.bf16.msra.mxu0 0
    %754 = vmatprep.subr.bf16.mxu0 0
    %755 = vmatpush1.bf16.msra.mxu0 0
    %756 = vmatprep.subr.bf16.mxu0 0
    %757 = vmatpush1.bf16.msra.mxu0 0
    %758 = vmatprep.subr.bf16.mxu0 0
    %759 = vmatpush1.bf16.msra.mxu0 0
    %760 = vmatprep.subr.bf16.mxu0 0
    %761 = vmatpush1.bf16.msra.mxu0 0
    %762 = vmatprep.subr.bf16.mxu0 0
    %763 = vmatpush1.bf16.msra.mxu0 0
    %764 = vmatprep.subr.bf16.mxu0 0
    %765 = vmatpush1.bf16.msra.mxu0 0
    %766 = vmatprep.subr.bf16.mxu0 0
    %767 = vmatpush1.bf16.msra.mxu0 0
    %768 = vmatprep.subr.bf16.mxu0 0
    %769 = vmatpush1.bf16.msra.mxu0 0
    %770 = vmatprep.subr.bf16.mxu0 0
    %771 = vmatpush1.bf16.msra.mxu0 0
    %772 = vmatprep.subr.bf16.mxu0 0
    %773 = vmatpush1.bf16.msra.mxu0 0
    %774 = vmatprep.subr.bf16.mxu0 0
    %775 = vmatpush1.bf16.msra.mxu0 0
    %776 = vmatprep.mubr.bf16.mxu0 0
    %777 = vmatmul.mubr.bf16.gmra.mrb[0].mxu0 %v739
    %v778 = vpop.f32.mrb[0].mxu0
    %v779 = vadd.f32 0.0, %v778
    %v780 = vpop.f32.mrb[0].mxu0
    %v781 = vpop.f32.mrb[0].mxu0
    %v782 = vpop.f32.mrb[0].mxu0
    %783 = vdwg.mxu0
    %785 = vrot.lane.b32.xlu0 %v403, 96
    %v786 = vpop.permute.xlu0 %785
    %v788 = vsel %vm656, %v683, 0
    %v791 = vsel %vm691, %v786, 0
    %793 = vmatprep.subr.bf16.mxu0 0
    %794 = vmatpush1.bf16.msra.mxu0 %v791
    %795 = vmatprep.subr.bf16.mxu0 0
    %796 = vmatpush1.bf16.msra.mxu0 0
    %797 = vmatprep.subr.bf16.mxu0 0
    %798 = vmatpush1.bf16.msra.mxu0 0
    %799 = vmatprep.subr.bf16.mxu0 0
    %800 = vmatpush1.bf16.msra.mxu0 0
    %801 = vmatprep.subr.bf16.mxu0 0
    %802 = vmatpush1.bf16.msra.mxu0 0
    %803 = vmatprep.subr.bf16.mxu0 0
    %804 = vmatpush1.bf16.msra.mxu0 0
    %805 = vmatprep.subr.bf16.mxu0 0
    %806 = vmatpush1.bf16.msra.mxu0 0
    %807 = vmatprep.subr.bf16.mxu0 0
    %808 = vmatpush1.bf16.msra.mxu0 0
    %809 = vmatprep.subr.bf16.mxu0 0
    %810 = vmatpush1.bf16.msra.mxu0 0
    %811 = vmatprep.subr.bf16.mxu0 0
    %812 = vmatpush1.bf16.msra.mxu0 0
    %813 = vmatprep.subr.bf16.mxu0 0
    %814 = vmatpush1.bf16.msra.mxu0 0
    %815 = vmatprep.subr.bf16.mxu0 0
    %816 = vmatpush1.bf16.msra.mxu0 0
    %817 = vmatprep.subr.bf16.mxu0 0
    %818 = vmatpush1.bf16.msra.mxu0 0
    %819 = vmatprep.subr.bf16.mxu0 0
    %820 = vmatpush1.bf16.msra.mxu0 0
    %821 = vmatprep.subr.bf16.mxu0 0
    %822 = vmatpush1.bf16.msra.mxu0 0
    %823 = vmatprep.subr.bf16.mxu0 0
    %824 = vmatpush1.bf16.msra.mxu0 0
    %825 = vmatprep.mubr.bf16.mxu0 0
    %826 = vmatmul.mubr.bf16.gmra.mrb[0].mxu0 %v788
    %v827 = vpop.f32.mrb[0].mxu0
    %v828 = vadd.f32 0.0, %v827
    %v829 = vpop.f32.mrb[0].mxu0
    %v830 = vpop.f32.mrb[0].mxu0
    %v831 = vpop.f32.mrb[0].mxu0
    %832 = vdwg.mxu0
    %834 = vrot.lane.b32.xlu0 %v404, 96
    %v835 = vpop.permute.xlu0 %834
    %v837 = vsel %vm656, %v684, 0
    %v840 = vsel %vm691, %v835, 0
    %842 = vmatprep.subr.bf16.mxu0 0
    %843 = vmatpush1.bf16.msra.mxu0 %v840
    %844 = vmatprep.subr.bf16.mxu0 0
    %845 = vmatpush1.bf16.msra.mxu0 0
    %846 = vmatprep.subr.bf16.mxu0 0
    %847 = vmatpush1.bf16.msra.mxu0 0
    %848 = vmatprep.subr.bf16.mxu0 0
    %849 = vmatpush1.bf16.msra.mxu0 0
    %850 = vmatprep.subr.bf16.mxu0 0
    %851 = vmatpush1.bf16.msra.mxu0 0
    %852 = vmatprep.subr.bf16.mxu0 0
    %853 = vmatpush1.bf16.msra.mxu0 0
    %854 = vmatprep.subr.bf16.mxu0 0
    %855 = vmatpush1.bf16.msra.mxu0 0
    %856 = vmatprep.subr.bf16.mxu0 0
    %857 = vmatpush1.bf16.msra.mxu0 0
    %858 = vmatprep.subr.bf16.mxu0 0
    %859 = vmatpush1.bf16.msra.mxu0 0
    %860 = vmatprep.subr.bf16.mxu0 0
    %861 = vmatpush1.bf16.msra.mxu0 0
    %862 = vmatprep.subr.bf16.mxu0 0
    %863 = vmatpush1.bf16.msra.mxu0 0
    %864 = vmatprep.subr.bf16.mxu0 0
    %865 = vmatpush1.bf16.msra.mxu0 0
    %866 = vmatprep.subr.bf16.mxu0 0
    %867 = vmatpush1.bf16.msra.mxu0 0
    %868 = vmatprep.subr.bf16.mxu0 0
    %869 = vmatpush1.bf16.msra.mxu0 0
    %870 = vmatprep.subr.bf16.mxu0 0
    %871 = vmatpush1.bf16.msra.mxu0 0
    %872 = vmatprep.subr.bf16.mxu0 0
    %873 = vmatpush1.bf16.msra.mxu0 0
    %874 = vmatprep.mubr.bf16.mxu0 0
    %875 = vmatmul.mubr.bf16.gmra.mrb[0].mxu0 %v837
    %v876 = vpop.f32.mrb[0].mxu0
    %v877 = vadd.f32 0.0, %v876
    %v878 = vpop.f32.mrb[0].mxu0
    %v879 = vpop.f32.mrb[0].mxu0
    %v880 = vpop.f32.mrb[0].mxu0
    %881 = vdwg.mxu0
    %v882 = vsel %vm656, %v674, 0.0
    %883 = vadd.xlane.f32.xlu0 %v882
    %v884 = vpop.xlane.xlu0 %883
    %v885 = vsel %vm656, %v676, 0.0
    %886 = vadd.xlane.f32.xlu0 %v885
    %v887 = vpop.xlane.xlu0 %886
    %v888 = vsel %vm656, %v678, 0.0
    %889 = vadd.xlane.f32.xlu0 %v888
    %v890 = vpop.xlane.xlu0 %889
    %v891 = vsel %vm656, %v680, 0.0
    %892 = vadd.xlane.f32.xlu0 %v891
    %v893 = vpop.xlane.xlu0 %892
    %v894 = vrcp.pop %v884
    %v895 = vrcp.pop %v887
    %v896 = vrcp.pop %v890
    %v897 = vrcp.pop %v893
    %v898 = vmul.f32 %v730, %v894
    %v899 = vmul.f32 %v779, %v895
    %v900 = vmul.f32 %v828, %v896
    %v901 = vmul.f32 %v877, %v897
    %v902 = vpack.c.bf16 %v899, %v898
    %v903 = vpack.c.bf16 %v901, %v900
    %v908 = vunpack.c.l.b16 %v159
    %v909 = vunpack.c.l.b16 %v160
    %v910 = vunpack.c.l.b16 %v161
    %v911 = vunpack.c.l.b16 %v162
    %v912 = vpack.c.b16 %v909, %v908
    %v913 = vpack.c.b16 %v911, %v910
    %v917 = vsel %vm209, %v902, 0
    %v920 = vsel %vm209, %v903, 0
    %922 = vmatprep.subr.bf16.mxu0 0
    %923 = vmatpush1.bf16.msra.mxu0 %v912
    %924 = vmatprep.subr.bf16.mxu0 0
    %925 = vmatpush1.bf16.msra.mxu0 %v913
    %926 = vmatprep.subr.bf16.mxu0 0
    %927 = vmatpush1.bf16.msra.mxu0 0
    %928 = vmatprep.subr.bf16.mxu0 0
    %929 = vmatpush1.bf16.msra.mxu0 0
    %930 = vmatprep.subr.bf16.mxu0 0
    %931 = vmatpush1.bf16.msra.mxu0 0
    %932 = vmatprep.subr.bf16.mxu0 0
    %933 = vmatpush1.bf16.msra.mxu0 0
    %934 = vmatprep.subr.bf16.mxu0 0
    %935 = vmatpush1.bf16.msra.mxu0 0
    %936 = vmatprep.subr.bf16.mxu0 0
    %937 = vmatpush1.bf16.msra.mxu0 0
    %938 = vmatprep.subr.bf16.mxu0 0
    %939 = vmatpush1.bf16.msra.mxu0 0
    %940 = vmatprep.subr.bf16.mxu0 0
    %941 = vmatpush1.bf16.msra.mxu0 0
    %942 = vmatprep.subr.bf16.mxu0 0
    %943 = vmatpush1.bf16.msra.mxu0 0
    %944 = vmatprep.subr.bf16.mxu0 0
    %945 = vmatpush1.bf16.msra.mxu0 0
    %946 = vmatprep.subr.bf16.mxu0 0
    %947 = vmatpush1.bf16.msra.mxu0 0
    %948 = vmatprep.subr.bf16.mxu0 0
    %949 = vmatpush1.bf16.msra.mxu0 0
    %950 = vmatprep.subr.bf16.mxu0 0
    %951 = vmatpush1.bf16.msra.mxu0 0
    %952 = vmatprep.subr.bf16.mxu0 0
    %953 = vmatpush1.bf16.msra.mxu0 0
    %954 = vmatprep.mubr.bf16.mxu0 0
    %955 = vmatmul.mubr.bf16.gmra.mrb[0].mxu0 %v917
    %v956 = vpop.f32.mrb[0].mxu0
    %v957 = vadd.f32 0.0, %v956
    %v958 = vpop.f32.mrb[0].mxu0
    %v959 = vpop.f32.mrb[0].mxu0
    %v960 = vadd.f32 0.0, %v959
    %v961 = vpop.f32.mrb[0].mxu0
    %962 = vmatprep.mubr.bf16.mxu0 0
    %963 = vmatmul.mubr.bf16.gmra.mrb[0].mxu0 %v920
    %v964 = vpop.f32.mrb[0].mxu0
    %v965 = vadd.f32 0.0, %v964
    %v966 = vpop.f32.mrb[0].mxu0
    %v967 = vpop.f32.mrb[0].mxu0
    %v968 = vadd.f32 0.0, %v967
    %v969 = vpop.f32.mrb[0].mxu0
    %970 = vdwg.mxu0
    %v971 = vadd.f32 %v143, %v957
    %v972 = vadd.f32 %v144, %v960
    %v973 = vadd.f32 %v145, %v965
    %v974 = vadd.f32 %v146, %v968
    %v975 = vlaneseq
    %v976 = vshrl.u32 %v975, 7
    %v977 = vsub.s32 0, %v976
    %v978 = vrot.slane %v971, %v977
    %v979 = vlaneseq
    %v980 = vshrl.u32 %v979, 7
    %v981 = vsub.s32 0, %v980
    %v982 = vrot.slane %v972, %v981
    %v983 = vlaneseq
    %v984 = vshrl.u32 %v983, 7
    %v985 = vsub.s32 0, %v984
    %v986 = vrot.slane %v973, %v985
    %v987 = vlaneseq
    %v988 = vshrl.u32 %v987, 7
    %v989 = vsub.s32 0, %v988
    %v990 = vrot.slane %v974, %v989
    %v991 = vlaneseq
    %v992 = vshrl.u32 %v991, 7
    %v993 = vsub.s32 7, %v992
    %v994 = vrot.slane %v971, %v993
    %v995 = vlaneseq
    %v996 = vshrl.u32 %v995, 7
    %v997 = vsub.s32 7, %v996
    %v998 = vrot.slane %v972, %v997
    %v999 = vlaneseq
    %v1000 = vshrl.u32 %v999, 7
    %v1001 = vsub.s32 7, %v1000
    %v1002 = vrot.slane %v973, %v1001
    %v1003 = vlaneseq
    %v1004 = vshrl.u32 %v1003, 7
    %v1005 = vsub.s32 7, %v1004
    %v1006 = vrot.slane %v974, %v1005
    %v1011 = vrot.slane %v971, 1
    %v1012 = vrot.slane %v972, 1
    %v1013 = vrot.slane %v973, 1
    %v1014 = vrot.slane %v974, 1
    %vm1019 = vcmask 1046528
    %v1020 = vsel %vm1019, %v1011, %v1011
    %v1021 = vsel %vm1019, %v1012, %v1012
    %v1022 = vsel %vm1019, %v1013, %v1013
    %v1023 = vsel %vm1019, %v1014, %v1014
    %v1024 = vsel %vm407, %v994, %v1020
    %v1025 = vsel %vm407, %v998, %v1021
    %v1026 = vsel %vm407, %v1002, %v1022
    %v1027 = vsel %vm407, %v1006, %v1023
    %v1028 = vrot.slane %v971, 7
    %v1029 = vrot.slane %v972, 7
    %v1030 = vrot.slane %v973, 7
    %v1031 = vrot.slane %v974, 7
    %vm1036 = vcmask 1040384
    %v1037 = vsel %vm1036, %v1028, %v1028
    %v1038 = vsel %vm1036, %v1029, %v1029
    %v1039 = vsel %vm1036, %v1030, %v1030
    %v1040 = vsel %vm1036, %v1031, %v1031
    %v1041 = vsel %vm409, %v978, %v1037
    %v1042 = vsel %vm409, %v982, %v1038
    %v1043 = vsel %vm409, %v986, %v1039
    %v1044 = vsel %vm409, %v990, %v1040
    %v1045 = vadd.f32 %v971, %v1024
    %v1046 = vadd.f32 %v972, %v1025
    %v1047 = vadd.f32 %v973, %v1026
    %v1048 = vadd.f32 %v974, %v1027
    %v1049 = vadd.f32 %v1045, %v1041
    %v1050 = vadd.f32 %v1046, %v1042
    %v1051 = vadd.f32 %v1047, %v1043
    %v1052 = vadd.f32 %v1048, %v1044
    %v1053 = vrot.slane %v971, 2
    %v1054 = vrot.slane %v972, 2
    %v1055 = vrot.slane %v973, 2
    %v1056 = vrot.slane %v974, 2
    %vm1061 = vcmask 1045504
    %v1062 = vsel %vm1061, %v1053, %v1053
    %v1063 = vsel %vm1061, %v1054, %v1054
    %v1064 = vsel %vm1061, %v1055, %v1055
    %v1065 = vsel %vm1061, %v1056, %v1056
    %v1066 = vsel %vm408, %v994, %v1062
    %v1067 = vsel %vm408, %v998, %v1063
    %v1068 = vsel %vm408, %v1002, %v1064
    %v1069 = vsel %vm408, %v1006, %v1065
    %v1070 = vrot.slane %v971, 6
    %v1071 = vrot.slane %v972, 6
    %v1072 = vrot.slane %v973, 6
    %v1073 = vrot.slane %v974, 6
    %vm1078 = vcmask 1041408
    %v1079 = vsel %vm1078, %v1070, %v1070
    %v1080 = vsel %vm1078, %v1071, %v1071
    %v1081 = vsel %vm1078, %v1072, %v1072
    %v1082 = vsel %vm1078, %v1073, %v1073
    %v1083 = vsel %vm410, %v978, %v1079
    %v1084 = vsel %vm410, %v982, %v1080
    %v1085 = vsel %vm410, %v986, %v1081
    %v1086 = vsel %vm410, %v990, %v1082
    %v1087 = vadd.f32 %v1049, %v1066
    %v1088 = vadd.f32 %v1050, %v1067
    %v1089 = vadd.f32 %v1051, %v1068
    %v1090 = vadd.f32 %v1052, %v1069
    %v1091 = vadd.f32 %v1087, %v1083
    %v1092 = vadd.f32 %v1088, %v1084
    %v1093 = vadd.f32 %v1089, %v1085
    %v1094 = vadd.f32 %v1090, %v1086
    %v1095 = vmul.f32 %v1091, 0.2
    %v1096 = vmul.f32 %v1092, 0.2
    %v1097 = vmul.f32 %v1093, 0.2
    %v1098 = vmul.f32 %v1094, 0.2
    %v1099 = vsub.f32 %v971, %v1095
    %v1100 = vsub.f32 %v972, %v1096
    %v1101 = vsub.f32 %v973, %v1097
    %v1102 = vsub.f32 %v974, %v1098
    %v1103 = vpack.c.bf16 %v1100, %v1099
    %v1104 = vpack.c.bf16 %v1102, %v1101
    %v1106 = vsel %vm209, %v1103, 0
    %v1109 = vsel %vm209, %v1104, 0
    %1111 = vmatprep.subr.bf16.mxu0 0
    %1112 = vmatpush1.bf16.msra.mxu0 %v421
    %1113 = vmatprep.subr.bf16.mxu0 0
    %1114 = vmatpush1.bf16.msra.mxu0 %v422
    %1115 = vmatprep.subr.bf16.mxu0 0
    %1116 = vmatpush1.bf16.msra.mxu0 0
    %1117 = vmatprep.subr.bf16.mxu0 0
    %1118 = vmatpush1.bf16.msra.mxu0 0
    %1119 = vmatprep.subr.bf16.mxu0 0
    %1120 = vmatpush1.bf16.msra.mxu0 0
    %1121 = vmatprep.subr.bf16.mxu0 0
    %1122 = vmatpush1.bf16.msra.mxu0 0
    %1123 = vmatprep.subr.bf16.mxu0 0
    %1124 = vmatpush1.bf16.msra.mxu0 0
    %1125 = vmatprep.subr.bf16.mxu0 0
    %1126 = vmatpush1.bf16.msra.mxu0 0
    %1127 = vmatprep.subr.bf16.mxu0 0
    %1128 = vmatpush1.bf16.msra.mxu0 0
    %1129 = vmatprep.subr.bf16.mxu0 0
    %1130 = vmatpush1.bf16.msra.mxu0 0
    %1131 = vmatprep.subr.bf16.mxu0 0
    %1132 = vmatpush1.bf16.msra.mxu0 0
    %1133 = vmatprep.subr.bf16.mxu0 0
    %1134 = vmatpush1.bf16.msra.mxu0 0
    %1135 = vmatprep.subr.bf16.mxu0 0
    %1136 = vmatpush1.bf16.msra.mxu0 0
    %1137 = vmatprep.subr.bf16.mxu0 0
    %1138 = vmatpush1.bf16.msra.mxu0 0
    %1139 = vmatprep.subr.bf16.mxu0 0
    %1140 = vmatpush1.bf16.msra.mxu0 0
    %1141 = vmatprep.subr.bf16.mxu0 0
    %1142 = vmatpush1.bf16.msra.mxu0 0
    %1143 = vmatprep.mubr.bf16.mxu0 0
    %1144 = vmatmul.mubr.bf16.gmra.mrb[0].mxu0 %v1106
    %v1145 = vpop.f32.mrb[0].mxu0
    %v1146 = vadd.f32 0.0, %v1145
    %v1147 = vpop.f32.mrb[0].mxu0
    %v1148 = vpop.f32.mrb[0].mxu0
    %v1149 = vadd.f32 0.0, %v1148
    %v1150 = vpop.f32.mrb[0].mxu0
    %1151 = vmatprep.mubr.bf16.mxu0 0
    %1152 = vmatmul.mubr.bf16.gmra.mrb[0].mxu0 %v1109
    %v1153 = vpop.f32.mrb[0].mxu0
    %v1154 = vadd.f32 0.0, %v1153
    %v1155 = vpop.f32.mrb[0].mxu0
    %v1156 = vpop.f32.mrb[0].mxu0
    %v1157 = vadd.f32 0.0, %v1156
    %v1158 = vpop.f32.mrb[0].mxu0
    %1159 = vdwg.mxu0
    %v1160 = vpack.c.bf16 %v1146, %v1146
    %v1161 = vpack.c.bf16 %v1149, %v1149
    %v1162 = vpack.c.bf16 %v1154, %v1154
    %v1163 = vpack.c.bf16 %v1157, %v1157
    %v1165 = vsel %vm209, %v1160, 0
    %1167 = vmatprep.subr.bf16.mxu0 0
    %1168 = vmatpush1.bf16.msra.mxu0 %v393
    %1169 = vmatprep.subr.bf16.mxu0 0
    %1170 = vmatpush1.bf16.msra.mxu0 %v394
    %1171 = vmatprep.subr.bf16.mxu0 0
    %1172 = vmatpush1.bf16.msra.mxu0 0
    %1173 = vmatprep.subr.bf16.mxu0 0
    %1174 = vmatpush1.bf16.msra.mxu0 0
    %1175 = vmatprep.subr.bf16.mxu0 0
    %1176 = vmatpush1.bf16.msra.mxu0 0
    %1177 = vmatprep.subr.bf16.mxu0 0
    %1178 = vmatpush1.bf16.msra.mxu0 0
    %1179 = vmatprep.subr.bf16.mxu0 0
    %1180 = vmatpush1.bf16.msra.mxu0 0
    %1181 = vmatprep.subr.bf16.mxu0 0
    %1182 = vmatpush1.bf16.msra.mxu0 0
    %1183 = vmatprep.subr.bf16.mxu0 0
    %1184 = vmatpush1.bf16.msra.mxu0 0
    %1185 = vmatprep.subr.bf16.mxu0 0
    %1186 = vmatpush1.bf16.msra.mxu0 0
    %1187 = vmatprep.subr.bf16.mxu0 0
    %1188 = vmatpush1.bf16.msra.mxu0 0
    %1189 = vmatprep.subr.bf16.mxu0 0
    %1190 = vmatpush1.bf16.msra.mxu0 0
    %1191 = vmatprep.subr.bf16.mxu0 0
    %1192 = vmatpush1.bf16.msra.mxu0 0
    %1193 = vmatprep.subr.bf16.mxu0 0
    %1194 = vmatpush1.bf16.msra.mxu0 0
    %1195 = vmatprep.subr.bf16.mxu0 0
    %1196 = vmatpush1.bf16.msra.mxu0 0
    %1197 = vmatprep.subr.bf16.mxu0 0
    %1198 = vmatpush1.bf16.msra.mxu0 0
    %1199 = vmatprep.mubr.bf16.mxu0 0
    %1200 = vmatmul.mubr.bf16.gmra.mrb[0].mxu0 %v1165
    %v1201 = vpop.f32.mrb[0].mxu0
    %v1202 = vadd.f32 0.0, %v1201
    %v1203 = vpop.f32.mrb[0].mxu0
    %v1204 = vpop.f32.mrb[0].mxu0
    %v1205 = vpop.f32.mrb[0].mxu0
    %1206 = vdwg.mxu0
    %v1208 = vsel %vm209, %v1161, 0
    %1210 = vmatprep.subr.bf16.mxu0 0
    %1211 = vmatpush1.bf16.msra.mxu0 %v395
    %1212 = vmatprep.subr.bf16.mxu0 0
    %1213 = vmatpush1.bf16.msra.mxu0 %v396
    %1214 = vmatprep.subr.bf16.mxu0 0
    %1215 = vmatpush1.bf16.msra.mxu0 0
    %1216 = vmatprep.subr.bf16.mxu0 0
    %1217 = vmatpush1.bf16.msra.mxu0 0
    %1218 = vmatprep.subr.bf16.mxu0 0
    %1219 = vmatpush1.bf16.msra.mxu0 0
    %1220 = vmatprep.subr.bf16.mxu0 0
    %1221 = vmatpush1.bf16.msra.mxu0 0
    %1222 = vmatprep.subr.bf16.mxu0 0
    %1223 = vmatpush1.bf16.msra.mxu0 0
    %1224 = vmatprep.subr.bf16.mxu0 0
    %1225 = vmatpush1.bf16.msra.mxu0 0
    %1226 = vmatprep.subr.bf16.mxu0 0
    %1227 = vmatpush1.bf16.msra.mxu0 0
    %1228 = vmatprep.subr.bf16.mxu0 0
    %1229 = vmatpush1.bf16.msra.mxu0 0
    %1230 = vmatprep.subr.bf16.mxu0 0
    %1231 = vmatpush1.bf16.msra.mxu0 0
    %1232 = vmatprep.subr.bf16.mxu0 0
    %1233 = vmatpush1.bf16.msra.mxu0 0
    %1234 = vmatprep.subr.bf16.mxu0 0
    %1235 = vmatpush1.bf16.msra.mxu0 0
    %1236 = vmatprep.subr.bf16.mxu0 0
    %1237 = vmatpush1.bf16.msra.mxu0 0
    %1238 = vmatprep.subr.bf16.mxu0 0
    %1239 = vmatpush1.bf16.msra.mxu0 0
    %1240 = vmatprep.subr.bf16.mxu0 0
    %1241 = vmatpush1.bf16.msra.mxu0 0
    %1242 = vmatprep.mubr.bf16.mxu0 0
    %1243 = vmatmul.mubr.bf16.gmra.mrb[0].mxu0 %v1208
    %v1244 = vpop.f32.mrb[0].mxu0
    %v1245 = vadd.f32 0.0, %v1244
    %v1246 = vpop.f32.mrb[0].mxu0
    %v1247 = vpop.f32.mrb[0].mxu0
    %v1248 = vpop.f32.mrb[0].mxu0
    %1249 = vdwg.mxu0
    %v1251 = vsel %vm209, %v1162, 0
    %1253 = vmatprep.subr.bf16.mxu0 0
    %1254 = vmatpush1.bf16.msra.mxu0 %v397
    %1255 = vmatprep.subr.bf16.mxu0 0
    %1256 = vmatpush1.bf16.msra.mxu0 %v398
    %1257 = vmatprep.subr.bf16.mxu0 0
    %1258 = vmatpush1.bf16.msra.mxu0 0
    %1259 = vmatprep.subr.bf16.mxu0 0
    %1260 = vmatpush1.bf16.msra.mxu0 0
    %1261 = vmatprep.subr.bf16.mxu0 0
    %1262 = vmatpush1.bf16.msra.mxu0 0
    %1263 = vmatprep.subr.bf16.mxu0 0
    %1264 = vmatpush1.bf16.msra.mxu0 0
    %1265 = vmatprep.subr.bf16.mxu0 0
    %1266 = vmatpush1.bf16.msra.mxu0 0
    %1267 = vmatprep.subr.bf16.mxu0 0
    %1268 = vmatpush1.bf16.msra.mxu0 0
    %1269 = vmatprep.subr.bf16.mxu0 0
    %1270 = vmatpush1.bf16.msra.mxu0 0
    %1271 = vmatprep.subr.bf16.mxu0 0
    %1272 = vmatpush1.bf16.msra.mxu0 0
    %1273 = vmatprep.subr.bf16.mxu0 0
    %1274 = vmatpush1.bf16.msra.mxu0 0
    %1275 = vmatprep.subr.bf16.mxu0 0
    %1276 = vmatpush1.bf16.msra.mxu0 0
    %1277 = vmatprep.subr.bf16.mxu0 0
    %1278 = vmatpush1.bf16.msra.mxu0 0
    %1279 = vmatprep.subr.bf16.mxu0 0
    %1280 = vmatpush1.bf16.msra.mxu0 0
    %1281 = vmatprep.subr.bf16.mxu0 0
    %1282 = vmatpush1.bf16.msra.mxu0 0
    %1283 = vmatprep.subr.bf16.mxu0 0
    %1284 = vmatpush1.bf16.msra.mxu0 0
    %1285 = vmatprep.mubr.bf16.mxu0 0
    %1286 = vmatmul.mubr.bf16.gmra.mrb[0].mxu0 %v1251
    %v1287 = vpop.f32.mrb[0].mxu0
    %v1288 = vadd.f32 0.0, %v1287
    %v1289 = vpop.f32.mrb[0].mxu0
    %v1290 = vpop.f32.mrb[0].mxu0
    %v1291 = vpop.f32.mrb[0].mxu0
    %1292 = vdwg.mxu0
    %v1294 = vsel %vm209, %v1163, 0
    %1296 = vmatprep.subr.bf16.mxu0 0
    %1297 = vmatpush1.bf16.msra.mxu0 %v399
    %1298 = vmatprep.subr.bf16.mxu0 0
    %1299 = vmatpush1.bf16.msra.mxu0 %v400
    %1300 = vmatprep.subr.bf16.mxu0 0
    %1301 = vmatpush1.bf16.msra.mxu0 0
    %1302 = vmatprep.subr.bf16.mxu0 0
    %1303 = vmatpush1.bf16.msra.mxu0 0
    %1304 = vmatprep.subr.bf16.mxu0 0
    %1305 = vmatpush1.bf16.msra.mxu0 0
    %1306 = vmatprep.subr.bf16.mxu0 0
    %1307 = vmatpush1.bf16.msra.mxu0 0
    %1308 = vmatprep.subr.bf16.mxu0 0
    %1309 = vmatpush1.bf16.msra.mxu0 0
    %1310 = vmatprep.subr.bf16.mxu0 0
    %1311 = vmatpush1.bf16.msra.mxu0 0
    %1312 = vmatprep.subr.bf16.mxu0 0
    %1313 = vmatpush1.bf16.msra.mxu0 0
    %1314 = vmatprep.subr.bf16.mxu0 0
    %1315 = vmatpush1.bf16.msra.mxu0 0
    %1316 = vmatprep.subr.bf16.mxu0 0
    %1317 = vmatpush1.bf16.msra.mxu0 0
    %1318 = vmatprep.subr.bf16.mxu0 0
    %1319 = vmatpush1.bf16.msra.mxu0 0
    %1320 = vmatprep.subr.bf16.mxu0 0
    %1321 = vmatpush1.bf16.msra.mxu0 0
    %1322 = vmatprep.subr.bf16.mxu0 0
    %1323 = vmatpush1.bf16.msra.mxu0 0
    %1324 = vmatprep.subr.bf16.mxu0 0
    %1325 = vmatpush1.bf16.msra.mxu0 0
    %1326 = vmatprep.subr.bf16.mxu0 0
    %1327 = vmatpush1.bf16.msra.mxu0 0
    %1328 = vmatprep.mubr.bf16.mxu0 0
    %1329 = vmatmul.mubr.bf16.gmra.mrb[0].mxu0 %v1294
    %v1330 = vpop.f32.mrb[0].mxu0
    %v1331 = vadd.f32 0.0, %v1330
    %v1332 = vpop.f32.mrb[0].mxu0
    %v1333 = vpop.f32.mrb[0].mxu0
    %v1334 = vpop.f32.mrb[0].mxu0
    %1335 = vdwg.mxu0
    %v1336 = vsel %vm656, %v1202, -inf
    %1337 = vmax.xlane.f32.xlu0 %v1336
    %v1338 = vpop.xlane.xlu0 %1337
    %v1339 = vsel %vm656, %v1245, -inf
    %1340 = vmax.xlane.f32.xlu0 %v1339
    %v1341 = vpop.xlane.xlu0 %1340
    %v1342 = vsel %vm656, %v1288, -inf
    %1343 = vmax.xlane.f32.xlu0 %v1342
    %v1344 = vpop.xlane.xlu0 %1343
    %v1345 = vsel %vm656, %v1331, -inf
    %1346 = vmax.xlane.f32.xlu0 %v1345
    %v1347 = vpop.xlane.xlu0 %1346
    %v1348 = vsub.f32 %v1202, %v1338
    %v1349 = vsub.f32 %v1245, %v1341
    %v1350 = vsub.f32 %v1288, %v1344
    %v1351 = vsub.f32 %v1331, %v1347
    %v1352 = vmul.f32 %v1348, 1.442695
    %v1353 = vpow.pop %v1352
    %v1354 = vmul.f32 %v1349, 1.442695
    %v1355 = vpow.pop %v1354
    %v1356 = vmul.f32 %v1350, 1.442695
    %v1357 = vpow.pop %v1356
    %v1358 = vmul.f32 %v1351, 1.442695
    %v1359 = vpow.pop %v1358
    %v1360 = vpack.c.bf16 %v1353, %v1353
    %v1361 = vpack.c.bf16 %v1355, %v1355
    %v1362 = vpack.c.bf16 %v1357, %v1357
    %v1363 = vpack.c.bf16 %v1359, %v1359
    %v1365 = vsel %vm656, %v1360, 0
    %1367 = vmatprep.subr.bf16.mxu0 0
    %1368 = vmatpush1.bf16.msra.mxu0 %v693
    %1369 = vmatprep.subr.bf16.mxu0 0
    %1370 = vmatpush1.bf16.msra.mxu0 0
    %1371 = vmatprep.subr.bf16.mxu0 0
    %1372 = vmatpush1.bf16.msra.mxu0 0
    %1373 = vmatprep.subr.bf16.mxu0 0
    %1374 = vmatpush1.bf16.msra.mxu0 0
    %1375 = vmatprep.subr.bf16.mxu0 0
    %1376 = vmatpush1.bf16.msra.mxu0 0
    %1377 = vmatprep.subr.bf16.mxu0 0
    %1378 = vmatpush1.bf16.msra.mxu0 0
    %1379 = vmatprep.subr.bf16.mxu0 0
    %1380 = vmatpush1.bf16.msra.mxu0 0
    %1381 = vmatprep.subr.bf16.mxu0 0
    %1382 = vmatpush1.bf16.msra.mxu0 0
    %1383 = vmatprep.subr.bf16.mxu0 0
    %1384 = vmatpush1.bf16.msra.mxu0 0
    %1385 = vmatprep.subr.bf16.mxu0 0
    %1386 = vmatpush1.bf16.msra.mxu0 0
    %1387 = vmatprep.subr.bf16.mxu0 0
    %1388 = vmatpush1.bf16.msra.mxu0 0
    %1389 = vmatprep.subr.bf16.mxu0 0
    %1390 = vmatpush1.bf16.msra.mxu0 0
    %1391 = vmatprep.subr.bf16.mxu0 0
    %1392 = vmatpush1.bf16.msra.mxu0 0
    %1393 = vmatprep.subr.bf16.mxu0 0
    %1394 = vmatpush1.bf16.msra.mxu0 0
    %1395 = vmatprep.subr.bf16.mxu0 0
    %1396 = vmatpush1.bf16.msra.mxu0 0
    %1397 = vmatprep.subr.bf16.mxu0 0
    %1398 = vmatpush1.bf16.msra.mxu0 0
    %1399 = vmatprep.mubr.bf16.mxu0 0
    %1400 = vmatmul.mubr.bf16.gmra.mrb[0].mxu0 %v1365
    %v1401 = vpop.f32.mrb[0].mxu0
    %v1402 = vadd.f32 0.0, %v1401
    %v1403 = vpop.f32.mrb[0].mxu0
    %v1404 = vpop.f32.mrb[0].mxu0
    %v1405 = vpop.f32.mrb[0].mxu0
    %1406 = vdwg.mxu0
    %v1408 = vsel %vm656, %v1361, 0
    %1410 = vmatprep.subr.bf16.mxu0 0
    %1411 = vmatpush1.bf16.msra.mxu0 %v742
    %1412 = vmatprep.subr.bf16.mxu0 0
    %1413 = vmatpush1.bf16.msra.mxu0 0
    %1414 = vmatprep.subr.bf16.mxu0 0
    %1415 = vmatpush1.bf16.msra.mxu0 0
    %1416 = vmatprep.subr.bf16.mxu0 0
    %1417 = vmatpush1.bf16.msra.mxu0 0
    %1418 = vmatprep.subr.bf16.mxu0 0
    %1419 = vmatpush1.bf16.msra.mxu0 0
    %1420 = vmatprep.subr.bf16.mxu0 0
    %1421 = vmatpush1.bf16.msra.mxu0 0
    %1422 = vmatprep.subr.bf16.mxu0 0
    %1423 = vmatpush1.bf16.msra.mxu0 0
    %1424 = vmatprep.subr.bf16.mxu0 0
    %1425 = vmatpush1.bf16.msra.mxu0 0
    %1426 = vmatprep.subr.bf16.mxu0 0
    %1427 = vmatpush1.bf16.msra.mxu0 0
    %1428 = vmatprep.subr.bf16.mxu0 0
    %1429 = vmatpush1.bf16.msra.mxu0 0
    %1430 = vmatprep.subr.bf16.mxu0 0
    %1431 = vmatpush1.bf16.msra.mxu0 0
    %1432 = vmatprep.subr.bf16.mxu0 0
    %1433 = vmatpush1.bf16.msra.mxu0 0
    %1434 = vmatprep.subr.bf16.mxu0 0
    %1435 = vmatpush1.bf16.msra.mxu0 0
    %1436 = vmatprep.subr.bf16.mxu0 0
    %1437 = vmatpush1.bf16.msra.mxu0 0
    %1438 = vmatprep.subr.bf16.mxu0 0
    %1439 = vmatpush1.bf16.msra.mxu0 0
    %1440 = vmatprep.subr.bf16.mxu0 0
    %1441 = vmatpush1.bf16.msra.mxu0 0
    %1442 = vmatprep.mubr.bf16.mxu0 0
    %1443 = vmatmul.mubr.bf16.gmra.mrb[0].mxu0 %v1408
    %v1444 = vpop.f32.mrb[0].mxu0
    %v1445 = vadd.f32 0.0, %v1444
    %v1446 = vpop.f32.mrb[0].mxu0
    %v1447 = vpop.f32.mrb[0].mxu0
    %v1448 = vpop.f32.mrb[0].mxu0
    %1449 = vdwg.mxu0
    %v1451 = vsel %vm656, %v1362, 0
    %1453 = vmatprep.subr.bf16.mxu0 0
    %1454 = vmatpush1.bf16.msra.mxu0 %v791
    %1455 = vmatprep.subr.bf16.mxu0 0
    %1456 = vmatpush1.bf16.msra.mxu0 0
    %1457 = vmatprep.subr.bf16.mxu0 0
    %1458 = vmatpush1.bf16.msra.mxu0 0
    %1459 = vmatprep.subr.bf16.mxu0 0
    %1460 = vmatpush1.bf16.msra.mxu0 0
    %1461 = vmatprep.subr.bf16.mxu0 0
    %1462 = vmatpush1.bf16.msra.mxu0 0
    %1463 = vmatprep.subr.bf16.mxu0 0
    %1464 = vmatpush1.bf16.msra.mxu0 0
    %1465 = vmatprep.subr.bf16.mxu0 0
    %1466 = vmatpush1.bf16.msra.mxu0 0
    %1467 = vmatprep.subr.bf16.mxu0 0
    %1468 = vmatpush1.bf16.msra.mxu0 0
    %1469 = vmatprep.subr.bf16.mxu0 0
    %1470 = vmatpush1.bf16.msra.mxu0 0
    %1471 = vmatprep.subr.bf16.mxu0 0
    %1472 = vmatpush1.bf16.msra.mxu0 0
    %1473 = vmatprep.subr.bf16.mxu0 0
    %1474 = vmatpush1.bf16.msra.mxu0 0
    %1475 = vmatprep.subr.bf16.mxu0 0
    %1476 = vmatpush1.bf16.msra.mxu0 0
    %1477 = vmatprep.subr.bf16.mxu0 0
    %1478 = vmatpush1.bf16.msra.mxu0 0
    %1479 = vmatprep.subr.bf16.mxu0 0
    %1480 = vmatpush1.bf16.msra.mxu0 0
    %1481 = vmatprep.subr.bf16.mxu0 0
    %1482 = vmatpush1.bf16.msra.mxu0 0
    %1483 = vmatprep.subr.bf16.mxu0 0
    %1484 = vmatpush1.bf16.msra.mxu0 0
    %1485 = vmatprep.mubr.bf16.mxu0 0
    %1486 = vmatmul.mubr.bf16.gmra.mrb[0].mxu0 %v1451
    %v1487 = vpop.f32.mrb[0].mxu0
    %v1488 = vadd.f32 0.0, %v1487
    %v1489 = vpop.f32.mrb[0].mxu0
    %v1490 = vpop.f32.mrb[0].mxu0
    %v1491 = vpop.f32.mrb[0].mxu0
    %1492 = vdwg.mxu0
    %v1494 = vsel %vm656, %v1363, 0
    %1496 = vmatprep.subr.bf16.mxu0 0
    %1497 = vmatpush1.bf16.msra.mxu0 %v840
    %1498 = vmatprep.subr.bf16.mxu0 0
    %1499 = vmatpush1.bf16.msra.mxu0 0
    %1500 = vmatprep.subr.bf16.mxu0 0
    %1501 = vmatpush1.bf16.msra.mxu0 0
    %1502 = vmatprep.subr.bf16.mxu0 0
    %1503 = vmatpush1.bf16.msra.mxu0 0
    %1504 = vmatprep.subr.bf16.mxu0 0
    %1505 = vmatpush1.bf16.msra.mxu0 0
    %1506 = vmatprep.subr.bf16.mxu0 0
    %1507 = vmatpush1.bf16.msra.mxu0 0
    %1508 = vmatprep.subr.bf16.mxu0 0
    %1509 = vmatpush1.bf16.msra.mxu0 0
    %1510 = vmatprep.subr.bf16.mxu0 0
    %1511 = vmatpush1.bf16.msra.mxu0 0
    %1512 = vmatprep.subr.bf16.mxu0 0
    %1513 = vmatpush1.bf16.msra.mxu0 0
    %1514 = vmatprep.subr.bf16.mxu0 0
    %1515 = vmatpush1.bf16.msra.mxu0 0
    %1516 = vmatprep.subr.bf16.mxu0 0
    %1517 = vmatpush1.bf16.msra.mxu0 0
    %1518 = vmatprep.subr.bf16.mxu0 0
    %1519 = vmatpush1.bf16.msra.mxu0 0
    %1520 = vmatprep.subr.bf16.mxu0 0
    %1521 = vmatpush1.bf16.msra.mxu0 0
    %1522 = vmatprep.subr.bf16.mxu0 0
    %1523 = vmatpush1.bf16.msra.mxu0 0
    %1524 = vmatprep.subr.bf16.mxu0 0
    %1525 = vmatpush1.bf16.msra.mxu0 0
    %1526 = vmatprep.subr.bf16.mxu0 0
    %1527 = vmatpush1.bf16.msra.mxu0 0
    %1528 = vmatprep.mubr.bf16.mxu0 0
    %1529 = vmatmul.mubr.bf16.gmra.mrb[0].mxu0 %v1494
    %v1530 = vpop.f32.mrb[0].mxu0
    %v1531 = vadd.f32 0.0, %v1530
    %v1532 = vpop.f32.mrb[0].mxu0
    %v1533 = vpop.f32.mrb[0].mxu0
    %v1534 = vpop.f32.mrb[0].mxu0
    %1535 = vdwg.mxu0
    %v1536 = vsel %vm656, %v1353, 0.0
    %1537 = vadd.xlane.f32.xlu0 %v1536
    %v1538 = vpop.xlane.xlu0 %1537
    %v1539 = vsel %vm656, %v1355, 0.0
    %1540 = vadd.xlane.f32.xlu0 %v1539
    %v1541 = vpop.xlane.xlu0 %1540
    %v1542 = vsel %vm656, %v1357, 0.0
    %1543 = vadd.xlane.f32.xlu0 %v1542
    %v1544 = vpop.xlane.xlu0 %1543
    %v1545 = vsel %vm656, %v1359, 0.0
    %1546 = vadd.xlane.f32.xlu0 %v1545
    %v1547 = vpop.xlane.xlu0 %1546
    %v1548 = vrcp.pop %v1538
    %v1549 = vrcp.pop %v1541
    %v1550 = vrcp.pop %v1544
    %v1551 = vrcp.pop %v1547
    %v1552 = vmul.f32 %v1402, %v1548
    %v1553 = vmul.f32 %v1445, %v1549
    %v1554 = vmul.f32 %v1488, %v1550
    %v1555 = vmul.f32 %v1531, %v1551
    %v1556 = vpack.c.bf16 %v1553, %v1552
    %v1557 = vpack.c.bf16 %v1555, %v1554
    %v1559 = vsel %vm209, %v1556, 0
    %v1562 = vsel %vm209, %v1557, 0
    %1564 = vmatprep.subr.bf16.mxu0 0
    %1565 = vmatpush1.bf16.msra.mxu0 %v912
    %1566 = vmatprep.subr.bf16.mxu0 0
    %1567 = vmatpush1.bf16.msra.mxu0 %v913
    %1568 = vmatprep.subr.bf16.mxu0 0
    %1569 = vmatpush1.bf16.msra.mxu0 0
    %1570 = vmatprep.subr.bf16.mxu0 0
    %1571 = vmatpush1.bf16.msra.mxu0 0
    %1572 = vmatprep.subr.bf16.mxu0 0
    %1573 = vmatpush1.bf16.msra.mxu0 0
    %1574 = vmatprep.subr.bf16.mxu0 0
    %1575 = vmatpush1.bf16.msra.mxu0 0
    %1576 = vmatprep.subr.bf16.mxu0 0
    %1577 = vmatpush1.bf16.msra.mxu0 0
    %1578 = vmatprep.subr.bf16.mxu0 0
    %1579 = vmatpush1.bf16.msra.mxu0 0
    %1580 = vmatprep.subr.bf16.mxu0 0
    %1581 = vmatpush1.bf16.msra.mxu0 0
    %1582 = vmatprep.subr.bf16.mxu0 0
    %1583 = vmatpush1.bf16.msra.mxu0 0
    %1584 = vmatprep.subr.bf16.mxu0 0
    %1585 = vmatpush1.bf16.msra.mxu0 0
    %1586 = vmatprep.subr.bf16.mxu0 0
    %1587 = vmatpush1.bf16.msra.mxu0 0
    %1588 = vmatprep.subr.bf16.mxu0 0
    %1589 = vmatpush1.bf16.msra.mxu0 0
    %1590 = vmatprep.subr.bf16.mxu0 0
    %1591 = vmatpush1.bf16.msra.mxu0 0
    %1592 = vmatprep.subr.bf16.mxu0 0
    %1593 = vmatpush1.bf16.msra.mxu0 0
    %1594 = vmatprep.subr.bf16.mxu0 0
    %1595 = vmatpush1.bf16.msra.mxu0 0
    %1596 = vmatprep.mubr.bf16.mxu0 0
    %1597 = vmatmul.mubr.bf16.gmra.mrb[0].mxu0 %v1559
    %v1598 = vpop.f32.mrb[0].mxu0
    %v1599 = vadd.f32 0.0, %v1598
    %v1600 = vpop.f32.mrb[0].mxu0
    %v1601 = vpop.f32.mrb[0].mxu0
    %v1602 = vadd.f32 0.0, %v1601
    %v1603 = vpop.f32.mrb[0].mxu0
    %1604 = vmatprep.mubr.bf16.mxu0 0
    %1605 = vmatmul.mubr.bf16.gmra.mrb[0].mxu0 %v1562
    %v1606 = vpop.f32.mrb[0].mxu0
    %v1607 = vadd.f32 0.0, %v1606
    %v1608 = vpop.f32.mrb[0].mxu0
    %v1609 = vpop.f32.mrb[0].mxu0
    %v1610 = vadd.f32 0.0, %v1609
    %v1611 = vpop.f32.mrb[0].mxu0
    %1612 = vdwg.mxu0
    %v1613 = vadd.f32 %v1099, %v1599
    %v1614 = vadd.f32 %v1100, %v1602
    %v1615 = vadd.f32 %v1101, %v1607
    %v1616 = vadd.f32 %v1102, %v1610
    %v1617 = vlaneseq
    %v1618 = vshrl.u32 %v1617, 7
    %v1619 = vsub.s32 0, %v1618
    %v1620 = vrot.slane %v1613, %v1619
    %v1621 = vlaneseq
    %v1622 = vshrl.u32 %v1621, 7
    %v1623 = vsub.s32 0, %v1622
    %v1624 = vrot.slane %v1614, %v1623
    %v1625 = vlaneseq
    %v1626 = vshrl.u32 %v1625, 7
    %v1627 = vsub.s32 0, %v1626
    %v1628 = vrot.slane %v1615, %v1627
    %v1629 = vlaneseq
    %v1630 = vshrl.u32 %v1629, 7
    %v1631 = vsub.s32 0, %v1630
    %v1632 = vrot.slane %v1616, %v1631
    %v1633 = vlaneseq
    %v1634 = vshrl.u32 %v1633, 7
    %v1635 = vsub.s32 7, %v1634
    %v1636 = vrot.slane %v1613, %v1635
    %v1637 = vlaneseq
    %v1638 = vshrl.u32 %v1637, 7
    %v1639 = vsub.s32 7, %v1638
    %v1640 = vrot.slane %v1614, %v1639
    %v1641 = vlaneseq
    %v1642 = vshrl.u32 %v1641, 7
    %v1643 = vsub.s32 7, %v1642
    %v1644 = vrot.slane %v1615, %v1643
    %v1645 = vlaneseq
    %v1646 = vshrl.u32 %v1645, 7
    %v1647 = vsub.s32 7, %v1646
    %v1648 = vrot.slane %v1616, %v1647
    %v1653 = vrot.slane %v1613, 1
    %v1654 = vrot.slane %v1614, 1
    %v1655 = vrot.slane %v1615, 1
    %v1656 = vrot.slane %v1616, 1
    %v1661 = vsel %vm1019, %v1653, %v1653
    %v1662 = vsel %vm1019, %v1654, %v1654
    %v1663 = vsel %vm1019, %v1655, %v1655
    %v1664 = vsel %vm1019, %v1656, %v1656
    %v1665 = vsel %vm407, %v1636, %v1661
    %v1666 = vsel %vm407, %v1640, %v1662
    %v1667 = vsel %vm407, %v1644, %v1663
    %v1668 = vsel %vm407, %v1648, %v1664
    %v1669 = vrot.slane %v1613, 7
    %v1670 = vrot.slane %v1614, 7
    %v1671 = vrot.slane %v1615, 7
    %v1672 = vrot.slane %v1616, 7
    %v1677 = vsel %vm1036, %v1669, %v1669
    %v1678 = vsel %vm1036, %v1670, %v1670
    %v1679 = vsel %vm1036, %v1671, %v1671
    %v1680 = vsel %vm1036, %v1672, %v1672
    %v1681 = vsel %vm409, %v1620, %v1677
    %v1682 = vsel %vm409, %v1624, %v1678
    %v1683 = vsel %vm409, %v1628, %v1679
    %v1684 = vsel %vm409, %v1632, %v1680
    %v1685 = vadd.f32 %v1613, %v1665
    %v1686 = vadd.f32 %v1614, %v1666
    %v1687 = vadd.f32 %v1615, %v1667
    %v1688 = vadd.f32 %v1616, %v1668
    %v1689 = vadd.f32 %v1685, %v1681
    %v1690 = vadd.f32 %v1686, %v1682
    %v1691 = vadd.f32 %v1687, %v1683
    %v1692 = vadd.f32 %v1688, %v1684
    %v1693 = vrot.slane %v1613, 2
    %v1694 = vrot.slane %v1614, 2
    %v1695 = vrot.slane %v1615, 2
    %v1696 = vrot.slane %v1616, 2
    %v1701 = vsel %vm1061, %v1693, %v1693
    %v1702 = vsel %vm1061, %v1694, %v1694
    %v1703 = vsel %vm1061, %v1695, %v1695
    %v1704 = vsel %vm1061, %v1696, %v1696
    %v1705 = vsel %vm408, %v1636, %v1701
    %v1706 = vsel %vm408, %v1640, %v1702
    %v1707 = vsel %vm408, %v1644, %v1703
    %v1708 = vsel %vm408, %v1648, %v1704
    %v1709 = vrot.slane %v1613, 6
    %v1710 = vrot.slane %v1614, 6
    %v1711 = vrot.slane %v1615, 6
    %v1712 = vrot.slane %v1616, 6
    %v1717 = vsel %vm1078, %v1709, %v1709
    %v1718 = vsel %vm1078, %v1710, %v1710
    %v1719 = vsel %vm1078, %v1711, %v1711
    %v1720 = vsel %vm1078, %v1712, %v1712
    %v1721 = vsel %vm410, %v1620, %v1717
    %v1722 = vsel %vm410, %v1624, %v1718
    %v1723 = vsel %vm410, %v1628, %v1719
    %v1724 = vsel %vm410, %v1632, %v1720
    %v1725 = vadd.f32 %v1689, %v1705
    %v1726 = vadd.f32 %v1690, %v1706
    %v1727 = vadd.f32 %v1691, %v1707
    %v1728 = vadd.f32 %v1692, %v1708
    %v1729 = vadd.f32 %v1725, %v1721
    %v1730 = vadd.f32 %v1726, %v1722
    %v1731 = vadd.f32 %v1727, %v1723
    %v1732 = vadd.f32 %v1728, %v1724
    %v1733 = vmul.f32 %v1729, 0.2
    %v1734 = vmul.f32 %v1730, 0.2
    %v1735 = vmul.f32 %v1731, 0.2
    %v1736 = vmul.f32 %v1732, 0.2
    %v1737 = vsub.f32 %v1613, %v1733
    %v1738 = vsub.f32 %v1614, %v1734
    %v1739 = vsub.f32 %v1615, %v1735
    %v1740 = vsub.f32 %v1616, %v1736
    %v1741 = vpack.c.bf16 %v1738, %v1737
    %v1742 = vpack.c.bf16 %v1740, %v1739
    %v1747 = vunpack.c.l.b16 %v163
    %v1748 = vunpack.c.l.b16 %v164
    %v1749 = vunpack.c.l.b16 %v165
    %v1750 = vunpack.c.l.b16 %v166
    %v1751 = vpack.c.b16 %v1748, %v1747
    %v1752 = vpack.c.b16 %v1750, %v1749
    %v1756 = vsel %vm209, %v1741, 0
    %v1759 = vsel %vm209, %v1742, 0
    %1761 = vmatprep.subr.bf16.mxu0 0
    %1762 = vmatpush1.bf16.msra.mxu0 %v1751
    %1763 = vmatprep.subr.bf16.mxu0 0
    %1764 = vmatpush1.bf16.msra.mxu0 %v1752
    %1765 = vmatprep.subr.bf16.mxu0 0
    %1766 = vmatpush1.bf16.msra.mxu0 0
    %1767 = vmatprep.subr.bf16.mxu0 0
    %1768 = vmatpush1.bf16.msra.mxu0 0
    %1769 = vmatprep.subr.bf16.mxu0 0
    %1770 = vmatpush1.bf16.msra.mxu0 0
    %1771 = vmatprep.subr.bf16.mxu0 0
    %1772 = vmatpush1.bf16.msra.mxu0 0
    %1773 = vmatprep.subr.bf16.mxu0 0
    %1774 = vmatpush1.bf16.msra.mxu0 0
    %1775 = vmatprep.subr.bf16.mxu0 0
    %1776 = vmatpush1.bf16.msra.mxu0 0
    %1777 = vmatprep.subr.bf16.mxu0 0
    %1778 = vmatpush1.bf16.msra.mxu0 0
    %1779 = vmatprep.subr.bf16.mxu0 0
    %1780 = vmatpush1.bf16.msra.mxu0 0
    %1781 = vmatprep.subr.bf16.mxu0 0
    %1782 = vmatpush1.bf16.msra.mxu0 0
    %1783 = vmatprep.subr.bf16.mxu0 0
    %1784 = vmatpush1.bf16.msra.mxu0 0
    %1785 = vmatprep.subr.bf16.mxu0 0
    %1786 = vmatpush1.bf16.msra.mxu0 0
    %1787 = vmatprep.subr.bf16.mxu0 0
    %1788 = vmatpush1.bf16.msra.mxu0 0
    %1789 = vmatprep.subr.bf16.mxu0 0
    %1790 = vmatpush1.bf16.msra.mxu0 0
    %1791 = vmatprep.subr.bf16.mxu0 0
    %1792 = vmatpush1.bf16.msra.mxu0 0
    %1793 = vmatprep.mubr.bf16.mxu0 0
    %1794 = vmatmul.mubr.bf16.gmra.mrb[0].mxu0 %v1756
    %v1795 = vpop.f32.mrb[0].mxu0
    %v1796 = vadd.f32 0.0, %v1795
    %v1797 = vpop.f32.mrb[0].mxu0
    %v1798 = vpop.f32.mrb[0].mxu0
    %v1799 = vadd.f32 0.0, %v1798
    %v1800 = vpop.f32.mrb[0].mxu0
    %1801 = vmatprep.mubr.bf16.mxu0 0
    %1802 = vmatmul.mubr.bf16.gmra.mrb[0].mxu0 %v1759
    %v1803 = vpop.f32.mrb[0].mxu0
    %v1804 = vadd.f32 0.0, %v1803
    %v1805 = vpop.f32.mrb[0].mxu0
    %v1806 = vpop.f32.mrb[0].mxu0
    %v1807 = vadd.f32 0.0, %v1806
    %v1808 = vpop.f32.mrb[0].mxu0
    %1809 = vdwg.mxu0
    %v1810 = vmax.f32 %v1796, 0.0
    %v1811 = vmax.f32 %v1799, 0.0
    %v1812 = vmax.f32 %v1804, 0.0
    %v1813 = vmax.f32 %v1807, 0.0
    %v1814 = vpack.c.bf16 %v1811, %v1810
    %v1815 = vpack.c.bf16 %v1813, %v1812
    %v1832 = vunpack.c.l.b16 %v167
    %v1833 = vunpack.c.l.b16 %v168
    %v1834 = vunpack.c.l.b16 %v169
    %v1835 = vunpack.c.l.b16 %v170
    %v1836 = vunpack.c.l.b16 %v171
    %v1837 = vunpack.c.l.b16 %v172
    %v1838 = vunpack.c.l.b16 %v173
    %v1839 = vunpack.c.l.b16 %v174
    %v1840 = vunpack.c.l.b16 %v175
    %v1841 = vunpack.c.l.b16 %v176
    %v1842 = vunpack.c.l.b16 %v177
    %v1843 = vunpack.c.l.b16 %v178
    %v1844 = vunpack.c.l.b16 %v179
    %v1845 = vunpack.c.l.b16 %v180
    %v1846 = vunpack.c.l.b16 %v181
    %v1847 = vunpack.c.l.b16 %v182
    %v1848 = vpack.c.b16 %v1833, %v1832
    %v1849 = vpack.c.b16 %v1835, %v1834
    %v1850 = vpack.c.b16 %v1837, %v1836
    %v1851 = vpack.c.b16 %v1839, %v1838
    %v1852 = vpack.c.b16 %v1841, %v1840
    %v1853 = vpack.c.b16 %v1843, %v1842
    %v1854 = vpack.c.b16 %v1845, %v1844
    %v1855 = vpack.c.b16 %v1847, %v1846
    %1864 = vmatprep.subr.bf16.mxu0 0
    %1865 = vmatpush1.bf16.msra.mxu0 %v1848
    %1866 = vmatprep.subr.bf16.mxu0 0
    %1867 = vmatpush1.bf16.msra.mxu0 %v1849
    %1868 = vmatprep.subr.bf16.mxu0 0
    %1869 = vmatpush1.bf16.msra.mxu0 %v1850
    %1870 = vmatprep.subr.bf16.mxu0 0
    %1871 = vmatpush1.bf16.msra.mxu0 %v1851
    %1872 = vmatprep.subr.bf16.mxu0 0
    %1873 = vmatpush1.bf16.msra.mxu0 %v1852
    %1874 = vmatprep.subr.bf16.mxu0 0
    %1875 = vmatpush1.bf16.msra.mxu0 %v1853
    %1876 = vmatprep.subr.bf16.mxu0 0
    %1877 = vmatpush1.bf16.msra.mxu0 %v1854
    %1878 = vmatprep.subr.bf16.mxu0 0
    %1879 = vmatpush1.bf16.msra.mxu0 %v1855
    %1880 = vmatprep.subr.bf16.mxu0 0
    %1881 = vmatpush1.bf16.msra.mxu0 0
    %1882 = vmatprep.subr.bf16.mxu0 0
    %1883 = vmatpush1.bf16.msra.mxu0 0
    %1884 = vmatprep.subr.bf16.mxu0 0
    %1885 = vmatpush1.bf16.msra.mxu0 0
    %1886 = vmatprep.subr.bf16.mxu0 0
    %1887 = vmatpush1.bf16.msra.mxu0 0
    %1888 = vmatprep.subr.bf16.mxu0 0
    %1889 = vmatpush1.bf16.msra.mxu0 0
    %1890 = vmatprep.subr.bf16.mxu0 0
    %1891 = vmatpush1.bf16.msra.mxu0 0
    %1892 = vmatprep.subr.bf16.mxu0 0
    %1893 = vmatpush1.bf16.msra.mxu0 0
    %1894 = vmatprep.subr.bf16.mxu0 0
    %1895 = vmatpush1.bf16.msra.mxu0 0
    %1896 = vmatprep.mubr.bf16.mxu0 0
    %1897 = vmatmul.mubr.bf16.gmra.mrb[0].mxu0 %v1814
    %v1898 = vpop.f32.mrb[0].mxu0
    %v1899 = vadd.f32 0.0, %v1898
    %v1900 = vpop.f32.mrb[0].mxu0
    %v1901 = vpop.f32.mrb[0].mxu0
    %v1902 = vadd.f32 0.0, %v1901
    %v1903 = vpop.f32.mrb[0].mxu0
    %1904 = vmatprep.mubr.bf16.mxu0 0
    %1905 = vmatmul.mubr.bf16.gmra.mrb[0].mxu0 %v1815
    %v1906 = vpop.f32.mrb[0].mxu0
    %v1907 = vadd.f32 0.0, %v1906
    %v1908 = vpop.f32.mrb[0].mxu0
    %v1909 = vpop.f32.mrb[0].mxu0
    %v1910 = vadd.f32 0.0, %v1909
    %v1911 = vpop.f32.mrb[0].mxu0
    %1912 = vdwg.mxu0
    %v1913 = vadd.f32 %v1737, %v1899
    %v1914 = vadd.f32 %v1738, %v1902
    %v1915 = vadd.f32 %v1739, %v1907
    %v1916 = vadd.f32 %v1740, %v1910
    %v1917 = vlaneseq
    %v1918 = vshrl.u32 %v1917, 7
    %v1919 = vsub.s32 0, %v1918
    %v1920 = vrot.slane %v1913, %v1919
    %v1921 = vlaneseq
    %v1922 = vshrl.u32 %v1921, 7
    %v1923 = vsub.s32 0, %v1922
    %v1924 = vrot.slane %v1914, %v1923
    %v1925 = vlaneseq
    %v1926 = vshrl.u32 %v1925, 7
    %v1927 = vsub.s32 0, %v1926
    %v1928 = vrot.slane %v1915, %v1927
    %v1929 = vlaneseq
    %v1930 = vshrl.u32 %v1929, 7
    %v1931 = vsub.s32 0, %v1930
    %v1932 = vrot.slane %v1916, %v1931
    %v1933 = vlaneseq
    %v1934 = vshrl.u32 %v1933, 7
    %v1935 = vsub.s32 7, %v1934
    %v1936 = vrot.slane %v1913, %v1935
    %v1937 = vlaneseq
    %v1938 = vshrl.u32 %v1937, 7
    %v1939 = vsub.s32 7, %v1938
    %v1940 = vrot.slane %v1914, %v1939
    %v1941 = vlaneseq
    %v1942 = vshrl.u32 %v1941, 7
    %v1943 = vsub.s32 7, %v1942
    %v1944 = vrot.slane %v1915, %v1943
    %v1945 = vlaneseq
    %v1946 = vshrl.u32 %v1945, 7
    %v1947 = vsub.s32 7, %v1946
    %v1948 = vrot.slane %v1916, %v1947
    %v1953 = vrot.slane %v1913, 1
    %v1954 = vrot.slane %v1914, 1
    %v1955 = vrot.slane %v1915, 1
    %v1956 = vrot.slane %v1916, 1
    %v1961 = vsel %vm1019, %v1953, %v1953
    %v1962 = vsel %vm1019, %v1954, %v1954
    %v1963 = vsel %vm1019, %v1955, %v1955
    %v1964 = vsel %vm1019, %v1956, %v1956
    %v1965 = vsel %vm407, %v1936, %v1961
    %v1966 = vsel %vm407, %v1940, %v1962
    %v1967 = vsel %vm407, %v1944, %v1963
    %v1968 = vsel %vm407, %v1948, %v1964
    %v1969 = vrot.slane %v1913, 7
    %v1970 = vrot.slane %v1914, 7
    %v1971 = vrot.slane %v1915, 7
    %v1972 = vrot.slane %v1916, 7
    %v1977 = vsel %vm1036, %v1969, %v1969
    %v1978 = vsel %vm1036, %v1970, %v1970
    %v1979 = vsel %vm1036, %v1971, %v1971
    %v1980 = vsel %vm1036, %v1972, %v1972
    %v1981 = vsel %vm409, %v1920, %v1977
    %v1982 = vsel %vm409, %v1924, %v1978
    %v1983 = vsel %vm409, %v1928, %v1979
    %v1984 = vsel %vm409, %v1932, %v1980
    %v1985 = vadd.f32 %v1913, %v1965
    %v1986 = vadd.f32 %v1914, %v1966
    %v1987 = vadd.f32 %v1915, %v1967
    %v1988 = vadd.f32 %v1916, %v1968
    %v1989 = vadd.f32 %v1985, %v1981
    %v1990 = vadd.f32 %v1986, %v1982
    %v1991 = vadd.f32 %v1987, %v1983
    %v1992 = vadd.f32 %v1988, %v1984
    %v1993 = vrot.slane %v1913, 2
    %v1994 = vrot.slane %v1914, 2
    %v1995 = vrot.slane %v1915, 2
    %v1996 = vrot.slane %v1916, 2
    %v2001 = vsel %vm1061, %v1993, %v1993
    %v2002 = vsel %vm1061, %v1994, %v1994
    %v2003 = vsel %vm1061, %v1995, %v1995
    %v2004 = vsel %vm1061, %v1996, %v1996
    %v2005 = vsel %vm408, %v1936, %v2001
    %v2006 = vsel %vm408, %v1940, %v2002
    %v2007 = vsel %vm408, %v1944, %v2003
    %v2008 = vsel %vm408, %v1948, %v2004
    %v2009 = vrot.slane %v1913, 6
    %v2010 = vrot.slane %v1914, 6
    %v2011 = vrot.slane %v1915, 6
    %v2012 = vrot.slane %v1916, 6
    %v2017 = vsel %vm1078, %v2009, %v2009
    %v2018 = vsel %vm1078, %v2010, %v2010
    %v2019 = vsel %vm1078, %v2011, %v2011
    %v2020 = vsel %vm1078, %v2012, %v2012
    %v2021 = vsel %vm410, %v1920, %v2017
    %v2022 = vsel %vm410, %v1924, %v2018
    %v2023 = vsel %vm410, %v1928, %v2019
    %v2024 = vsel %vm410, %v1932, %v2020
    %v2025 = vadd.f32 %v1989, %v2005
    %v2026 = vadd.f32 %v1990, %v2006
    %v2027 = vadd.f32 %v1991, %v2007
    %v2028 = vadd.f32 %v1992, %v2008
    %v2029 = vadd.f32 %v2025, %v2021
    %v2030 = vadd.f32 %v2026, %v2022
    %v2031 = vadd.f32 %v2027, %v2023
    %v2032 = vadd.f32 %v2028, %v2024
    %v2033 = vmul.f32 %v2029, 0.2
    %v2034 = vmul.f32 %v2030, 0.2
    %v2035 = vmul.f32 %v2031, 0.2
    %v2036 = vmul.f32 %v2032, 0.2
    %v2037 = vsub.f32 %v1913, %v2033
    %v2038 = vsub.f32 %v1914, %v2034
    %v2039 = vsub.f32 %v1915, %v2035
    %v2040 = vsub.f32 %v1916, %v2036
    %2041 = vst.msk [vmem:[#allocation16] sm:$0xff] %vm209, %v2037
    %2042 = vst.msk [vmem:[#allocation16 + $0x8] sm:$0xff] %vm209, %v2038
    %2043 = vst.msk [vmem:[#allocation16 + $0x10] sm:$0xff] %vm209, %v2039
    %2044 = vst.msk [vmem:[#allocation16 + $0x18] sm:$0xff] %vm209, %v2040
    %v2045 = vadd.f32 %v1095, %v1733
    %v2046 = vadd.f32 %v1096, %v1734
    %v2047 = vadd.f32 %v1097, %v1735
    %v2048 = vadd.f32 %v1098, %v1736
    %v2049 = vadd.f32 %v2045, %v2033
    %v2050 = vadd.f32 %v2046, %v2034
    %v2051 = vadd.f32 %v2047, %v2035
    %v2052 = vadd.f32 %v2048, %v2036
    %v2057 = vrot.slane %v2049, 7
    %v2058 = vrot.slane %v2050, 7
    %v2059 = vrot.slane %v2051, 7
    %v2060 = vrot.slane %v2052, 7
    %v2065 = vsel %vm1036, %v2057, %v2057
    %v2066 = vsel %vm1036, %v2058, %v2058
    %v2067 = vsel %vm1036, %v2059, %v2059
    %v2068 = vsel %vm1036, %v2060, %v2060
    %v2069 = vrot.slane %v2049, 1
    %v2070 = vrot.slane %v2050, 1
    %v2071 = vrot.slane %v2051, 1
    %v2072 = vrot.slane %v2052, 1
    %v2077 = vsel %vm1019, %v2069, %v2069
    %v2078 = vsel %vm1019, %v2070, %v2070
    %v2079 = vsel %vm1019, %v2071, %v2071
    %v2080 = vsel %vm1019, %v2072, %v2072
    %2081 = vrot.lane.b32.xlu0 %v2049, 32
    %v2082 = vpop.permute.xlu0 %2081
    %2083 = vrot.lane.b32.xlu0 %v2050, 32
    %v2084 = vpop.permute.xlu0 %2083
    %2085 = vrot.lane.b32.xlu0 %v2051, 32
    %v2086 = vpop.permute.xlu0 %2085
    %2087 = vrot.lane.b32.xlu0 %v2052, 32
    %v2088 = vpop.permute.xlu0 %2087
    %2097 = vrot.lane.b32.xlu0 %v2077, 64
    %v2098 = vpop.permute.xlu0 %2097
    %2099 = vrot.lane.b32.xlu0 %v2078, 64
    %v2100 = vpop.permute.xlu0 %2099
    %2101 = vrot.lane.b32.xlu0 %v2079, 64
    %v2102 = vpop.permute.xlu0 %2101
    %2103 = vrot.lane.b32.xlu0 %v2080, 64
    %v2104 = vpop.permute.xlu0 %2103
    %v2109 = vsel %vm209, %v2065, %v2082
    %v2110 = vsel %vm209, %v2066, %v2084
    %v2111 = vsel %vm209, %v2067, %v2086
    %v2112 = vsel %vm209, %v2068, %v2088
    %vm2113 = vcmask 523264
    %v2114 = vsel %vm2113, %v2109, %v2098
    %v2115 = vsel %vm2113, %v2110, %v2100
    %v2116 = vsel %vm2113, %v2111, %v2102
    %v2117 = vsel %vm2113, %v2112, %v2104
    %v2118 = vpack.c.bf16 %v2115, %v2114
    %v2119 = vpack.c.bf16 %v2117, %v2116
    %v2132 = vunpack.c.l.b16 %v183
    %v2133 = vunpack.c.l.b16 %v184
    %v2134 = vunpack.c.l.b16 %v185
    %v2135 = vunpack.c.l.b16 %v186
    %v2136 = vunpack.c.l.b16 %v187
    %v2137 = vunpack.c.l.b16 %v188
    %v2138 = vunpack.c.l.b16 %v189
    %v2139 = vunpack.c.l.b16 %v190
    %v2140 = vunpack.c.l.b16 %v191
    %v2141 = vunpack.c.l.b16 %v192
    %v2142 = vunpack.c.l.b16 %v193
    %v2143 = vunpack.c.l.b16 %v194
    %v2144 = vpack.c.b16 %v2133, %v2132
    %v2145 = vpack.c.b16 %v2135, %v2134
    %v2146 = vpack.c.b16 %v2137, %v2136
    %v2147 = vpack.c.b16 %v2139, %v2138
    %v2148 = vpack.c.b16 %v2141, %v2140
    %v2149 = vpack.c.b16 %v2143, %v2142
    %vm2156 = vcmask 785408
    %v2158 = vsel %vm2156, %v2118, 0
    %v2161 = vsel %vm2156, %v2119, 0
    %2163 = vmatprep.subr.bf16.mxu0 0
    %2164 = vmatpush1.bf16.msra.mxu0 %v2144
    %2165 = vmatprep.subr.bf16.mxu0 0
    %2166 = vmatpush1.bf16.msra.mxu0 %v2145
    %2167 = vmatprep.subr.bf16.mxu0 0
    %2168 = vmatpush1.bf16.msra.mxu0 %v2146
    %2169 = vmatprep.subr.bf16.mxu0 0
    %2170 = vmatpush1.bf16.msra.mxu0 %v2147
    %2171 = vmatprep.subr.bf16.mxu0 0
    %2172 = vmatpush1.bf16.msra.mxu0 %v2148
    %2173 = vmatprep.subr.bf16.mxu0 0
    %2174 = vmatpush1.bf16.msra.mxu0 %v2149
    %2175 = vmatprep.subr.bf16.mxu0 0
    %2176 = vmatpush1.bf16.msra.mxu0 0
    %2177 = vmatprep.subr.bf16.mxu0 0
    %2178 = vmatpush1.bf16.msra.mxu0 0
    %2179 = vmatprep.subr.bf16.mxu0 0
    %2180 = vmatpush1.bf16.msra.mxu0 0
    %2181 = vmatprep.subr.bf16.mxu0 0
    %2182 = vmatpush1.bf16.msra.mxu0 0
    %2183 = vmatprep.subr.bf16.mxu0 0
    %2184 = vmatpush1.bf16.msra.mxu0 0
    %2185 = vmatprep.subr.bf16.mxu0 0
    %2186 = vmatpush1.bf16.msra.mxu0 0
    %2187 = vmatprep.subr.bf16.mxu0 0
    %2188 = vmatpush1.bf16.msra.mxu0 0
    %2189 = vmatprep.subr.bf16.mxu0 0
    %2190 = vmatpush1.bf16.msra.mxu0 0
    %2191 = vmatprep.subr.bf16.mxu0 0
    %2192 = vmatpush1.bf16.msra.mxu0 0
    %2193 = vmatprep.subr.bf16.mxu0 0
    %2194 = vmatpush1.bf16.msra.mxu0 0
    %2195 = vmatprep.mubr.bf16.mxu0 0
    %2196 = vmatmul.mubr.bf16.gmra.mrb[0].mxu0 %v2158
    %v2197 = vpop.f32.mrb[0].mxu0
    %v2198 = vadd.f32 0.0, %v2197
    %v2199 = vpop.f32.mrb[0].mxu0
    %v2200 = vpop.f32.mrb[0].mxu0
    %v2201 = vadd.f32 0.0, %v2200
    %v2202 = vpop.f32.mrb[0].mxu0
    %2203 = vmatprep.mubr.bf16.mxu0 0
    %2204 = vmatmul.mubr.bf16.gmra.mrb[0].mxu0 %v2161
    %v2205 = vpop.f32.mrb[0].mxu0
    %v2206 = vadd.f32 0.0, %v2205
    %v2207 = vpop.f32.mrb[0].mxu0
    %v2208 = vpop.f32.mrb[0].mxu0
    %v2209 = vadd.f32 0.0, %v2208
    %v2210 = vpop.f32.mrb[0].mxu0
    %2211 = vdwg.mxu0
    %2212 = vst [vmem:[#allocation17] sm:$0xff] %v2198
    %2213 = vst [vmem:[#allocation17 + $0x8] sm:$0xff] %v2201
    %2214 = vst [vmem:[#allocation17 + $0x10] sm:$0xff] %v2206
    %2215 = vst [vmem:[#allocation17 + $0x18] sm:$0xff] %v2209
    // Predicated region
    $region66: #{tpu_custom_call.1} parent=1 // pred_check
      _
    $region67: #{tpu_custom_call.1} parent=1 // pred_check_branch
      %2217 = sbr.rel (0) target = $region69
    $region68: #{tpu_custom_call.1} parent=1 // pred_region
      %s2219 = ssub.s32 512, 512
      %2220 = vsyncadd [#allocation4], %s2219
      %s2221 = sshll.u32 [#allocation16], 4
      %s2222 = int_to_ptr.vmem [resolvable:$true] %s2221
      %2227 = dma.vmem_to_hbm [thread:$0]  %s2222, 512, %s8, [#allocation4], 128, 128, 8
    $region69: #{tpu_custom_call.1} parent=1 // pred_fallthru
      _
    // Predicated region
    $region70: #{tpu_custom_call.1} parent=1 // pred_check
      _
    $region71: #{tpu_custom_call.1} parent=1 // pred_check_branch
      %2229 = sbr.rel (0) target = $region73
    $region72: #{tpu_custom_call.1} parent=1 // pred_region
      %s2231 = ssub.s32 512, 512
      %2232 = vsyncadd [#allocation18], %s2231
      %s2233 = sshll.u32 [#allocation17], 4
      %s2234 = int_to_ptr.vmem [resolvable:$true] %s2233
      %2239 = dma.vmem_to_hbm [thread:$0]  %s2234, 512, %s9, [#allocation18], 128, 128, 8
    $region73: #{tpu_custom_call.1} parent=1 // pred_fallthru
      _
    // Predicated region
    $region74: #{tpu_custom_call.1} parent=1 // pred_check
      _
    $region75: #{tpu_custom_call.1} parent=1 // pred_check_branch
      %2241 = sbr.rel (0) target = $region77
    $region76: #{tpu_custom_call.1} parent=1 // pred_region
      %2242 = dma.done [#allocation4], 512
    $region77: #{tpu_custom_call.1} parent=1 // pred_fallthru
      _
    // Predicated region
    $region78: #{tpu_custom_call.1} parent=1 // pred_check
      _
    $region79: #{tpu_custom_call.1} parent=1 // pred_check_branch
      %2244 = sbr.rel (0) target = $region81
    $region80: #{tpu_custom_call.1} parent=1 // pred_region
      %2245 = dma.done [#allocation18], 512
    $region81: #{tpu_custom_call.1} parent=1 // pred_fallthru
      _
    %2246 = vsyncpa [#allocation3], 1
    %2247 = vsyncpa [#allocation6], 1
    %2248 = vsyncpa [#allocation9], 1
    %2249 = vsyncpa [#allocation12], 1
    %2250 = vsyncpa [#allocation15], 1
    %2251 = vsyncpa [#allocation4], 1
    %2252 = vsyncpa [#allocation18], 1

// kernel: tpu_custom_call.1
$region0: #{tpu_custom_call.1}
  #allocation0 [shape = 'u32[]', space=smem, size = 0x4, offset = 0x4, fixed_abs, tag = 'smem constant byte address 0x4 - core index']
  #allocation1 [shape = 'u32[144,128]{1,0:T(1,128)}', space=vmem, size = 0x12000, scoped, tag = 'internal scratch']
  %s0 = inlined_call_operand.hbm [shape: f32[4,8,32], index: 0, kind: input, shape index: {}]
  %s1 = inlined_call_operand.hbm [shape: f32[4,8,32], index: 1, kind: input, shape index: {}]
  %s2 = inlined_call_operand.hbm [shape: bf16[32,32], index: 2, kind: input, shape index: {}]
  %s3 = inlined_call_operand.hbm [shape: bf16[32,64], index: 3, kind: input, shape index: {}]
  %s4 = inlined_call_operand.hbm [shape: bf16[32,32], index: 4, kind: input, shape index: {}]
  %s5 = inlined_call_operand.hbm [shape: bf16[32,128], index: 5, kind: input, shape index: {}]
  %s6 = inlined_call_operand.hbm [shape: bf16[128,32], index: 6, kind: input, shape index: {}]
  %s7 = inlined_call_operand.hbm [shape: bf16[96,128], index: 7, kind: input, shape index: {}]
  %s8 = inlined_call_operand.hbm [shape: f32[4,8,32], index: 8, kind: output, shape index: {0}]
  %s9 = inlined_call_operand.hbm [shape: f32[4,8,128], index: 9, kind: output, shape index: {1}]
  %10 = xla_tuple %s8, %s9
  %s11 = sld [smem:[#allocation0]]
  $region82: #{tpu_custom_call.1} parent=0
    _
  %s13 = ssub.s32 1, %s11
  %s14 = scalar_select 0, %s13, %s11
  $region1: #{tpu_custom_call.1} parent=0
    #allocation2 [shape = 'u8[16384]{0}', space=vmem, size = 0x4000, scoped, tag = 'input window, operand 0, single buffered']
    #allocation3 [shape = 's32[1]{0}', space=sflag, size = 0x4, scoped, tag = 'scoped memory for tpu_custom_call.1']
    #allocation4 [shape = 's32[1]{0}', space=sflag, size = 0x4, scoped, tag = 'scoped memory for tpu_custom_call.1']
    #allocation5 [shape = 'u8[16384]{0}', space=vmem, size = 0x4000, scoped, tag = 'input window, operand 1, single buffered']
    #allocation6 [shape = 's32[1]{0}', space=sflag, size = 0x4, scoped, tag = 'scoped memory for tpu_custom_call.1']
    #allocation7 [shape = 'u8[8192]{0}', space=vmem, size = 0x2000, scoped, tag = 'input window, operand 2, single buffered']
    #allocation8 [shape = 'u8[8192]{0}', space=vmem, size = 0x2000, scoped, tag = 'input window, operand 3, single buffered']
    #allocation9 [shape = 's32[1]{0}', space=sflag, size = 0x4, scoped, tag = 'scoped memory for tpu_custom_call.1']
    #allocation10 [shape = 'u8[8192]{0}', space=vmem, size = 0x2000, scoped, tag = 'input window, operand 4, single buffered']
    #allocation11 [shape = 'u8[8192]{0}', space=vmem, size = 0x2000, scoped, tag = 'input window, operand 5, single buffered']
    #allocation12 [shape = 's32[1]{0}', space=sflag, size = 0x4, scoped, tag = 'scoped memory for tpu_custom_call.1']
    #allocation13 [shape = 'u8[32768]{0}', space=vmem, size = 0x8000, scoped, tag = 'input window, operand 6, single buffered']
    #allocation14 [shape = 'u8[24576]{0}', space=vmem, size = 0x6000, scoped, tag = 'input window, operand 7, single buffered']
    #allocation15 [shape = 's32[1]{0}', space=sflag, size = 0x4, scoped, tag = 'scoped memory for tpu_custom_call.1']
    #allocation16 [shape = 'u8[16384]{0}', space=vmem, size = 0x4000, scoped, tag = 'output window, operand 0, single buffered']
    #allocation17 [shape = 'u8[16384]{0}', space=vmem, size = 0x4000, scoped, tag = 'output window, operand 1, single buffered']
    #allocation18 [shape = 's32[1]{0}', space=sflag, size = 0x4, scoped, tag = 'scoped memory for tpu_custom_call.1']
    %15 = vsyncpa [#allocation3], 0
    %16 = vsyncpa [#allocation6], 0
    %17 = vsyncpa [#allocation9], 0
    %18 = vsyncpa [#allocation12], 0
    %19 = vsyncpa [#allocation15], 0
    %20 = vsyncpa [#allocation4], 0
    %21 = vsyncpa [#allocation18], 0
    // Predicated region
    $region2: #{tpu_custom_call.1} parent=1 // pred_check
      _
    $region3: #{tpu_custom_call.1} parent=1 // pred_check_branch
      %23 = sbr.rel (0) target = $region5
    $region4: #{tpu_custom_call.1} parent=1 // pred_region
      %s25 = ssub.s32 512, 512
      %26 = vsyncadd [#allocation3], %s25
      %s27 = sshll.u32 [#allocation2], 4
      %s28 = int_to_ptr.vmem [resolvable:$true] %s27
      %33 = dma.hbm_to_vmem [thread:$0]  %s0, 512, %s28, [#allocation3], 128, 128, 8
    $region5: #{tpu_custom_call.1} parent=1 // pred_fallthru
      _
    // Predicated region
    $region6: #{tpu_custom_call.1} parent=1 // pred_check
      _
    $region7: #{tpu_custom_call.1} parent=1 // pred_check_branch
      %35 = sbr.rel (0) target = $region9
    $region8: #{tpu_custom_call.1} parent=1 // pred_region
      %s37 = ssub.s32 512, 512
      %38 = vsyncadd [#allocation6], %s37
      %s39 = sshll.u32 [#allocation5], 4
      %s40 = int_to_ptr.vmem [resolvable:$true] %s39
      %45 = dma.hbm_to_vmem [thread:$0]  %s1, 512, %s40, [#allocation6], 128, 128, 8
    $region9: #{tpu_custom_call.1} parent=1 // pred_fallthru
      _
    // Predicated region
    $region10: #{tpu_custom_call.1} parent=1 // pred_check
      _
    $region11: #{tpu_custom_call.1} parent=1 // pred_check_branch
      %47 = sbr.rel (0) target = $region13
    $region12: #{tpu_custom_call.1} parent=1 // pred_region
      %s49 = ssub.s32 256, 256
      %50 = vsyncadd [#allocation6], %s49
      %s51 = sshll.u32 [#allocation7], 4
      %s52 = int_to_ptr.vmem [resolvable:$true] %s51
      %57 = dma.hbm_to_vmem [thread:$0]  %s2, 256, %s52, [#allocation6], 64, 64, 4
    $region13: #{tpu_custom_call.1} parent=1 // pred_fallthru
      _
    // Predicated region
    $region14: #{tpu_custom_call.1} parent=1 // pred_check
      _
    $region15: #{tpu_custom_call.1} parent=1 // pred_check_branch
      %59 = sbr.rel (0) target = $region17
    $region16: #{tpu_custom_call.1} parent=1 // pred_region
      %s61 = ssub.s32 256, 256
      %62 = vsyncadd [#allocation9], %s61
      %s63 = sshll.u32 [#allocation8], 4
      %s64 = int_to_ptr.vmem [resolvable:$true] %s63
      %69 = dma.hbm_to_vmem [thread:$0]  %s3, 256, %s64, [#allocation9], 64, 64, 4
    $region17: #{tpu_custom_call.1} parent=1 // pred_fallthru
      _
    // Predicated region
    $region18: #{tpu_custom_call.1} parent=1 // pred_check
      _
    $region19: #{tpu_custom_call.1} parent=1 // pred_check_branch
      %71 = sbr.rel (0) target = $region21
    $region20: #{tpu_custom_call.1} parent=1 // pred_region
      %s73 = ssub.s32 256, 256
      %74 = vsyncadd [#allocation9], %s73
      %s75 = sshll.u32 [#allocation10], 4
      %s76 = int_to_ptr.vmem [resolvable:$true] %s75
      %81 = dma.hbm_to_vmem [thread:$0]  %s4, 256, %s76, [#allocation9], 64, 64, 4
    $region21: #{tpu_custom_call.1} parent=1 // pred_fallthru
      _
    // Predicated region
    $region22: #{tpu_custom_call.1} parent=1 // pred_check
      _
    $region23: #{tpu_custom_call.1} parent=1 // pred_check_branch
      %83 = sbr.rel (0) target = $region25
    $region24: #{tpu_custom_call.1} parent=1 // pred_region
      %s85 = ssub.s32 256, 256
      %86 = vsyncadd [#allocation12], %s85
      %s87 = sshll.u32 [#allocation11], 4
      %s88 = int_to_ptr.vmem [resolvable:$true] %s87
      %93 = dma.hbm_to_vmem [thread:$0]  %s5, 256, %s88, [#allocation12], 64, 64, 4
    $region25: #{tpu_custom_call.1} parent=1 // pred_fallthru
      _
    // Predicated region
    $region26: #{tpu_custom_call.1} parent=1 // pred_check
      _
    $region27: #{tpu_custom_call.1} parent=1 // pred_check_branch
      %95 = sbr.rel (0) target = $region29
    $region28: #{tpu_custom_call.1} parent=1 // pred_region
      %s97 = ssub.s32 1024, 1024
      %98 = vsyncadd [#allocation12], %s97
      %s99 = sshll.u32 [#allocation13], 4
      %s100 = int_to_ptr.vmem [resolvable:$true] %s99
      %105 = dma.hbm_to_vmem [thread:$0]  %s6, 1024, %s100, [#allocation12], 64, 64, 4
    $region29: #{tpu_custom_call.1} parent=1 // pred_fallthru
      _
    // Predicated region
    $region30: #{tpu_custom_call.1} parent=1 // pred_check
      _
    $region31: #{tpu_custom_call.1} parent=1 // pred_check_branch
      %107 = sbr.rel (0) target = $region33
    $region32: #{tpu_custom_call.1} parent=1 // pred_region
      %s109 = ssub.s32 768, 768
      %110 = vsyncadd [#allocation15], %s109
      %s111 = sshll.u32 [#allocation14], 4
      %s112 = int_to_ptr.vmem [resolvable:$true] %s111
      %117 = dma.hbm_to_vmem [thread:$0]  %s7, 768, %s112, [#allocation15], 64, 64, 4
    $region33: #{tpu_custom_call.1} parent=1 // pred_fallthru
      _
    // Predicated region
    $region34: #{tpu_custom_call.1} parent=1 // pred_check
      _
    $region35: #{tpu_custom_call.1} parent=1 // pred_check_branch
      %119 = sbr.rel (0) target = $region37
    $region36: #{tpu_custom_call.1} parent=1 // pred_region
      %120 = dma.done [#allocation3], 512
    $region37: #{tpu_custom_call.1} parent=1 // pred_fallthru
      _
    // Predicated region
    $region38: #{tpu_custom_call.1} parent=1 // pred_check
      _
    $region39: #{tpu_custom_call.1} parent=1 // pred_check_branch
      %122 = sbr.rel (0) target = $region41
    $region40: #{tpu_custom_call.1} parent=1 // pred_region
      %123 = dma.done [#allocation6], 512
    $region41: #{tpu_custom_call.1} parent=1 // pred_fallthru
      _
    // Predicated region
    $region42: #{tpu_custom_call.1} parent=1 // pred_check
      _
    $region43: #{tpu_custom_call.1} parent=1 // pred_check_branch
      %125 = sbr.rel (0) target = $region45
    $region44: #{tpu_custom_call.1} parent=1 // pred_region
      %126 = dma.done [#allocation6], 256
    $region45: #{tpu_custom_call.1} parent=1 // pred_fallthru
      _
    // Predicated region
    $region46: #{tpu_custom_call.1} parent=1 // pred_check
      _
    $region47: #{tpu_custom_call.1} parent=1 // pred_check_branch
      %128 = sbr.rel (0) target = $region49
    $region48: #{tpu_custom_call.1} parent=1 // pred_region
      %129 = dma.done [#allocation9], 256
    $region49: #{tpu_custom_call.1} parent=1 // pred_fallthru
      _
    // Predicated region
    $region50: #{tpu_custom_call.1} parent=1 // pred_check
      _
    $region51: #{tpu_custom_call.1} parent=1 // pred_check_branch
      %131 = sbr.rel (0) target = $region53
    $region52: #{tpu_custom_call.1} parent=1 // pred_region
      %132 = dma.done [#allocation9], 256
    $region53: #{tpu_custom_call.1} parent=1 // pred_fallthru
      _
    // Predicated region
    $region54: #{tpu_custom_call.1} parent=1 // pred_check
      _
    $region55: #{tpu_custom_call.1} parent=1 // pred_check_branch
      %134 = sbr.rel (0) target = $region57
    $region56: #{tpu_custom_call.1} parent=1 // pred_region
      %135 = dma.done [#allocation12], 256
    $region57: #{tpu_custom_call.1} parent=1 // pred_fallthru
      _
    // Predicated region
    $region58: #{tpu_custom_call.1} parent=1 // pred_check
      _
    $region59: #{tpu_custom_call.1} parent=1 // pred_check_branch
      %137 = sbr.rel (0) target = $region61
    $region60: #{tpu_custom_call.1} parent=1 // pred_region
      %138 = dma.done [#allocation12], 1024
    $region61: #{tpu_custom_call.1} parent=1 // pred_fallthru
      _
    // Predicated region
    $region62: #{tpu_custom_call.1} parent=1 // pred_check
      _
    $region63: #{tpu_custom_call.1} parent=1 // pred_check_branch
      %140 = sbr.rel (0) target = $region65
    $region64: #{tpu_custom_call.1} parent=1 // pred_region
      %141 = dma.done [#allocation15], 768
    $region65: #{tpu_custom_call.1} parent=1 // pred_fallthru
      _
    %v143 = vld [vmem:[#allocation2] sm:$0xff]
    %v144 = vld [vmem:[#allocation2 + $0x8] sm:$0xff]
    %v145 = vld [vmem:[#allocation2 + $0x10] sm:$0xff]
    %v146 = vld [vmem:[#allocation2 + $0x18] sm:$0xff]
    %v147 = vld [vmem:[#allocation5] sm:$0xff]
    %v148 = vld [vmem:[#allocation5 + $0x8] sm:$0xff]
    %v149 = vld [vmem:[#allocation5 + $0x10] sm:$0xff]
    %v150 = vld [vmem:[#allocation5 + $0x18] sm:$0xff]
    %v151 = vld [vmem:[#allocation7] sm:$0xf]
    %v152 = vld [vmem:[#allocation7 + $0x4] sm:$0xf]
    %v153 = vld [vmem:[#allocation7 + $0x8] sm:$0xf]
    %v154 = vld [vmem:[#allocation7 + $0xc] sm:$0xf]
    %v155 = vld [vmem:[#allocation8] sm:$0xf]
    %v156 = vld [vmem:[#allocation8 + $0x4] sm:$0xf]
    %v157 = vld [vmem:[#allocation8 + $0x8] sm:$0xf]
    %v158 = vld [vmem:[#allocation8 + $0xc] sm:$0xf]
    %v159 = vld [vmem:[#allocation10] sm:$0xf]
    %v160 = vld [vmem:[#allocation10 + $0x4] sm:$0xf]
    %v161 = vld [vmem:[#allocation10 + $0x8] sm:$0xf]
    %v162 = vld [vmem:[#allocation10 + $0xc] sm:$0xf]
    %v163 = vld [vmem:[#allocation11] sm:$0xf]
    %v164 = vld [vmem:[#allocation11 + $0x4] sm:$0xf]
    %v165 = vld [vmem:[#allocation11 + $0x8] sm:$0xf]
    %v166 = vld [vmem:[#allocation11 + $0xc] sm:$0xf]
    %v167 = vld [vmem:[#allocation13] sm:$0xf]
    %v168 = vld [vmem:[#allocation13 + $0x4] sm:$0xf]
    %v169 = vld [vmem:[#allocation13 + $0x8] sm:$0xf]
    %v170 = vld [vmem:[#allocation13 + $0xc] sm:$0xf]
    %v171 = vld [vmem:[#allocation13 + $0x10] sm:$0xf]
    %v172 = vld [vmem:[#allocation13 + $0x14] sm:$0xf]
    %v173 = vld [vmem:[#allocation13 + $0x18] sm:$0xf]
    %v174 = vld [vmem:[#allocation13 + $0x1c] sm:$0xf]
    %v175 = vld [vmem:[#allocation13 + $0x20] sm:$0xf]
    %v176 = vld [vmem:[#allocation13 + $0x24] sm:$0xf]
    %v177 = vld [vmem:[#allocation13 + $0x28] sm:$0xf]
    %v178 = vld [vmem:[#allocation13 + $0x2c] sm:$0xf]
    %v179 = vld [vmem:[#allocation13 + $0x30] sm:$0xf]
    %v180 = vld [vmem:[#allocation13 + $0x34] sm:$0xf]
    %v181 = vld [vmem:[#allocation13 + $0x38] sm:$0xf]
    %v182 = vld [vmem:[#allocation13 + $0x3c] sm:$0xf]
    %v183 = vld [vmem:[#allocation14] sm:$0xf]
    %v184 = vld [vmem:[#allocation14 + $0x4] sm:$0xf]
    %v185 = vld [vmem:[#allocation14 + $0x8] sm:$0xf]
    %v186 = vld [vmem:[#allocation14 + $0xc] sm:$0xf]
    %v187 = vld [vmem:[#allocation14 + $0x10] sm:$0xf]
    %v188 = vld [vmem:[#allocation14 + $0x14] sm:$0xf]
    %v189 = vld [vmem:[#allocation14 + $0x18] sm:$0xf]
    %v190 = vld [vmem:[#allocation14 + $0x1c] sm:$0xf]
    %v191 = vld [vmem:[#allocation14 + $0x20] sm:$0xf]
    %v192 = vld [vmem:[#allocation14 + $0x24] sm:$0xf]
    %v193 = vld [vmem:[#allocation14 + $0x28] sm:$0xf]
    %v194 = vld [vmem:[#allocation14 + $0x2c] sm:$0xf]
    %v195 = vpack.c.bf16 %v148, %v147
    %v196 = vpack.c.bf16 %v150, %v149
    %v201 = vunpack.c.l.b16 %v155
    %v202 = vunpack.c.l.b16 %v156
    %v203 = vunpack.c.l.b16 %v157
    %v204 = vunpack.c.l.b16 %v158
    %v205 = vpack.c.b16 %v202, %v201
    %v206 = vpack.c.b16 %v204, %v203
    %vm209 = vcmask 261120
    %v211 = vsel %vm209, %v195, 0
    %v214 = vsel %vm209, %v196, 0
    %216 = vmatprep.subr.bf16.mxu0 0
    %217 = vmatpush1.bf16.msra.mxu0 %v205
    %218 = vmatprep.subr.bf16.mxu0 0
    %219 = vmatpush1.bf16.msra.mxu0 %v206
    %220 = vmatprep.subr.bf16.mxu0 0
    %221 = vmatpush1.bf16.msra.mxu0 0
    %222 = vmatprep.subr.bf16.mxu0 0
    %223 = vmatpush1.bf16.msra.mxu0 0
    %224 = vmatprep.subr.bf16.mxu0 0
    %225 = vmatpush1.bf16.msra.mxu0 0
    %226 = vmatprep.subr.bf16.mxu0 0
    %227 = vmatpush1.bf16.msra.mxu0 0
    %228 = vmatprep.subr.bf16.mxu0 0
    %229 = vmatpush1.bf16.msra.mxu0 0
    %230 = vmatprep.subr.bf16.mxu0 0
    %231 = vmatpush1.bf16.msra.mxu0 0
    %232 = vmatprep.subr.bf16.mxu0 0
    %233 = vmatpush1.bf16.msra.mxu0 0
    %234 = vmatprep.subr.bf16.mxu0 0
    %235 = vmatpush1.bf16.msra.mxu0 0
    %236 = vmatprep.subr.bf16.mxu0 0
    %237 = vmatpush1.bf16.msra.mxu0 0
    %238 = vmatprep.subr.bf16.mxu0 0
    %239 = vmatpush1.bf16.msra.mxu0 0
    %240 = vmatprep.subr.bf16.mxu0 0
    %241 = vmatpush1.bf16.msra.mxu0 0
    %242 = vmatprep.subr.bf16.mxu0 0
    %243 = vmatpush1.bf16.msra.mxu0 0
    %244 = vmatprep.subr.bf16.mxu0 0
    %245 = vmatpush1.bf16.msra.mxu0 0
    %246 = vmatprep.subr.bf16.mxu0 0
    %247 = vmatpush1.bf16.msra.mxu0 0
    %248 = vmatprep.mubr.bf16.mxu0 0
    %249 = vmatmul.mubr.bf16.gmra.mrb[0].mxu0 %v211
    %v250 = vpop.f32.mrb[0].mxu0
    %v251 = vadd.f32 0.0, %v250
    %v252 = vpop.f32.mrb[0].mxu0
    %v253 = vpop.f32.mrb[0].mxu0
    %v254 = vadd.f32 0.0, %v253
    %v255 = vpop.f32.mrb[0].mxu0
    %256 = vmatprep.mubr.bf16.mxu0 0
    %257 = vmatmul.mubr.bf16.gmra.mrb[0].mxu0 %v214
    %v258 = vpop.f32.mrb[0].mxu0
    %v259 = vadd.f32 0.0, %v258
    %v260 = vpop.f32.mrb[0].mxu0
    %v261 = vpop.f32.mrb[0].mxu0
    %v262 = vadd.f32 0.0, %v261
    %v263 = vpop.f32.mrb[0].mxu0
    %264 = vdwg.mxu0
    %265 = vxpose.xlu0.b32.start [1/16] %v251, 128
    %266 = vxpose.xlu0.b32.cont [2/16] 0.0, 128
    %267 = vxpose.xlu0.b32.cont [3/16] 0.0, 128
    %268 = vxpose.xlu0.b32.cont [4/16] 0.0, 128
    %269 = vxpose.xlu0.b32.cont [5/16] 0.0, 128
    %270 = vxpose.xlu0.b32.cont [6/16] 0.0, 128
    %271 = vxpose.xlu0.b32.cont [7/16] 0.0, 128
    %272 = vxpose.xlu0.b32.cont [8/16] 0.0, 128
    %273 = vxpose.xlu0.b32.cont [9/16] 0.0, 128
    %274 = vxpose.xlu0.b32.cont [10/16] 0.0, 128
    %275 = vxpose.xlu0.b32.cont [11/16] 0.0, 128
    %276 = vxpose.xlu0.b32.cont [12/16] 0.0, 128
    %277 = vxpose.xlu0.b32.cont [13/16] 0.0, 128
    %278 = vxpose.xlu0.b32.cont [14/16] 0.0, 128
    %279 = vxpose.xlu0.b32.cont [15/16] 0.0, 128
    %280 = vxpose.xlu0.b32.end [16/16] 0.0, 128
    %v281 = vpop.trf.xlu0
    %v282 = vpop.trf.xlu0
    %v283 = vpop.trf.xlu0
    %v284 = vpop.trf.xlu0
    %v285 = vpop.trf.xlu0
    %v286 = vpop.trf.xlu0
    %v287 = vpop.trf.xlu0
    %v288 = vpop.trf.xlu0
    %v289 = vpop.trf.xlu0
    %v290 = vpop.trf.xlu0
    %v291 = vpop.trf.xlu0
    %v292 = vpop.trf.xlu0
    %v293 = vpop.trf.xlu0
    %v294 = vpop.trf.xlu0
    %v295 = vpop.trf.xlu0
    %v296 = vpop.trf.xlu0
    %297 = vxpose.xlu0.b32.start [1/16] %v254, 128
    %298 = vxpose.xlu0.b32.cont [2/16] 0.0, 128
    %299 = vxpose.xlu0.b32.cont [3/16] 0.0, 128
    %300 = vxpose.xlu0.b32.cont [4/16] 0.0, 128
    %301 = vxpose.xlu0.b32.cont [5/16] 0.0, 128
    %302 = vxpose.xlu0.b32.cont [6/16] 0.0, 128
    %303 = vxpose.xlu0.b32.cont [7/16] 0.0, 128
    %304 = vxpose.xlu0.b32.cont [8/16] 0.0, 128
    %305 = vxpose.xlu0.b32.cont [9/16] 0.0, 128
    %306 = vxpose.xlu0.b32.cont [10/16] 0.0, 128
    %307 = vxpose.xlu0.b32.cont [11/16] 0.0, 128
    %308 = vxpose.xlu0.b32.cont [12/16] 0.0, 128
    %309 = vxpose.xlu0.b32.cont [13/16] 0.0, 128
    %310 = vxpose.xlu0.b32.cont [14/16] 0.0, 128
    %311 = vxpose.xlu0.b32.cont [15/16] 0.0, 128
    %312 = vxpose.xlu0.b32.end [16/16] 0.0, 128
    %v313 = vpop.trf.xlu0
    %v314 = vpop.trf.xlu0
    %v315 = vpop.trf.xlu0
    %v316 = vpop.trf.xlu0
    %v317 = vpop.trf.xlu0
    %v318 = vpop.trf.xlu0
    %v319 = vpop.trf.xlu0
    %v320 = vpop.trf.xlu0
    %v321 = vpop.trf.xlu0
    %v322 = vpop.trf.xlu0
    %v323 = vpop.trf.xlu0
    %v324 = vpop.trf.xlu0
    %v325 = vpop.trf.xlu0
    %v326 = vpop.trf.xlu0
    %v327 = vpop.trf.xlu0
    %v328 = vpop.trf.xlu0
    %329 = vxpose.xlu0.b32.start [1/16] %v259, 128
    %330 = vxpose.xlu0.b32.cont [2/16] 0.0, 128
    %331 = vxpose.xlu0.b32.cont [3/16] 0.0, 128
    %332 = vxpose.xlu0.b32.cont [4/16] 0.0, 128
    %333 = vxpose.xlu0.b32.cont [5/16] 0.0, 128
    %334 = vxpose.xlu0.b32.cont [6/16] 0.0, 128
    %335 = vxpose.xlu0.b32.cont [7/16] 0.0, 128
    %336 = vxpose.xlu0.b32.cont [8/16] 0.0, 128
    %337 = vxpose.xlu0.b32.cont [9/16] 0.0, 128
    %338 = vxpose.xlu0.b32.cont [10/16] 0.0, 128
    %339 = vxpose.xlu0.b32.cont [11/16] 0.0, 128
    %340 = vxpose.xlu0.b32.cont [12/16] 0.0, 128
    %341 = vxpose.xlu0.b32.cont [13/16] 0.0, 128
    %342 = vxpose.xlu0.b32.cont [14/16] 0.0, 128
    %343 = vxpose.xlu0.b32.cont [15/16] 0.0, 128
    %344 = vxpose.xlu0.b32.end [16/16] 0.0, 128
    %v345 = vpop.trf.xlu0
    %v346 = vpop.trf.xlu0
    %v347 = vpop.trf.xlu0
    %v348 = vpop.trf.xlu0
    %v349 = vpop.trf.xlu0
    %v350 = vpop.trf.xlu0
    %v351 = vpop.trf.xlu0
    %v352 = vpop.trf.xlu0
    %v353 = vpop.trf.xlu0
    %v354 = vpop.trf.xlu0
    %v355 = vpop.trf.xlu0
    %v356 = vpop.trf.xlu0
    %v357 = vpop.trf.xlu0
    %v358 = vpop.trf.xlu0
    %v359 = vpop.trf.xlu0
    %v360 = vpop.trf.xlu0
    %361 = vxpose.xlu0.b32.start [1/16] %v262, 128
    %362 = vxpose.xlu0.b32.cont [2/16] 0.0, 128
    %363 = vxpose.xlu0.b32.cont [3/16] 0.0, 128
    %364 = vxpose.xlu0.b32.cont [4/16] 0.0, 128
    %365 = vxpose.xlu0.b32.cont [5/16] 0.0, 128
    %366 = vxpose.xlu0.b32.cont [6/16] 0.0, 128
    %367 = vxpose.xlu0.b32.cont [7/16] 0.0, 128
    %368 = vxpose.xlu0.b32.cont [8/16] 0.0, 128
    %369 = vxpose.xlu0.b32.cont [9/16] 0.0, 128
    %370 = vxpose.xlu0.b32.cont [10/16] 0.0, 128
    %371 = vxpose.xlu0.b32.cont [11/16] 0.0, 128
    %372 = vxpose.xlu0.b32.cont [12/16] 0.0, 128
    %373 = vxpose.xlu0.b32.cont [13/16] 0.0, 128
    %374 = vxpose.xlu0.b32.cont [14/16] 0.0, 128
    %375 = vxpose.xlu0.b32.cont [15/16] 0.0, 128
    %376 = vxpose.xlu0.b32.end [16/16] 0.0, 128
    %v377 = vpop.trf.xlu0
    %v378 = vpop.trf.xlu0
    %v379 = vpop.trf.xlu0
    %v380 = vpop.trf.xlu0
    %v381 = vpop.trf.xlu0
    %v382 = vpop.trf.xlu0
    %v383 = vpop.trf.xlu0
    %v384 = vpop.trf.xlu0
    %v385 = vpop.trf.xlu0
    %v386 = vpop.trf.xlu0
    %v387 = vpop.trf.xlu0
    %v388 = vpop.trf.xlu0
    %v389 = vpop.trf.xlu0
    %v390 = vpop.trf.xlu0
    %v391 = vpop.trf.xlu0
    %v392 = vpop.trf.xlu0
    %v393 = vpack.c.bf16 %v282, %v281
    %v394 = vpack.c.bf16 %v284, %v283
    %v395 = vpack.c.bf16 %v314, %v313
    %v396 = vpack.c.bf16 %v316, %v315
    %v397 = vpack.c.bf16 %v346, %v345
    %v398 = vpack.c.bf16 %v348, %v347
    %v399 = vpack.c.bf16 %v378, %v377
    %v400 = vpack.c.bf16 %v380, %v379
    %v401 = vpack.c.bf16 %v251, %v251
    %v402 = vpack.c.bf16 %v254, %v254
    %v403 = vpack.c.bf16 %v259, %v259
    %v404 = vpack.c.bf16 %v262, %v262
    %v405 = vlaneseq
    %v406 = vshrl.u32 %v405, 7
    %vm407 = vcmp.ge.s32.totalorder %v406, 7
    %vm408 = vcmp.ge.s32.totalorder %v406, 6
    %vm409 = vcmp.lt.s32.totalorder %v406, 1
    %vm410 = vcmp.lt.s32.totalorder %v406, 2
    %v411 = vpack.c.bf16 %v144, %v143
    %v412 = vpack.c.bf16 %v146, %v145
    %v417 = vunpack.c.l.b16 %v151
    %v418 = vunpack.c.l.b16 %v152
    %v419 = vunpack.c.l.b16 %v153
    %v420 = vunpack.c.l.b16 %v154
    %v421 = vpack.c.b16 %v418, %v417
    %v422 = vpack.c.b16 %v420, %v419
    %v426 = vsel %vm209, %v411, 0
    %v429 = vsel %vm209, %v412, 0
    %431 = vmatprep.subr.bf16.mxu0 0
    %432 = vmatpush1.bf16.msra.mxu0 %v421
    %433 = vmatprep.subr.bf16.mxu0 0
    %434 = vmatpush1.bf16.msra.mxu0 %v422
    %435 = vmatprep.subr.bf16.mxu0 0
    %436 = vmatpush1.bf16.msra.mxu0 0
    %437 = vmatprep.subr.bf16.mxu0 0
    %438 = vmatpush1.bf16.msra.mxu0 0
    %439 = vmatprep.subr.bf16.mxu0 0
    %440 = vmatpush1.bf16.msra.mxu0 0
    %441 = vmatprep.subr.bf16.mxu0 0
    %442 = vmatpush1.bf16.msra.mxu0 0
    %443 = vmatprep.subr.bf16.mxu0 0
    %444 = vmatpush1.bf16.msra.mxu0 0
    %445 = vmatprep.subr.bf16.mxu0 0
    %446 = vmatpush1.bf16.msra.mxu0 0
    %447 = vmatprep.subr.bf16.mxu0 0
    %448 = vmatpush1.bf16.msra.mxu0 0
    %449 = vmatprep.subr.bf16.mxu0 0
    %450 = vmatpush1.bf16.msra.mxu0 0
    %451 = vmatprep.subr.bf16.mxu0 0
    %452 = vmatpush1.bf16.msra.mxu0 0
    %453 = vmatprep.subr.bf16.mxu0 0
    %454 = vmatpush1.bf16.msra.mxu0 0
    %455 = vmatprep.subr.bf16.mxu0 0
    %456 = vmatpush1.bf16.msra.mxu0 0
    %457 = vmatprep.subr.bf16.mxu0 0
    %458 = vmatpush1.bf16.msra.mxu0 0
    %459 = vmatprep.subr.bf16.mxu0 0
    %460 = vmatpush1.bf16.msra.mxu0 0
    %461 = vmatprep.subr.bf16.mxu0 0
    %462 = vmatpush1.bf16.msra.mxu0 0
    %463 = vmatprep.mubr.bf16.mxu0 0
    %464 = vmatmul.mubr.bf16.gmra.mrb[0].mxu0 %v426
    %v465 = vpop.f32.mrb[0].mxu0
    %v466 = vadd.f32 0.0, %v465
    %v467 = vpop.f32.mrb[0].mxu0
    %v468 = vpop.f32.mrb[0].mxu0
    %v469 = vadd.f32 0.0, %v468
    %v470 = vpop.f32.mrb[0].mxu0
    %471 = vmatprep.mubr.bf16.mxu0 0
    %472 = vmatmul.mubr.bf16.gmra.mrb[0].mxu0 %v429
    %v473 = vpop.f32.mrb[0].mxu0
    %v474 = vadd.f32 0.0, %v473
    %v475 = vpop.f32.mrb[0].mxu0
    %v476 = vpop.f32.mrb[0].mxu0
    %v477 = vadd.f32 0.0, %v476
    %v478 = vpop.f32.mrb[0].mxu0
    %479 = vdwg.mxu0
    %v480 = vpack.c.bf16 %v466, %v466
    %v481 = vpack.c.bf16 %v469, %v469
    %v482 = vpack.c.bf16 %v474, %v474
    %v483 = vpack.c.bf16 %v477, %v477
    %v485 = vsel %vm209, %v480, 0
    %487 = vmatprep.subr.bf16.mxu0 0
    %488 = vmatpush1.bf16.msra.mxu0 %v393
    %489 = vmatprep.subr.bf16.mxu0 0
    %490 = vmatpush1.bf16.msra.mxu0 %v394
    %491 = vmatprep.subr.bf16.mxu0 0
    %492 = vmatpush1.bf16.msra.mxu0 0
    %493 = vmatprep.subr.bf16.mxu0 0
    %494 = vmatpush1.bf16.msra.mxu0 0
    %495 = vmatprep.subr.bf16.mxu0 0
    %496 = vmatpush1.bf16.msra.mxu0 0
    %497 = vmatprep.subr.bf16.mxu0 0
    %498 = vmatpush1.bf16.msra.mxu0 0
    %499 = vmatprep.subr.bf16.mxu0 0
    %500 = vmatpush1.bf16.msra.mxu0 0
    %501 = vmatprep.subr.bf16.mxu0 0
    %502 = vmatpush1.bf16.msra.mxu0 0
    %503 = vmatprep.subr.bf16.mxu0 0
    %504 = vmatpush1.bf16.msra.mxu0 0
    %505 = vmatprep.subr.bf16.mxu0 0
    %506 = vmatpush1.bf16.msra.mxu0 0
    %507 = vmatprep.subr.bf16.mxu0 0
    %508 = vmatpush1.bf16.msra.mxu0 0
    %509 = vmatprep.subr.bf16.mxu0 0
    %510 = vmatpush1.bf16.msra.mxu0 0
    %511 = vmatprep.subr.bf16.mxu0 0
    %512 = vmatpush1.bf16.msra.mxu0 0
    %513 = vmatprep.subr.bf16.mxu0 0
    %514 = vmatpush1.bf16.msra.mxu0 0
    %515 = vmatprep.subr.bf16.mxu0 0
    %516 = vmatpush1.bf16.msra.mxu0 0
    %517 = vmatprep.subr.bf16.mxu0 0
    %518 = vmatpush1.bf16.msra.mxu0 0
    %519 = vmatprep.mubr.bf16.mxu0 0
    %520 = vmatmul.mubr.bf16.gmra.mrb[0].mxu0 %v485
    %v521 = vpop.f32.mrb[0].mxu0
    %v522 = vadd.f32 0.0, %v521
    %v523 = vpop.f32.mrb[0].mxu0
    %v524 = vpop.f32.mrb[0].mxu0
    %v525 = vpop.f32.mrb[0].mxu0
    %526 = vdwg.mxu0
    %v528 = vsel %vm209, %v481, 0
    %530 = vmatprep.subr.bf16.mxu0 0
    %531 = vmatpush1.bf16.msra.mxu0 %v395
    %532 = vmatprep.subr.bf16.mxu0 0
    %533 = vmatpush1.bf16.msra.mxu0 %v396
    %534 = vmatprep.subr.bf16.mxu0 0
    %535 = vmatpush1.bf16.msra.mxu0 0
    %536 = vmatprep.subr.bf16.mxu0 0
    %537 = vmatpush1.bf16.msra.mxu0 0
    %538 = vmatprep.subr.bf16.mxu0 0
    %539 = vmatpush1.bf16.msra.mxu0 0
    %540 = vmatprep.subr.bf16.mxu0 0
    %541 = vmatpush1.bf16.msra.mxu0 0
    %542 = vmatprep.subr.bf16.mxu0 0
    %543 = vmatpush1.bf16.msra.mxu0 0
    %544 = vmatprep.subr.bf16.mxu0 0
    %545 = vmatpush1.bf16.msra.mxu0 0
    %546 = vmatprep.subr.bf16.mxu0 0
    %547 = vmatpush1.bf16.msra.mxu0 0
    %548 = vmatprep.subr.bf16.mxu0 0
    %549 = vmatpush1.bf16.msra.mxu0 0
    %550 = vmatprep.subr.bf16.mxu0 0
    %551 = vmatpush1.bf16.msra.mxu0 0
    %552 = vmatprep.subr.bf16.mxu0 0
    %553 = vmatpush1.bf16.msra.mxu0 0
    %554 = vmatprep.subr.bf16.mxu0 0
    %555 = vmatpush1.bf16.msra.mxu0 0
    %556 = vmatprep.subr.bf16.mxu0 0
    %557 = vmatpush1.bf16.msra.mxu0 0
    %558 = vmatprep.subr.bf16.mxu0 0
    %559 = vmatpush1.bf16.msra.mxu0 0
    %560 = vmatprep.subr.bf16.mxu0 0
    %561 = vmatpush1.bf16.msra.mxu0 0
    %562 = vmatprep.mubr.bf16.mxu0 0
    %563 = vmatmul.mubr.bf16.gmra.mrb[0].mxu0 %v528
    %v564 = vpop.f32.mrb[0].mxu0
    %v565 = vadd.f32 0.0, %v564
    %v566 = vpop.f32.mrb[0].mxu0
    %v567 = vpop.f32.mrb[0].mxu0
    %v568 = vpop.f32.mrb[0].mxu0
    %569 = vdwg.mxu0
    %v571 = vsel %vm209, %v482, 0
    %573 = vmatprep.subr.bf16.mxu0 0
    %574 = vmatpush1.bf16.msra.mxu0 %v397
    %575 = vmatprep.subr.bf16.mxu0 0
    %576 = vmatpush1.bf16.msra.mxu0 %v398
    %577 = vmatprep.subr.bf16.mxu0 0
    %578 = vmatpush1.bf16.msra.mxu0 0
    %579 = vmatprep.subr.bf16.mxu0 0
    %580 = vmatpush1.bf16.msra.mxu0 0
    %581 = vmatprep.subr.bf16.mxu0 0
    %582 = vmatpush1.bf16.msra.mxu0 0
    %583 = vmatprep.subr.bf16.mxu0 0
    %584 = vmatpush1.bf16.msra.mxu0 0
    %585 = vmatprep.subr.bf16.mxu0 0
    %586 = vmatpush1.bf16.msra.mxu0 0
    %587 = vmatprep.subr.bf16.mxu0 0
    %588 = vmatpush1.bf16.msra.mxu0 0
    %589 = vmatprep.subr.bf16.mxu0 0
    %590 = vmatpush1.bf16.msra.mxu0 0
    %591 = vmatprep.subr.bf16.mxu0 0
    %592 = vmatpush1.bf16.msra.mxu0 0
    %593 = vmatprep.subr.bf16.mxu0 0
    %594 = vmatpush1.bf16.msra.mxu0 0
    %595 = vmatprep.subr.bf16.mxu0 0
    %596 = vmatpush1.bf16.msra.mxu0 0
    %597 = vmatprep.subr.bf16.mxu0 0
    %598 = vmatpush1.bf16.msra.mxu0 0
    %599 = vmatprep.subr.bf16.mxu0 0
    %600 = vmatpush1.bf16.msra.mxu0 0
    %601 = vmatprep.subr.bf16.mxu0 0
    %602 = vmatpush1.bf16.msra.mxu0 0
    %603 = vmatprep.subr.bf16.mxu0 0
    %604 = vmatpush1.bf16.msra.mxu0 0
    %605 = vmatprep.mubr.bf16.mxu0 0
    %606 = vmatmul.mubr.bf16.gmra.mrb[0].mxu0 %v571
    %v607 = vpop.f32.mrb[0].mxu0
    %v608 = vadd.f32 0.0, %v607
    %v609 = vpop.f32.mrb[0].mxu0
    %v610 = vpop.f32.mrb[0].mxu0
    %v611 = vpop.f32.mrb[0].mxu0
    %612 = vdwg.mxu0
    %v614 = vsel %vm209, %v483, 0
    %616 = vmatprep.subr.bf16.mxu0 0
    %617 = vmatpush1.bf16.msra.mxu0 %v399
    %618 = vmatprep.subr.bf16.mxu0 0
    %619 = vmatpush1.bf16.msra.mxu0 %v400
    %620 = vmatprep.subr.bf16.mxu0 0
    %621 = vmatpush1.bf16.msra.mxu0 0
    %622 = vmatprep.subr.bf16.mxu0 0
    %623 = vmatpush1.bf16.msra.mxu0 0
    %624 = vmatprep.subr.bf16.mxu0 0
    %625 = vmatpush1.bf16.msra.mxu0 0
    %626 = vmatprep.subr.bf16.mxu0 0
    %627 = vmatpush1.bf16.msra.mxu0 0
    %628 = vmatprep.subr.bf16.mxu0 0
    %629 = vmatpush1.bf16.msra.mxu0 0
    %630 = vmatprep.subr.bf16.mxu0 0
    %631 = vmatpush1.bf16.msra.mxu0 0
    %632 = vmatprep.subr.bf16.mxu0 0
    %633 = vmatpush1.bf16.msra.mxu0 0
    %634 = vmatprep.subr.bf16.mxu0 0
    %635 = vmatpush1.bf16.msra.mxu0 0
    %636 = vmatprep.subr.bf16.mxu0 0
    %637 = vmatpush1.bf16.msra.mxu0 0
    %638 = vmatprep.subr.bf16.mxu0 0
    %639 = vmatpush1.bf16.msra.mxu0 0
    %640 = vmatprep.subr.bf16.mxu0 0
    %641 = vmatpush1.bf16.msra.mxu0 0
    %642 = vmatprep.subr.bf16.mxu0 0
    %643 = vmatpush1.bf16.msra.mxu0 0
    %644 = vmatprep.subr.bf16.mxu0 0
    %645 = vmatpush1.bf16.msra.mxu0 0
    %646 = vmatprep.subr.bf16.mxu0 0
    %647 = vmatpush1.bf16.msra.mxu0 0
    %648 = vmatprep.mubr.bf16.mxu0 0
    %649 = vmatmul.mubr.bf16.gmra.mrb[0].mxu0 %v614
    %v650 = vpop.f32.mrb[0].mxu0
    %v651 = vadd.f32 0.0, %v650
    %v652 = vpop.f32.mrb[0].mxu0
    %v653 = vpop.f32.mrb[0].mxu0
    %v654 = vpop.f32.mrb[0].mxu0
    %655 = vdwg.mxu0
    %vm656 = vcmask 64512
    %v657 = vsel %vm656, %v522, -inf
    %658 = vmax.xlane.f32.xlu0 %v657
    %v659 = vpop.xlane.xlu0 %658
    %v660 = vsel %vm656, %v565, -inf
    %661 = vmax.xlane.f32.xlu0 %v660
    %v662 = vpop.xlane.xlu0 %661
    %v663 = vsel %vm656, %v608, -inf
    %664 = vmax.xlane.f32.xlu0 %v663
    %v665 = vpop.xlane.xlu0 %664
    %v666 = vsel %vm656, %v651, -inf
    %667 = vmax.xlane.f32.xlu0 %v666
    %v668 = vpop.xlane.xlu0 %667
    %v669 = vsub.f32 %v522, %v659
    %v670 = vsub.f32 %v565, %v662
    %v671 = vsub.f32 %v608, %v665
    %v672 = vsub.f32 %v651, %v668
    %v673 = vmul.f32 %v669, 1.442695
    %v674 = vpow.pop %v673
    %v675 = vmul.f32 %v670, 1.442695
    %v676 = vpow.pop %v675
    %v677 = vmul.f32 %v671, 1.442695
    %v678 = vpow.pop %v677
    %v679 = vmul.f32 %v672, 1.442695
    %v680 = vpow.pop %v679
    %v681 = vpack.c.bf16 %v674, %v674
    %v682 = vpack.c.bf16 %v676, %v676
    %v683 = vpack.c.bf16 %v678, %v678
    %v684 = vpack.c.bf16 %v680, %v680
    %686 = vrot.lane.b32.xlu0 %v401, 96
    %v687 = vpop.permute.xlu0 %686
    %v689 = vsel %vm656, %v681, 0
    %vm691 = vcmask 1043456
    %v693 = vsel %vm691, %v687, 0
    %695 = vmatprep.subr.bf16.mxu0 0
    %696 = vmatpush1.bf16.msra.mxu0 %v693
    %697 = vmatprep.subr.bf16.mxu0 0
    %698 = vmatpush1.bf16.msra.mxu0 0
    %699 = vmatprep.subr.bf16.mxu0 0
    %700 = vmatpush1.bf16.msra.mxu0 0
    %701 = vmatprep.subr.bf16.mxu0 0
    %702 = vmatpush1.bf16.msra.mxu0 0
    %703 = vmatprep.subr.bf16.mxu0 0
    %704 = vmatpush1.bf16.msra.mxu0 0
    %705 = vmatprep.subr.bf16.mxu0 0
    %706 = vmatpush1.bf16.msra.mxu0 0
    %707 = vmatprep.subr.bf16.mxu0 0
    %708 = vmatpush1.bf16.msra.mxu0 0
    %709 = vmatprep.subr.bf16.mxu0 0
    %710 = vmatpush1.bf16.msra.mxu0 0
    %711 = vmatprep.subr.bf16.mxu0 0
    %712 = vmatpush1.bf16.msra.mxu0 0
    %713 = vmatprep.subr.bf16.mxu0 0
    %714 = vmatpush1.bf16.msra.mxu0 0
    %715 = vmatprep.subr.bf16.mxu0 0
    %716 = vmatpush1.bf16.msra.mxu0 0
    %717 = vmatprep.subr.bf16.mxu0 0
    %718 = vmatpush1.bf16.msra.mxu0 0
    %719 = vmatprep.subr.bf16.mxu0 0
    %720 = vmatpush1.bf16.msra.mxu0 0
    %721 = vmatprep.subr.bf16.mxu0 0
    %722 = vmatpush1.bf16.msra.mxu0 0
    %723 = vmatprep.subr.bf16.mxu0 0
    %724 = vmatpush1.bf16.msra.mxu0 0
    %725 = vmatprep.subr.bf16.mxu0 0
    %726 = vmatpush1.bf16.msra.mxu0 0
    %727 = vmatprep.mubr.bf16.mxu0 0
    %728 = vmatmul.mubr.bf16.gmra.mrb[0].mxu0 %v689
    %v729 = vpop.f32.mrb[0].mxu0
    %v730 = vadd.f32 0.0, %v729
    %v731 = vpop.f32.mrb[0].mxu0
    %v732 = vpop.f32.mrb[0].mxu0
    %v733 = vpop.f32.mrb[0].mxu0
    %734 = vdwg.mxu0
    %736 = vrot.lane.b32.xlu0 %v402, 96
    %v737 = vpop.permute.xlu0 %736
    %v739 = vsel %vm656, %v682, 0
    %v742 = vsel %vm691, %v737, 0
    %744 = vmatprep.subr.bf16.mxu0 0
    %745 = vmatpush1.bf16.msra.mxu0 %v742
    %746 = vmatprep.subr.bf16.mxu0 0
    %747 = vmatpush1.bf16.msra.mxu0 0
    %748 = vmatprep.subr.bf16.mxu0 0
    %749 = vmatpush1.bf16.msra.mxu0 0
    %750 = vmatprep.subr.bf16.mxu0 0
    %751 = vmatpush1.bf16.msra.mxu0 0
    %752 = vmatprep.subr.bf16.mxu0 0
    %753 = vmatpush1.bf16.msra.mxu0 0
    %754 = vmatprep.subr.bf16.mxu0 0
    %755 = vmatpush1.bf16.msra.mxu0 0
    %756 = vmatprep.subr.bf16.mxu0 0
    %757 = vmatpush1.bf16.msra.mxu0 0
    %758 = vmatprep.subr.bf16.mxu0 0
    %759 = vmatpush1.bf16.msra.mxu0 0
    %760 = vmatprep.subr.bf16.mxu0 0
    %761 = vmatpush1.bf16.msra.mxu0 0
    %762 = vmatprep.subr.bf16.mxu0 0
    %763 = vmatpush1.bf16.msra.mxu0 0
    %764 = vmatprep.subr.bf16.mxu0 0
    %765 = vmatpush1.bf16.msra.mxu0 0
    %766 = vmatprep.subr.bf16.mxu0 0
    %767 = vmatpush1.bf16.msra.mxu0 0
    %768 = vmatprep.subr.bf16.mxu0 0
    %769 = vmatpush1.bf16.msra.mxu0 0
    %770 = vmatprep.subr.bf16.mxu0 0
    %771 = vmatpush1.bf16.msra.mxu0 0
    %772 = vmatprep.subr.bf16.mxu0 0
    %773 = vmatpush1.bf16.msra.mxu0 0
    %774 = vmatprep.subr.bf16.mxu0 0
    %775 = vmatpush1.bf16.msra.mxu0 0
    %776 = vmatprep.mubr.bf16.mxu0 0
    %777 = vmatmul.mubr.bf16.gmra.mrb[0].mxu0 %v739
    %v778 = vpop.f32.mrb[0].mxu0
    %v779 = vadd.f32 0.0, %v778
    %v780 = vpop.f32.mrb[0].mxu0
    %v781 = vpop.f32.mrb[0].mxu0
    %v782 = vpop.f32.mrb[0].mxu0
    %783 = vdwg.mxu0
    %785 = vrot.lane.b32.xlu0 %v403, 96
    %v786 = vpop.permute.xlu0 %785
    %v788 = vsel %vm656, %v683, 0
    %v791 = vsel %vm691, %v786, 0
    %793 = vmatprep.subr.bf16.mxu0 0
    %794 = vmatpush1.bf16.msra.mxu0 %v791
    %795 = vmatprep.subr.bf16.mxu0 0
    %796 = vmatpush1.bf16.msra.mxu0 0
    %797 = vmatprep.subr.bf16.mxu0 0
    %798 = vmatpush1.bf16.msra.mxu0 0
    %799 = vmatprep.subr.bf16.mxu0 0
    %800 = vmatpush1.bf16.msra.mxu0 0
    %801 = vmatprep.subr.bf16.mxu0 0
    %802 = vmatpush1.bf16.msra.mxu0 0
    %803 = vmatprep.subr.bf16.mxu0 0
    %804 = vmatpush1.bf16.msra.mxu0 0
    %805 = vmatprep.subr.bf16.mxu0 0
    %806 = vmatpush1.bf16.msra.mxu0 0
    %807 = vmatprep.subr.bf16.mxu0 0
    %808 = vmatpush1.bf16.msra.mxu0 0
    %809 = vmatprep.subr.bf16.mxu0 0
    %810 = vmatpush1.bf16.msra.mxu0 0
    %811 = vmatprep.subr.bf16.mxu0 0
    %812 = vmatpush1.bf16.msra.mxu0 0
    %813 = vmatprep.subr.bf16.mxu0 0
    %814 = vmatpush1.bf16.msra.mxu0 0
    %815 = vmatprep.subr.bf16.mxu0 0
    %816 = vmatpush1.bf16.msra.mxu0 0
    %817 = vmatprep.subr.bf16.mxu0 0
    %818 = vmatpush1.bf16.msra.mxu0 0
    %819 = vmatprep.subr.bf16.mxu0 0
    %820 = vmatpush1.bf16.msra.mxu0 0
    %821 = vmatprep.subr.bf16.mxu0 0
    %822 = vmatpush1.bf16.msra.mxu0 0
    %823 = vmatprep.subr.bf16.mxu0 0
    %824 = vmatpush1.bf16.msra.mxu0 0
    %825 = vmatprep.mubr.bf16.mxu0 0
    %826 = vmatmul.mubr.bf16.gmra.mrb[0].mxu0 %v788
    %v827 = vpop.f32.mrb[0].mxu0
    %v828 = vadd.f32 0.0, %v827
    %v829 = vpop.f32.mrb[0].mxu0
    %v830 = vpop.f32.mrb[0].mxu0
    %v831 = vpop.f32.mrb[0].mxu0
    %832 = vdwg.mxu0
    %834 = vrot.lane.b32.xlu0 %v404, 96
    %v835 = vpop.permute.xlu0 %834
    %v837 = vsel %vm656, %v684, 0
    %v840 = vsel %vm691, %v835, 0
    %842 = vmatprep.subr.bf16.mxu0 0
    %843 = vmatpush1.bf16.msra.mxu0 %v840
    %844 = vmatprep.subr.bf16.mxu0 0
    %845 = vmatpush1.bf16.msra.mxu0 0
    %846 = vmatprep.subr.bf16.mxu0 0
    %847 = vmatpush1.bf16.msra.mxu0 0
    %848 = vmatprep.subr.bf16.mxu0 0
    %849 = vmatpush1.bf16.msra.mxu0 0
    %850 = vmatprep.subr.bf16.mxu0 0
    %851 = vmatpush1.bf16.msra.mxu0 0
    %852 = vmatprep.subr.bf16.mxu0 0
    %853 = vmatpush1.bf16.msra.mxu0 0
    %854 = vmatprep.subr.bf16.mxu0 0
    %855 = vmatpush1.bf16.msra.mxu0 0
    %856 = vmatprep.subr.bf16.mxu0 0
    %857 = vmatpush1.bf16.msra.mxu0 0
    %858 = vmatprep.subr.bf16.mxu0 0
    %859 = vmatpush1.bf16.msra.mxu0 0
    %860 = vmatprep.subr.bf16.mxu0 0
    %861 = vmatpush1.bf16.msra.mxu0 0
    %862 = vmatprep.subr.bf16.mxu0 0
    %863 = vmatpush1.bf16.msra.mxu0 0
    %864 = vmatprep.subr.bf16.mxu0 0
    %865 = vmatpush1.bf16.msra.mxu0 0
    %866 = vmatprep.subr.bf16.mxu0 0
    %867 = vmatpush1.bf16.msra.mxu0 0
    %868 = vmatprep.subr.bf16.mxu0 0
    %869 = vmatpush1.bf16.msra.mxu0 0
    %870 = vmatprep.subr.bf16.mxu0 0
    %871 = vmatpush1.bf16.msra.mxu0 0
    %872 = vmatprep.subr.bf16.mxu0 0
    %873 = vmatpush1.bf16.msra.mxu0 0
    %874 = vmatprep.mubr.bf16.mxu0 0
    %875 = vmatmul.mubr.bf16.gmra.mrb[0].mxu0 %v837
    %v876 = vpop.f32.mrb[0].mxu0
    %v877 = vadd.f32 0.0, %v876
    %v878 = vpop.f32.mrb[0].mxu0
    %v879 = vpop.f32.mrb[0].mxu0
    %v880 = vpop.f32.mrb[0].mxu0
    %881 = vdwg.mxu0
    %v882 = vsel %vm656, %v674, 0.0
    %883 = vadd.xlane.f32.xlu0 %v882
    %v884 = vpop.xlane.xlu0 %883
    %v885 = vsel %vm656, %v676, 0.0
    %886 = vadd.xlane.f32.xlu0 %v885
    %v887 = vpop.xlane.xlu0 %886
    %v888 = vsel %vm656, %v678, 0.0
    %889 = vadd.xlane.f32.xlu0 %v888
    %v890 = vpop.xlane.xlu0 %889
    %v891 = vsel %vm656, %v680, 0.0
    %892 = vadd.xlane.f32.xlu0 %v891
    %v893 = vpop.xlane.xlu0 %892
    %v894 = vrcp.pop %v884
    %v895 = vrcp.pop %v887
    %v896 = vrcp.pop %v890
    %v897 = vrcp.pop %v893
    %v898 = vmul.f32 %v730, %v894
    %v899 = vmul.f32 %v779, %v895
    %v900 = vmul.f32 %v828, %v896
    %v901 = vmul.f32 %v877, %v897
    %v902 = vpack.c.bf16 %v899, %v898
    %v903 = vpack.c.bf16 %v901, %v900
    %v908 = vunpack.c.l.b16 %v159
    %v909 = vunpack.c.l.b16 %v160
    %v910 = vunpack.c.l.b16 %v161
    %v911 = vunpack.c.l.b16 %v162
    %v912 = vpack.c.b16 %v909, %v908
    %v913 = vpack.c.b16 %v911, %v910
    %v917 = vsel %vm209, %v902, 0
    %v920 = vsel %vm209, %v903, 0
    %922 = vmatprep.subr.bf16.mxu0 0
    %923 = vmatpush1.bf16.msra.mxu0 %v912
    %924 = vmatprep.subr.bf16.mxu0 0
    %925 = vmatpush1.bf16.msra.mxu0 %v913
    %926 = vmatprep.subr.bf16.mxu0 0
    %927 = vmatpush1.bf16.msra.mxu0 0
    %928 = vmatprep.subr.bf16.mxu0 0
    %929 = vmatpush1.bf16.msra.mxu0 0
    %930 = vmatprep.subr.bf16.mxu0 0
    %931 = vmatpush1.bf16.msra.mxu0 0
    %932 = vmatprep.subr.bf16.mxu0 0
    %933 = vmatpush1.bf16.msra.mxu0 0
    %934 = vmatprep.subr.bf16.mxu0 0
    %935 = vmatpush1.bf16.msra.mxu0 0
    %936 = vmatprep.subr.bf16.mxu0 0
    %937 = vmatpush1.bf16.msra.mxu0 0
    %938 = vmatprep.subr.bf16.mxu0 0
    %939 = vmatpush1.bf16.msra.mxu0 0
    %940 = vmatprep.subr.bf16.mxu0 0
    %941 = vmatpush1.bf16.msra.mxu0 0
    %942 = vmatprep.subr.bf16.mxu0 0
    %943 = vmatpush1.bf16.msra.mxu0 0
    %944 = vmatprep.subr.bf16.mxu0 0
    %945 = vmatpush1.bf16.msra.mxu0 0
    %946 = vmatprep.subr.bf16.mxu0 0
    %947 = vmatpush1.bf16.msra.mxu0 0
    %948 = vmatprep.subr.bf16.mxu0 0
    %949 = vmatpush1.bf16.msra.mxu0 0
    %950 = vmatprep.subr.bf16.mxu0 0
    %951 = vmatpush1.bf16.msra.mxu0 0
    %952 = vmatprep.subr.bf16.mxu0 0
    %953 = vmatpush1.bf16.msra.mxu0 0
    %954 = vmatprep.mubr.bf16.mxu0 0
    %955 = vmatmul.mubr.bf16.gmra.mrb[0].mxu0 %v917
    %v956 = vpop.f32.mrb[0].mxu0
    %v957 = vadd.f32 0.0, %v956
    %v958 = vpop.f32.mrb[0].mxu0
    %v959 = vpop.f32.mrb[0].mxu0
    %v960 = vadd.f32 0.0, %v959
    %v961 = vpop.f32.mrb[0].mxu0
    %962 = vmatprep.mubr.bf16.mxu0 0
    %963 = vmatmul.mubr.bf16.gmra.mrb[0].mxu0 %v920
    %v964 = vpop.f32.mrb[0].mxu0
    %v965 = vadd.f32 0.0, %v964
    %v966 = vpop.f32.mrb[0].mxu0
    %v967 = vpop.f32.mrb[0].mxu0
    %v968 = vadd.f32 0.0, %v967
    %v969 = vpop.f32.mrb[0].mxu0
    %970 = vdwg.mxu0
    %v971 = vadd.f32 %v143, %v957
    %v972 = vadd.f32 %v144, %v960
    %v973 = vadd.f32 %v145, %v965
    %v974 = vadd.f32 %v146, %v968
    %v975 = vlaneseq
    %v976 = vshrl.u32 %v975, 7
    %v977 = vsub.s32 0, %v976
    %v978 = vrot.slane %v971, %v977
    %v979 = vlaneseq
    %v980 = vshrl.u32 %v979, 7
    %v981 = vsub.s32 0, %v980
    %v982 = vrot.slane %v972, %v981
    %v983 = vlaneseq
    %v984 = vshrl.u32 %v983, 7
    %v985 = vsub.s32 0, %v984
    %v986 = vrot.slane %v973, %v985
    %v987 = vlaneseq
    %v988 = vshrl.u32 %v987, 7
    %v989 = vsub.s32 0, %v988
    %v990 = vrot.slane %v974, %v989
    %v991 = vlaneseq
    %v992 = vshrl.u32 %v991, 7
    %v993 = vsub.s32 7, %v992
    %v994 = vrot.slane %v971, %v993
    %v995 = vlaneseq
    %v996 = vshrl.u32 %v995, 7
    %v997 = vsub.s32 7, %v996
    %v998 = vrot.slane %v972, %v997
    %v999 = vlaneseq
    %v1000 = vshrl.u32 %v999, 7
    %v1001 = vsub.s32 7, %v1000
    %v1002 = vrot.slane %v973, %v1001
    %v1003 = vlaneseq
    %v1004 = vshrl.u32 %v1003, 7
    %v1005 = vsub.s32 7, %v1004
    %v1006 = vrot.slane %v974, %v1005
    %v1011 = vrot.slane %v971, 1
    %v1012 = vrot.slane %v972, 1
    %v1013 = vrot.slane %v973, 1
    %v1014 = vrot.slane %v974, 1
    %vm1019 = vcmask 1046528
    %v1020 = vsel %vm1019, %v1011, %v1011
    %v1021 = vsel %vm1019, %v1012, %v1012
    %v1022 = vsel %vm1019, %v1013, %v1013
    %v1023 = vsel %vm1019, %v1014, %v1014
    %v1024 = vsel %vm407, %v994, %v1020
    %v1025 = vsel %vm407, %v998, %v1021
    %v1026 = vsel %vm407, %v1002, %v1022
    %v1027 = vsel %vm407, %v1006, %v1023
    %v1028 = vrot.slane %v971, 7
    %v1029 = vrot.slane %v972, 7
    %v1030 = vrot.slane %v973, 7
    %v1031 = vrot.slane %v974, 7
    %vm1036 = vcmask 1040384
    %v1037 = vsel %vm1036, %v1028, %v1028
    %v1038 = vsel %vm1036, %v1029, %v1029
    %v1039 = vsel %vm1036, %v1030, %v1030
    %v1040 = vsel %vm1036, %v1031, %v1031
    %v1041 = vsel %vm409, %v978, %v1037
    %v1042 = vsel %vm409, %v982, %v1038
    %v1043 = vsel %vm409, %v986, %v1039
    %v1044 = vsel %vm409, %v990, %v1040
    %v1045 = vadd.f32 %v971, %v1024
    %v1046 = vadd.f32 %v972, %v1025
    %v1047 = vadd.f32 %v973, %v1026
    %v1048 = vadd.f32 %v974, %v1027
    %v1049 = vadd.f32 %v1045, %v1041
    %v1050 = vadd.f32 %v1046, %v1042
    %v1051 = vadd.f32 %v1047, %v1043
    %v1052 = vadd.f32 %v1048, %v1044
    %v1053 = vrot.slane %v971, 2
    %v1054 = vrot.slane %v972, 2
    %v1055 = vrot.slane %v973, 2
    %v1056 = vrot.slane %v974, 2
    %vm1061 = vcmask 1045504
    %v1062 = vsel %vm1061, %v1053, %v1053
    %v1063 = vsel %vm1061, %v1054, %v1054
    %v1064 = vsel %vm1061, %v1055, %v1055
    %v1065 = vsel %vm1061, %v1056, %v1056
    %v1066 = vsel %vm408, %v994, %v1062
    %v1067 = vsel %vm408, %v998, %v1063
    %v1068 = vsel %vm408, %v1002, %v1064
    %v1069 = vsel %vm408, %v1006, %v1065
    %v1070 = vrot.slane %v971, 6
    %v1071 = vrot.slane %v972, 6
    %v1072 = vrot.slane %v973, 6
    %v1073 = vrot.slane %v974, 6
    %vm1078 = vcmask 1041408
    %v1079 = vsel %vm1078, %v1070, %v1070
    %v1080 = vsel %vm1078, %v1071, %v1071
    %v1081 = vsel %vm1078, %v1072, %v1072
    %v1082 = vsel %vm1078, %v1073, %v1073
    %v1083 = vsel %vm410, %v978, %v1079
    %v1084 = vsel %vm410, %v982, %v1080
    %v1085 = vsel %vm410, %v986, %v1081
    %v1086 = vsel %vm410, %v990, %v1082
    %v1087 = vadd.f32 %v1049, %v1066
    %v1088 = vadd.f32 %v1050, %v1067
    %v1089 = vadd.f32 %v1051, %v1068
    %v1090 = vadd.f32 %v1052, %v1069
    %v1091 = vadd.f32 %v1087, %v1083
    %v1092 = vadd.f32 %v1088, %v1084
    %v1093 = vadd.f32 %v1089, %v1085
    %v1094 = vadd.f32 %v1090, %v1086
    %v1095 = vmul.f32 %v1091, 0.2
    %v1096 = vmul.f32 %v1092, 0.2
    %v1097 = vmul.f32 %v1093, 0.2
    %v1098 = vmul.f32 %v1094, 0.2
    %v1099 = vsub.f32 %v971, %v1095
    %v1100 = vsub.f32 %v972, %v1096
    %v1101 = vsub.f32 %v973, %v1097
    %v1102 = vsub.f32 %v974, %v1098
    %v1103 = vpack.c.bf16 %v1100, %v1099
    %v1104 = vpack.c.bf16 %v1102, %v1101
    %v1106 = vsel %vm209, %v1103, 0
    %v1109 = vsel %vm209, %v1104, 0
    %1111 = vmatprep.subr.bf16.mxu0 0
    %1112 = vmatpush1.bf16.msra.mxu0 %v421
    %1113 = vmatprep.subr.bf16.mxu0 0
    %1114 = vmatpush1.bf16.msra.mxu0 %v422
    %1115 = vmatprep.subr.bf16.mxu0 0
    %1116 = vmatpush1.bf16.msra.mxu0 0
    %1117 = vmatprep.subr.bf16.mxu0 0
    %1118 = vmatpush1.bf16.msra.mxu0 0
    %1119 = vmatprep.subr.bf16.mxu0 0
    %1120 = vmatpush1.bf16.msra.mxu0 0
    %1121 = vmatprep.subr.bf16.mxu0 0
    %1122 = vmatpush1.bf16.msra.mxu0 0
    %1123 = vmatprep.subr.bf16.mxu0 0
    %1124 = vmatpush1.bf16.msra.mxu0 0
    %1125 = vmatprep.subr.bf16.mxu0 0
    %1126 = vmatpush1.bf16.msra.mxu0 0
    %1127 = vmatprep.subr.bf16.mxu0 0
    %1128 = vmatpush1.bf16.msra.mxu0 0
    %1129 = vmatprep.subr.bf16.mxu0 0
    %1130 = vmatpush1.bf16.msra.mxu0 0
    %1131 = vmatprep.subr.bf16.mxu0 0
    %1132 = vmatpush1.bf16.msra.mxu0 0
    %1133 = vmatprep.subr.bf16.mxu0 0
    %1134 = vmatpush1.bf16.msra.mxu0 0
    %1135 = vmatprep.subr.bf16.mxu0 0
    %1136 = vmatpush1.bf16.msra.mxu0 0
    %1137 = vmatprep.subr.bf16.mxu0 0
    %1138 = vmatpush1.bf16.msra.mxu0 0
    %1139 = vmatprep.subr.bf16.mxu0 0
    %1140 = vmatpush1.bf16.msra.mxu0 0
    %1141 = vmatprep.subr.bf16.mxu0 0
    %1142 = vmatpush1.bf16.msra.mxu0 0
    %1143 = vmatprep.mubr.bf16.mxu0 0
    %1144 = vmatmul.mubr.bf16.gmra.mrb[0].mxu0 %v1106
    %v1145 = vpop.f32.mrb[0].mxu0
    %v1146 = vadd.f32 0.0, %v1145
    %v1147 = vpop.f32.mrb[0].mxu0
    %v1148 = vpop.f32.mrb[0].mxu0
    %v1149 = vadd.f32 0.0, %v1148
    %v1150 = vpop.f32.mrb[0].mxu0
    %1151 = vmatprep.mubr.bf16.mxu0 0
    %1152 = vmatmul.mubr.bf16.gmra.mrb[0].mxu0 %v1109
    %v1153 = vpop.f32.mrb[0].mxu0
    %v1154 = vadd.f32 0.0, %v1153
    %v1155 = vpop.f32.mrb[0].mxu0
    %v1156 = vpop.f32.mrb[0].mxu0
    %v1157 = vadd.f32 0.0, %v1156
    %v1158 = vpop.f32.mrb[0].mxu0
    %1159 = vdwg.mxu0
    %v1160 = vpack.c.bf16 %v1146, %v1146
    %v1161 = vpack.c.bf16 %v1149, %v1149
    %v1162 = vpack.c.bf16 %v1154, %v1154
    %v1163 = vpack.c.bf16 %v1157, %v1157
    %v1165 = vsel %vm209, %v1160, 0
    %1167 = vmatprep.subr.bf16.mxu0 0
    %1168 = vmatpush1.bf16.msra.mxu0 %v393
    %1169 = vmatprep.subr.bf16.mxu0 0
    %1170 = vmatpush1.bf16.msra.mxu0 %v394
    %1171 = vmatprep.subr.bf16.mxu0 0
    %1172 = vmatpush1.bf16.msra.mxu0 0
    %1173 = vmatprep.subr.bf16.mxu0 0
    %1174 = vmatpush1.bf16.msra.mxu0 0
    %1175 = vmatprep.subr.bf16.mxu0 0
    %1176 = vmatpush1.bf16.msra.mxu0 0
    %1177 = vmatprep.subr.bf16.mxu0 0
    %1178 = vmatpush1.bf16.msra.mxu0 0
    %1179 = vmatprep.subr.bf16.mxu0 0
    %1180 = vmatpush1.bf16.msra.mxu0 0
    %1181 = vmatprep.subr.bf16.mxu0 0
    %1182 = vmatpush1.bf16.msra.mxu0 0
    %1183 = vmatprep.subr.bf16.mxu0 0
    %1184 = vmatpush1.bf16.msra.mxu0 0
    %1185 = vmatprep.subr.bf16.mxu0 0
    %1186 = vmatpush1.bf16.msra.mxu0 0
    %1187 = vmatprep.subr.bf16.mxu0 0
    %1188 = vmatpush1.bf16.msra.mxu0 0
    %1189 = vmatprep.subr.bf16.mxu0 0
    %1190 = vmatpush1.bf16.msra.mxu0 0
    %1191 = vmatprep.subr.bf16.mxu0 0
    %1192 = vmatpush1.bf16.msra.mxu0 0
    %1193 = vmatprep.subr.bf16.mxu0 0
    %1194 = vmatpush1.bf16.msra.mxu0 0
    %1195 = vmatprep.subr.bf16.mxu0 0
    %1196 = vmatpush1.bf16.msra.mxu0 0
    %1197 = vmatprep.subr.bf16.mxu0 0
    %1198 = vmatpush1.bf16.msra.mxu0 0
    %1199 = vmatprep.mubr.bf16.mxu0 0
    %1200 = vmatmul.mubr.bf16.gmra.mrb[0].mxu0 %v1165
    %v1201 = vpop.f32.mrb[0].mxu0
    %v1202 = vadd.f32 0.0, %v1201
    %v1203 = vpop.f32.mrb[0].mxu0
    %v1204 = vpop.f32.mrb[0].mxu0
    %v1205 = vpop.f32.mrb[0].mxu0
    %1206 = vdwg.mxu0
    %v1208 = vsel %vm209, %v1161, 0
    %1210 = vmatprep.subr.bf16.mxu0 0
    %1211 = vmatpush1.bf16.msra.mxu0 %v395
    %1212 = vmatprep.subr.bf16.mxu0 0
    %1213 = vmatpush1.bf16.msra.mxu0 %v396
    %1214 = vmatprep.subr.bf16.mxu0 0
    %1215 = vmatpush1.bf16.msra.mxu0 0
    %1216 = vmatprep.subr.bf16.mxu0 0
    %1217 = vmatpush1.bf16.msra.mxu0 0
    %1218 = vmatprep.subr.bf16.mxu0 0
    %1219 = vmatpush1.bf16.msra.mxu0 0
    %1220 = vmatprep.subr.bf16.mxu0 0
    %1221 = vmatpush1.bf16.msra.mxu0 0
    %1222 = vmatprep.subr.bf16.mxu0 0
    %1223 = vmatpush1.bf16.msra.mxu0 0
    %1224 = vmatprep.subr.bf16.mxu0 0
    %1225 = vmatpush1.bf16.msra.mxu0 0
    %1226 = vmatprep.subr.bf16.mxu0 0
    %1227 = vmatpush1.bf16.msra.mxu0 0
    %1228 = vmatprep.subr.bf16.mxu0 0
    %1229 = vmatpush1.bf16.msra.mxu0 0
    %1230 = vmatprep.subr.bf16.mxu0 0
    %1231 = vmatpush1.bf16.msra.mxu0 0
    %1232 = vmatprep.subr.bf16.mxu0 0
    %1233 = vmatpush1.bf16.msra.mxu0 0
    %1234 = vmatprep.subr.bf16.mxu0 0
    %1235 = vmatpush1.bf16.msra.mxu0 0
    %1236 = vmatprep.subr.bf16.mxu0 0
    %1237 = vmatpush1.bf16.msra.mxu0 0
    %1238 = vmatprep.subr.bf16.mxu0 0
    %1239 = vmatpush1.bf16.msra.mxu0 0
    %1240 = vmatprep.subr.bf16.mxu0 0
    %1241 = vmatpush1.bf16.msra.mxu0 0
    %1242 = vmatprep.mubr.bf16.mxu0 0
    %1243 = vmatmul.mubr.bf16.gmra.mrb[0].mxu0 %v1208
    %v1244 = vpop.f32.mrb[0].mxu0
    %v1245 = vadd.f32 0.0, %v1244
    %v1246 = vpop.f32.mrb[0].mxu0
    %v1247 = vpop.f32.mrb[0].mxu0
    %v1248 = vpop.f32.mrb[0].mxu0
    %1249 = vdwg.mxu0
    %v1251 = vsel %vm209, %v1162, 0
    %1253 = vmatprep.subr.bf16.mxu0 0
    %1254 = vmatpush1.bf16.msra.mxu0 %v397
    %1255 = vmatprep.subr.bf16.mxu0 0
    %1256 = vmatpush1.bf16.msra.mxu0 %v398
    %1257 = vmatprep.subr.bf16.mxu0 0
    %1258 = vmatpush1.bf16.msra.mxu0 0
    %1259 = vmatprep.subr.bf16.mxu0 0
    %1260 = vmatpush1.bf16.msra.mxu0 0
    %1261 = vmatprep.subr.bf16.mxu0 0
    %1262 = vmatpush1.bf16.msra.mxu0 0
    %1263 = vmatprep.subr.bf16.mxu0 0
    %1264 = vmatpush1.bf16.msra.mxu0 0
    %1265 = vmatprep.subr.bf16.mxu0 0
    %1266 = vmatpush1.bf16.msra.mxu0 0
    %1267 = vmatprep.subr.bf16.mxu0 0
    %1268 = vmatpush1.bf16.msra.mxu0 0
    %1269 = vmatprep.subr.bf16.mxu0 0
    %1270 = vmatpush1.bf16.msra.mxu0 0
    %1271 = vmatprep.subr.bf16.mxu0 0
    %1272 = vmatpush1.bf16.msra.mxu0 0
    %1273 = vmatprep.subr.bf16.mxu0 0
    %1274 = vmatpush1.bf16.msra.mxu0 0
    %1275 = vmatprep.subr.bf16.mxu0 0
    %1276 = vmatpush1.bf16.msra.mxu0 0
    %1277 = vmatprep.subr.bf16.mxu0 0
    %1278 = vmatpush1.bf16.msra.mxu0 0
    %1279 = vmatprep.subr.bf16.mxu0 0
    %1280 = vmatpush1.bf16.msra.mxu0 0
    %1281 = vmatprep.subr.bf16.mxu0 0
    %1282 = vmatpush1.bf16.msra.mxu0 0
    %1283 = vmatprep.subr.bf16.mxu0 0
    %1284 = vmatpush1.bf16.msra.mxu0 0
    %1285 = vmatprep.mubr.bf16.mxu0 0
    %1286 = vmatmul.mubr.bf16.gmra.mrb[0].mxu0 %v1251
    %v1287 = vpop.f32.mrb[0].mxu0
    %v1288 = vadd.f32 0.0, %v1287
    %v1289 = vpop.f32.mrb[0].mxu0
    %v1290 = vpop.f32.mrb[0].mxu0
    %v1291 = vpop.f32.mrb[0].mxu0
    %1292 = vdwg.mxu0
    %v1294 = vsel %vm209, %v1163, 0
    %1296 = vmatprep.subr.bf16.mxu0 0
    %1297 = vmatpush1.bf16.msra.mxu0 %v399
    %1298 = vmatprep.subr.bf16.mxu0 0
    %1299 = vmatpush1.bf16.msra.mxu0 %v400
    %1300 = vmatprep.subr.bf16.mxu0 0
    %1301 = vmatpush1.bf16.msra.mxu0 0
    %1302 = vmatprep.subr.bf16.mxu0 0
    %1303 = vmatpush1.bf16.msra.mxu0 0
    %1304 = vmatprep.subr.bf16.mxu0 0
    %1305 = vmatpush1.bf16.msra.mxu0 0
    %1306 = vmatprep.subr.bf16.mxu0 0
    %1307 = vmatpush1.bf16.msra.mxu0 0
    %1308 = vmatprep.subr.bf16.mxu0 0
    %1309 = vmatpush1.bf16.msra.mxu0 0
    %1310 = vmatprep.subr.bf16.mxu0 0
    %1311 = vmatpush1.bf16.msra.mxu0 0
    %1312 = vmatprep.subr.bf16.mxu0 0
    %1313 = vmatpush1.bf16.msra.mxu0 0
    %1314 = vmatprep.subr.bf16.mxu0 0
    %1315 = vmatpush1.bf16.msra.mxu0 0
    %1316 = vmatprep.subr.bf16.mxu0 0
    %1317 = vmatpush1.bf16.msra.mxu0 0
    %1318 = vmatprep.subr.bf16.mxu0 0
    %1319 = vmatpush1.bf16.msra.mxu0 0
    %1320 = vmatprep.subr.bf16.mxu0 0
    %1321 = vmatpush1.bf16.msra.mxu0 0
    %1322 = vmatprep.subr.bf16.mxu0 0
    %1323 = vmatpush1.bf16.msra.mxu0 0
    %1324 = vmatprep.subr.bf16.mxu0 0
    %1325 = vmatpush1.bf16.msra.mxu0 0
    %1326 = vmatprep.subr.bf16.mxu0 0
    %1327 = vmatpush1.bf16.msra.mxu0 0
    %1328 = vmatprep.mubr.bf16.mxu0 0
    %1329 = vmatmul.mubr.bf16.gmra.mrb[0].mxu0 %v1294
    %v1330 = vpop.f32.mrb[0].mxu0
    %v1331 = vadd.f32 0.0, %v1330
    %v1332 = vpop.f32.mrb[0].mxu0
    %v1333 = vpop.f32.mrb[0].mxu0
    %v1334 = vpop.f32.mrb[0].mxu0
    %1335 = vdwg.mxu0
    %v1336 = vsel %vm656, %v1202, -inf
    %1337 = vmax.xlane.f32.xlu0 %v1336
    %v1338 = vpop.xlane.xlu0 %1337
    %v1339 = vsel %vm656, %v1245, -inf
    %1340 = vmax.xlane.f32.xlu0 %v1339
    %v1341 = vpop.xlane.xlu0 %1340
    %v1342 = vsel %vm656, %v1288, -inf
    %1343 = vmax.xlane.f32.xlu0 %v1342
    %v1344 = vpop.xlane.xlu0 %1343
    %v1345 = vsel %vm656, %v1331, -inf
    %1346 = vmax.xlane.f32.xlu0 %v1345
    %v1347 = vpop.xlane.xlu0 %1346
    %v1348 = vsub.f32 %v1202, %v1338
    %v1349 = vsub.f32 %v1245, %v1341
    %v1350 = vsub.f32 %v1288, %v1344
    %v1351 = vsub.f32 %v1331, %v1347
    %v1352 = vmul.f32 %v1348, 1.442695
    %v1353 = vpow.pop %v1352
    %v1354 = vmul.f32 %v1349, 1.442695
    %v1355 = vpow.pop %v1354
    %v1356 = vmul.f32 %v1350, 1.442695
    %v1357 = vpow.pop %v1356
    %v1358 = vmul.f32 %v1351, 1.442695
    %v1359 = vpow.pop %v1358
    %v1360 = vpack.c.bf16 %v1353, %v1353
    %v1361 = vpack.c.bf16 %v1355, %v1355
    %v1362 = vpack.c.bf16 %v1357, %v1357
    %v1363 = vpack.c.bf16 %v1359, %v1359
    %v1365 = vsel %vm656, %v1360, 0
    %1367 = vmatprep.subr.bf16.mxu0 0
    %1368 = vmatpush1.bf16.msra.mxu0 %v693
    %1369 = vmatprep.subr.bf16.mxu0 0
    %1370 = vmatpush1.bf16.msra.mxu0 0
    %1371 = vmatprep.subr.bf16.mxu0 0
    %1372 = vmatpush1.bf16.msra.mxu0 0
    %1373 = vmatprep.subr.bf16.mxu0 0
    %1374 = vmatpush1.bf16.msra.mxu0 0
    %1375 = vmatprep.subr.bf16.mxu0 0
    %1376 = vmatpush1.bf16.msra.mxu0 0
    %1377 = vmatprep.subr.bf16.mxu0 0
    %1378 = vmatpush1.bf16.msra.mxu0 0
    %1379 = vmatprep.subr.bf16.mxu0 0
    %1380 = vmatpush1.bf16.msra.mxu0 0
    %1381 = vmatprep.subr.bf16.mxu0 0
    %1382 = vmatpush1.bf16.msra.mxu0 0
    %1383 = vmatprep.subr.bf16.mxu0 0
    %1384 = vmatpush1.bf16.msra.mxu0 0
    %1385 = vmatprep.subr.bf16.mxu0 0
    %1386 = vmatpush1.bf16.msra.mxu0 0
    %1387 = vmatprep.subr.bf16.mxu0 0
    %1388 = vmatpush1.bf16.msra.mxu0 0
    %1389 = vmatprep.subr.bf16.mxu0 0
    %1390 = vmatpush1.bf16.msra.mxu0 0
    %1391 = vmatprep.subr.bf16.mxu0 0
    %1392 = vmatpush1.bf16.msra.mxu0 0
    %1393 = vmatprep.subr.bf16.mxu0 0
    %1394 = vmatpush1.bf16.msra.mxu0 0
    %1395 = vmatprep.subr.bf16.mxu0 0
    %1396 = vmatpush1.bf16.msra.mxu0 0
    %1397 = vmatprep.subr.bf16.mxu0 0
    %1398 = vmatpush1.bf16.msra.mxu0 0
    %1399 = vmatprep.mubr.bf16.mxu0 0
    %1400 = vmatmul.mubr.bf16.gmra.mrb[0].mxu0 %v1365
    %v1401 = vpop.f32.mrb[0].mxu0
    %v1402 = vadd.f32 0.0, %v1401
    %v1403 = vpop.f32.mrb[0].mxu0
    %v1404 = vpop.f32.mrb[0].mxu0
    %v1405 = vpop.f32.mrb[0].mxu0
    %1406 = vdwg.mxu0
    %v1408 = vsel %vm656, %v1361, 0
    %1410 = vmatprep.subr.bf16.mxu0 0
    %1411 = vmatpush1.bf16.msra.mxu0 %v742
    %1412 = vmatprep.subr.bf16.mxu0 0
    %1413 = vmatpush1.bf16.msra.mxu0 0
    %1414 = vmatprep.subr.bf16.mxu0 0
    %1415 = vmatpush1.bf16.msra.mxu0 0
    %1416 = vmatprep.subr.bf16.mxu0 0
    %1417 = vmatpush1.bf16.msra.mxu0 0
    %1418 = vmatprep.subr.bf16.mxu0 0
    %1419 = vmatpush1.bf16.msra.mxu0 0
    %1420 = vmatprep.subr.bf16.mxu0 0
    %1421 = vmatpush1.bf16.msra.mxu0 0
    %1422 = vmatprep.subr.bf16.mxu0 0
    %1423 = vmatpush1.bf16.msra.mxu0 0
    %1424 = vmatprep.subr.bf16.mxu0 0
    %1425 = vmatpush1.bf16.msra.mxu0 0
    %1426 = vmatprep.subr.bf16.mxu0 0
    %1427 = vmatpush1.bf16.msra.mxu0 0
    %1428 = vmatprep.subr.bf16.mxu0 0
    %1429 = vmatpush1.bf16.msra.mxu0 0
    %1430 = vmatprep.subr.bf16.mxu0 0
    %1431 = vmatpush1.bf16.msra.mxu0 0
    %1432 = vmatprep.subr.bf16.mxu0 0
    %1433 = vmatpush1.bf16.msra.mxu0 0
    %1434 = vmatprep.subr.bf16.mxu0 0
    %1435 = vmatpush1.bf16.msra.mxu0 0
    %1436 = vmatprep.subr.bf16.mxu0 0
    %1437 = vmatpush1.bf16.msra.mxu0 0
    %1438 = vmatprep.subr.bf16.mxu0 0
    %1439 = vmatpush1.bf16.msra.mxu0 0
    %1440 = vmatprep.subr.bf16.mxu0 0
    %1441 = vmatpush1.bf16.msra.mxu0 0
    %1442 = vmatprep.mubr.bf16.mxu0 0
    %1443 = vmatmul.mubr.bf16.gmra.mrb[0].mxu0 %v1408
    %v1444 = vpop.f32.mrb[0].mxu0
    %v1445 = vadd.f32 0.0, %v1444
    %v1446 = vpop.f32.mrb[0].mxu0
    %v1447 = vpop.f32.mrb[0].mxu0
    %v1448 = vpop.f32.mrb[0].mxu0
    %1449 = vdwg.mxu0
    %v1451 = vsel %vm656, %v1362, 0
    %1453 = vmatprep.subr.bf16.mxu0 0
    %1454 = vmatpush1.bf16.msra.mxu0 %v791
    %1455 = vmatprep.subr.bf16.mxu0 0
    %1456 = vmatpush1.bf16.msra.mxu0 0
    %1457 = vmatprep.subr.bf16.mxu0 0
    %1458 = vmatpush1.bf16.msra.mxu0 0
    %1459 = vmatprep.subr.bf16.mxu0 0
    %1460 = vmatpush1.bf16.msra.mxu0 0
    %1461 = vmatprep.subr.bf16.mxu0 0
    %1462 = vmatpush1.bf16.msra.mxu0 0
    %1463 = vmatprep.subr.bf16.mxu0 0
    %1464 = vmatpush1.bf16.msra.mxu0 0
    %1465 = vmatprep.subr.bf16.mxu0 0
    %1466 = vmatpush1.bf16.msra.mxu0 0
    %1467 = vmatprep.subr.bf16.mxu0 0
    %1468 = vmatpush1.bf16.msra.mxu0 0
    %1469 = vmatprep.subr.bf16.mxu0 0
    %1470 = vmatpush1.bf16.msra.mxu0 0
    %1471 = vmatprep.subr.bf16.mxu0 0
    %1472 = vmatpush1.bf16.msra.mxu0 0
    %1473 = vmatprep.subr.bf16.mxu0 0
    %1474 = vmatpush1.bf16.msra.mxu0 0
    %1475 = vmatprep.subr.bf16.mxu0 0
    %1476 = vmatpush1.bf16.msra.mxu0 0
    %1477 = vmatprep.subr.bf16.mxu0 0
    %1478 = vmatpush1.bf16.msra.mxu0 0
    %1479 = vmatprep.subr.bf16.mxu0 0
    %1480 = vmatpush1.bf16.msra.mxu0 0
    %1481 = vmatprep.subr.bf16.mxu0 0
    %1482 = vmatpush1.bf16.msra.mxu0 0
    %1483 = vmatprep.subr.bf16.mxu0 0
    %1484 = vmatpush1.bf16.msra.mxu0 0
    %1485 = vmatprep.mubr.bf16.mxu0 0
    %1486 = vmatmul.mubr.bf16.gmra.mrb[0].mxu0 %v1451
    %v1487 = vpop.f32.mrb[0].mxu0
    %v1488 = vadd.f32 0.0, %v1487
    %v1489 = vpop.f32.mrb[0].mxu0
    %v1490 = vpop.f32.mrb[0].mxu0
    %v1491 = vpop.f32.mrb[0].mxu0
    %1492 = vdwg.mxu0
    %v1494 = vsel %vm656, %v1363, 0
    %1496 = vmatprep.subr.bf16.mxu0 0
    %1497 = vmatpush1.bf16.msra.mxu0 %v840
    %1498 = vmatprep.subr.bf16.mxu0 0
    %1499 = vmatpush1.bf16.msra.mxu0 0
    %1500 = vmatprep.subr.bf16.mxu0 0
    %1501 = vmatpush1.bf16.msra.mxu0 0
    %1502 = vmatprep.subr.bf16.mxu0 0
    %1503 = vmatpush1.bf16.msra.mxu0 0
    %1504 = vmatprep.subr.bf16.mxu0 0
    %1505 = vmatpush1.bf16.msra.mxu0 0
    %1506 = vmatprep.subr.bf16.mxu0 0
    %1507 = vmatpush1.bf16.msra.mxu0 0
    %1508 = vmatprep.subr.bf16.mxu0 0
    %1509 = vmatpush1.bf16.msra.mxu0 0
    %1510 = vmatprep.subr.bf16.mxu0 0
    %1511 = vmatpush1.bf16.msra.mxu0 0
    %1512 = vmatprep.subr.bf16.mxu0 0
    %1513 = vmatpush1.bf16.msra.mxu0 0
    %1514 = vmatprep.subr.bf16.mxu0 0
    %1515 = vmatpush1.bf16.msra.mxu0 0
    %1516 = vmatprep.subr.bf16.mxu0 0
    %1517 = vmatpush1.bf16.msra.mxu0 0
    %1518 = vmatprep.subr.bf16.mxu0 0
    %1519 = vmatpush1.bf16.msra.mxu0 0
    %1520 = vmatprep.subr.bf16.mxu0 0
    %1521 = vmatpush1.bf16.msra.mxu0 0
    %1522 = vmatprep.subr.bf16.mxu0 0
    %1523 = vmatpush1.bf16.msra.mxu0 0
    %1524 = vmatprep.subr.bf16.mxu0 0
    %1525 = vmatpush1.bf16.msra.mxu0 0
    %1526 = vmatprep.subr.bf16.mxu0 0
    %1527 = vmatpush1.bf16.msra.mxu0 0
    %1528 = vmatprep.mubr.bf16.mxu0 0
    %1529 = vmatmul.mubr.bf16.gmra.mrb[0].mxu0 %v1494
    %v1530 = vpop.f32.mrb[0].mxu0
    %v1531 = vadd.f32 0.0, %v1530
    %v1532 = vpop.f32.mrb[0].mxu0
    %v1533 = vpop.f32.mrb[0].mxu0
    %v1534 = vpop.f32.mrb[0].mxu0
    %1535 = vdwg.mxu0
    %v1536 = vsel %vm656, %v1353, 0.0
    %1537 = vadd.xlane.f32.xlu0 %v1536
    %v1538 = vpop.xlane.xlu0 %1537
    %v1539 = vsel %vm656, %v1355, 0.0
    %1540 = vadd.xlane.f32.xlu0 %v1539
    %v1541 = vpop.xlane.xlu0 %1540
    %v1542 = vsel %vm656, %v1357, 0.0
    %1543 = vadd.xlane.f32.xlu0 %v1542
    %v1544 = vpop.xlane.xlu0 %1543
    %v1545 = vsel %vm656, %v1359, 0.0
    %1546 = vadd.xlane.f32.xlu0 %v1545
    %v1547 = vpop.xlane.xlu0 %1546
    %v1548 = vrcp.pop %v1538
    %v1549 = vrcp.pop %v1541
    %v1550 = vrcp.pop %v1544
    %v1551 = vrcp.pop %v1547
    %v1552 = vmul.f32 %v1402, %v1548
    %v1553 = vmul.f32 %v1445, %v1549
    %v1554 = vmul.f32 %v1488, %v1550
    %v1555 = vmul.f32 %v1531, %v1551
    %v1556 = vpack.c.bf16 %v1553, %v1552
    %v1557 = vpack.c.bf16 %v1555, %v1554
    %v1559 = vsel %vm209, %v1556, 0
    %v1562 = vsel %vm209, %v1557, 0
    %1564 = vmatprep.subr.bf16.mxu0 0
    %1565 = vmatpush1.bf16.msra.mxu0 %v912
    %1566 = vmatprep.subr.bf16.mxu0 0
    %1567 = vmatpush1.bf16.msra.mxu0 %v913
    %1568 = vmatprep.subr.bf16.mxu0 0
    %1569 = vmatpush1.bf16.msra.mxu0 0
    %1570 = vmatprep.subr.bf16.mxu0 0
    %1571 = vmatpush1.bf16.msra.mxu0 0
    %1572 = vmatprep.subr.bf16.mxu0 0
    %1573 = vmatpush1.bf16.msra.mxu0 0
    %1574 = vmatprep.subr.bf16.mxu0 0
    %1575 = vmatpush1.bf16.msra.mxu0 0
    %1576 = vmatprep.subr.bf16.mxu0 0
    %1577 = vmatpush1.bf16.msra.mxu0 0
    %1578 = vmatprep.subr.bf16.mxu0 0
    %1579 = vmatpush1.bf16.msra.mxu0 0
    %1580 = vmatprep.subr.bf16.mxu0 0
    %1581 = vmatpush1.bf16.msra.mxu0 0
    %1582 = vmatprep.subr.bf16.mxu0 0
    %1583 = vmatpush1.bf16.msra.mxu0 0
    %1584 = vmatprep.subr.bf16.mxu0 0
    %1585 = vmatpush1.bf16.msra.mxu0 0
    %1586 = vmatprep.subr.bf16.mxu0 0
    %1587 = vmatpush1.bf16.msra.mxu0 0
    %1588 = vmatprep.subr.bf16.mxu0 0
    %1589 = vmatpush1.bf16.msra.mxu0 0
    %1590 = vmatprep.subr.bf16.mxu0 0
    %1591 = vmatpush1.bf16.msra.mxu0 0
    %1592 = vmatprep.subr.bf16.mxu0 0
    %1593 = vmatpush1.bf16.msra.mxu0 0
    %1594 = vmatprep.subr.bf16.mxu0 0
    %1595 = vmatpush1.bf16.msra.mxu0 0
    %1596 = vmatprep.mubr.bf16.mxu0 0
    %1597 = vmatmul.mubr.bf16.gmra.mrb[0].mxu0 %v1559
    %v1598 = vpop.f32.mrb[0].mxu0
    %v1599 = vadd.f32 0.0, %v1598
    %v1600 = vpop.f32.mrb[0].mxu0
    %v1601 = vpop.f32.mrb[0].mxu0
    %v1602 = vadd.f32 0.0, %v1601
    %v1603 = vpop.f32.mrb[0].mxu0
    %1604 = vmatprep.mubr.bf16.mxu0 0
    %1605 = vmatmul.mubr.bf16.gmra.mrb[0].mxu0 %v1562
    %v1606 = vpop.f32.mrb[0].mxu0
    %v1607 = vadd.f32 0.0, %v1606
    %v1608 = vpop.f32.mrb[0].mxu0
    %v1609 = vpop.f32.mrb[0].mxu0
    %v1610 = vadd.f32 0.0, %v1609
    %v1611 = vpop.f32.mrb[0].mxu0
    %1612 = vdwg.mxu0
    %v1613 = vadd.f32 %v1099, %v1599
    %v1614 = vadd.f32 %v1100, %v1602
    %v1615 = vadd.f32 %v1101, %v1607
    %v1616 = vadd.f32 %v1102, %v1610
    %v1617 = vlaneseq
    %v1618 = vshrl.u32 %v1617, 7
    %v1619 = vsub.s32 0, %v1618
    %v1620 = vrot.slane %v1613, %v1619
    %v1621 = vlaneseq
    %v1622 = vshrl.u32 %v1621, 7
    %v1623 = vsub.s32 0, %v1622
    %v1624 = vrot.slane %v1614, %v1623
    %v1625 = vlaneseq
    %v1626 = vshrl.u32 %v1625, 7
    %v1627 = vsub.s32 0, %v1626
    %v1628 = vrot.slane %v1615, %v1627
    %v1629 = vlaneseq
    %v1630 = vshrl.u32 %v1629, 7
    %v1631 = vsub.s32 0, %v1630
    %v1632 = vrot.slane %v1616, %v1631
    %v1633 = vlaneseq
    %v1634 = vshrl.u32 %v1633, 7
    %v1635 = vsub.s32 7, %v1634
    %v1636 = vrot.slane %v1613, %v1635
    %v1637 = vlaneseq
    %v1638 = vshrl.u32 %v1637, 7
    %v1639 = vsub.s32 7, %v1638
    %v1640 = vrot.slane %v1614, %v1639
    %v1641 = vlaneseq
    %v1642 = vshrl.u32 %v1641, 7
    %v1643 = vsub.s32 7, %v1642
    %v1644 = vrot.slane %v1615, %v1643
    %v1645 = vlaneseq
    %v1646 = vshrl.u32 %v1645, 7
    %v1647 = vsub.s32 7, %v1646
    %v1648 = vrot.slane %v1616, %v1647
    %v1653 = vrot.slane %v1613, 1
    %v1654 = vrot.slane %v1614, 1
    %v1655 = vrot.slane %v1615, 1
    %v1656 = vrot.slane %v1616, 1
    %v1661 = vsel %vm1019, %v1653, %v1653
    %v1662 = vsel %vm1019, %v1654, %v1654
    %v1663 = vsel %vm1019, %v1655, %v1655
    %v1664 = vsel %vm1019, %v1656, %v1656
    %v1665 = vsel %vm407, %v1636, %v1661
    %v1666 = vsel %vm407, %v1640, %v1662
    %v1667 = vsel %vm407, %v1644, %v1663
    %v1668 = vsel %vm407, %v1648, %v1664
    %v1669 = vrot.slane %v1613, 7
    %v1670 = vrot.slane %v1614, 7
    %v1671 = vrot.slane %v1615, 7
    %v1672 = vrot.slane %v1616, 7
    %v1677 = vsel %vm1036, %v1669, %v1669
    %v1678 = vsel %vm1036, %v1670, %v1670
    %v1679 = vsel %vm1036, %v1671, %v1671
    %v1680 = vsel %vm1036, %v1672, %v1672
    %v1681 = vsel %vm409, %v1620, %v1677
    %v1682 = vsel %vm409, %v1624, %v1678
    %v1683 = vsel %vm409, %v1628, %v1679
    %v1684 = vsel %vm409, %v1632, %v1680
    %v1685 = vadd.f32 %v1613, %v1665
    %v1686 = vadd.f32 %v1614, %v1666
    %v1687 = vadd.f32 %v1615, %v1667
    %v1688 = vadd.f32 %v1616, %v1668
    %v1689 = vadd.f32 %v1685, %v1681
    %v1690 = vadd.f32 %v1686, %v1682
    %v1691 = vadd.f32 %v1687, %v1683
    %v1692 = vadd.f32 %v1688, %v1684
    %v1693 = vrot.slane %v1613, 2
    %v1694 = vrot.slane %v1614, 2
    %v1695 = vrot.slane %v1615, 2
    %v1696 = vrot.slane %v1616, 2
    %v1701 = vsel %vm1061, %v1693, %v1693
    %v1702 = vsel %vm1061, %v1694, %v1694
    %v1703 = vsel %vm1061, %v1695, %v1695
    %v1704 = vsel %vm1061, %v1696, %v1696
    %v1705 = vsel %vm408, %v1636, %v1701
    %v1706 = vsel %vm408, %v1640, %v1702
    %v1707 = vsel %vm408, %v1644, %v1703
    %v1708 = vsel %vm408, %v1648, %v1704
    %v1709 = vrot.slane %v1613, 6
    %v1710 = vrot.slane %v1614, 6
    %v1711 = vrot.slane %v1615, 6
    %v1712 = vrot.slane %v1616, 6
    %v1717 = vsel %vm1078, %v1709, %v1709
    %v1718 = vsel %vm1078, %v1710, %v1710
    %v1719 = vsel %vm1078, %v1711, %v1711
    %v1720 = vsel %vm1078, %v1712, %v1712
    %v1721 = vsel %vm410, %v1620, %v1717
    %v1722 = vsel %vm410, %v1624, %v1718
    %v1723 = vsel %vm410, %v1628, %v1719
    %v1724 = vsel %vm410, %v1632, %v1720
    %v1725 = vadd.f32 %v1689, %v1705
    %v1726 = vadd.f32 %v1690, %v1706
    %v1727 = vadd.f32 %v1691, %v1707
    %v1728 = vadd.f32 %v1692, %v1708
    %v1729 = vadd.f32 %v1725, %v1721
    %v1730 = vadd.f32 %v1726, %v1722
    %v1731 = vadd.f32 %v1727, %v1723
    %v1732 = vadd.f32 %v1728, %v1724
    %v1733 = vmul.f32 %v1729, 0.2
    %v1734 = vmul.f32 %v1730, 0.2
    %v1735 = vmul.f32 %v1731, 0.2
    %v1736 = vmul.f32 %v1732, 0.2
    %v1737 = vsub.f32 %v1613, %v1733
    %v1738 = vsub.f32 %v1614, %v1734
    %v1739 = vsub.f32 %v1615, %v1735
    %v1740 = vsub.f32 %v1616, %v1736
    %v1741 = vpack.c.bf16 %v1738, %v1737
    %v1742 = vpack.c.bf16 %v1740, %v1739
    %v1747 = vunpack.c.l.b16 %v163
    %v1748 = vunpack.c.l.b16 %v164
    %v1749 = vunpack.c.l.b16 %v165
    %v1750 = vunpack.c.l.b16 %v166
    %v1751 = vpack.c.b16 %v1748, %v1747
    %v1752 = vpack.c.b16 %v1750, %v1749
    %v1756 = vsel %vm209, %v1741, 0
    %v1759 = vsel %vm209, %v1742, 0
    %1761 = vmatprep.subr.bf16.mxu0 0
    %1762 = vmatpush1.bf16.msra.mxu0 %v1751
    %1763 = vmatprep.subr.bf16.mxu0 0
    %1764 = vmatpush1.bf16.msra.mxu0 %v1752
    %1765 = vmatprep.subr.bf16.mxu0 0
    %1766 = vmatpush1.bf16.msra.mxu0 0
    %1767 = vmatprep.subr.bf16.mxu0 0
    %1768 = vmatpush1.bf16.msra.mxu0 0
    %1769 = vmatprep.subr.bf16.mxu0 0
    %1770 = vmatpush1.bf16.msra.mxu0 0
    %1771 = vmatprep.subr.bf16.mxu0 0
    %1772 = vmatpush1.bf16.msra.mxu0 0
    %1773 = vmatprep.subr.bf16.mxu0 0
    %1774 = vmatpush1.bf16.msra.mxu0 0
    %1775 = vmatprep.subr.bf16.mxu0 0
    %1776 = vmatpush1.bf16.msra.mxu0 0
    %1777 = vmatprep.subr.bf16.mxu0 0
    %1778 = vmatpush1.bf16.msra.mxu0 0
    %1779 = vmatprep.subr.bf16.mxu0 0
    %1780 = vmatpush1.bf16.msra.mxu0 0
    %1781 = vmatprep.subr.bf16.mxu0 0
    %1782 = vmatpush1.bf16.msra.mxu0 0
    %1783 = vmatprep.subr.bf16.mxu0 0
    %1784 = vmatpush1.bf16.msra.mxu0 0
    %1785 = vmatprep.subr.bf16.mxu0 0
    %1786 = vmatpush1.bf16.msra.mxu0 0
    %1787 = vmatprep.subr.bf16.mxu0 0
    %1788 = vmatpush1.bf16.msra.mxu0 0
    %1789 = vmatprep.subr.bf16.mxu0 0
    %1790 = vmatpush1.bf16.msra.mxu0 0
    %1791 = vmatprep.subr.bf16.mxu0 0
    %1792 = vmatpush1.bf16.msra.mxu0 0
    %1793 = vmatprep.mubr.bf16.mxu0 0
    %1794 = vmatmul.mubr.bf16.gmra.mrb[0].mxu0 %v1756
    %v1795 = vpop.f32.mrb[0].mxu0
    %v1796 = vadd.f32 0.0, %v1795
    %v1797 = vpop.f32.mrb[0].mxu0
    %v1798 = vpop.f32.mrb[0].mxu0
    %v1799 = vadd.f32 0.0, %v1798
    %v1800 = vpop.f32.mrb[0].mxu0
    %1801 = vmatprep.mubr.bf16.mxu0 0
    %1802 = vmatmul.mubr.bf16.gmra.mrb[0].mxu0 %v1759
    %v1803 = vpop.f32.mrb[0].mxu0
    %v1804 = vadd.f32 0.0, %v1803
    %v1805 = vpop.f32.mrb[0].mxu0
    %v1806 = vpop.f32.mrb[0].mxu0
    %v1807 = vadd.f32 0.0, %v1806
    %v1808 = vpop.f32.mrb[0].mxu0
    %1809 = vdwg.mxu0
    %v1810 = vmax.f32 %v1796, 0.0
    %v1811 = vmax.f32 %v1799, 0.0
    %v1812 = vmax.f32 %v1804, 0.0
    %v1813 = vmax.f32 %v1807, 0.0
    %v1814 = vpack.c.bf16 %v1811, %v1810
    %v1815 = vpack.c.bf16 %v1813, %v1812
    %v1832 = vunpack.c.l.b16 %v167
    %v1833 = vunpack.c.l.b16 %v168
    %v1834 = vunpack.c.l.b16 %v169
    %v1835 = vunpack.c.l.b16 %v170
    %v1836 = vunpack.c.l.b16 %v171
    %v1837 = vunpack.c.l.b16 %v172
    %v1838 = vunpack.c.l.b16 %v173
    %v1839 = vunpack.c.l.b16 %v174
    %v1840 = vunpack.c.l.b16 %v175
    %v1841 = vunpack.c.l.b16 %v176
    %v1842 = vunpack.c.l.b16 %v177
    %v1843 = vunpack.c.l.b16 %v178
    %v1844 = vunpack.c.l.b16 %v179
    %v1845 = vunpack.c.l.b16 %v180
    %v1846 = vunpack.c.l.b16 %v181
    %v1847 = vunpack.c.l.b16 %v182
    %v1848 = vpack.c.b16 %v1833, %v1832
    %v1849 = vpack.c.b16 %v1835, %v1834
    %v1850 = vpack.c.b16 %v1837, %v1836
    %v1851 = vpack.c.b16 %v1839, %v1838
    %v1852 = vpack.c.b16 %v1841, %v1840
    %v1853 = vpack.c.b16 %v1843, %v1842
    %v1854 = vpack.c.b16 %v1845, %v1844
    %v1855 = vpack.c.b16 %v1847, %v1846
    %1864 = vmatprep.subr.bf16.mxu0 0
    %1865 = vmatpush1.bf16.msra.mxu0 %v1848
    %1866 = vmatprep.subr.bf16.mxu0 0
    %1867 = vmatpush1.bf16.msra.mxu0 %v1849
    %1868 = vmatprep.subr.bf16.mxu0 0
    %1869 = vmatpush1.bf16.msra.mxu0 %v1850
    %1870 = vmatprep.subr.bf16.mxu0 0
    %1871 = vmatpush1.bf16.msra.mxu0 %v1851
    %1872 = vmatprep.subr.bf16.mxu0 0
    %1873 = vmatpush1.bf16.msra.mxu0 %v1852
    %1874 = vmatprep.subr.bf16.mxu0 0
    %1875 = vmatpush1.bf16.msra.mxu0 %v1853
    %1876 = vmatprep.subr.bf16.mxu0 0
    %1877 = vmatpush1.bf16.msra.mxu0 %v1854
    %1878 = vmatprep.subr.bf16.mxu0 0
    %1879 = vmatpush1.bf16.msra.mxu0 %v1855
    %1880 = vmatprep.subr.bf16.mxu0 0
    %1881 = vmatpush1.bf16.msra.mxu0 0
    %1882 = vmatprep.subr.bf16.mxu0 0
    %1883 = vmatpush1.bf16.msra.mxu0 0
    %1884 = vmatprep.subr.bf16.mxu0 0
    %1885 = vmatpush1.bf16.msra.mxu0 0
    %1886 = vmatprep.subr.bf16.mxu0 0
    %1887 = vmatpush1.bf16.msra.mxu0 0
    %1888 = vmatprep.subr.bf16.mxu0 0
    %1889 = vmatpush1.bf16.msra.mxu0 0
    %1890 = vmatprep.subr.bf16.mxu0 0
    %1891 = vmatpush1.bf16.msra.mxu0 0
    %1892 = vmatprep.subr.bf16.mxu0 0
    %1893 = vmatpush1.bf16.msra.mxu0 0
    %1894 = vmatprep.subr.bf16.mxu0 0
    %1895 = vmatpush1.bf16.msra.mxu0 0
    %1896 = vmatprep.mubr.bf16.mxu0 0
    %1897 = vmatmul.mubr.bf16.gmra.mrb[0].mxu0 %v1814
    %v1898 = vpop.f32.mrb[0].mxu0
    %v1899 = vadd.f32 0.0, %v1898
    %v1900 = vpop.f32.mrb[0].mxu0
    %v1901 = vpop.f32.mrb[0].mxu0
    %v1902 = vadd.f32 0.0, %v1901
    %v1903 = vpop.f32.mrb[0].mxu0
    %1904 = vmatprep.mubr.bf16.mxu0 0
    %1905 = vmatmul.mubr.bf16.gmra.mrb[0].mxu0 %v1815
    %v1906 = vpop.f32.mrb[0].mxu0
    %v1907 = vadd.f32 0.0, %v1906
    %v1908 = vpop.f32.mrb[0].mxu0
    %v1909 = vpop.f32.mrb[0].mxu0
    %v1910 = vadd.f32 0.0, %v1909
    %v1911 = vpop.f32.mrb[0].mxu0
    %1912 = vdwg.mxu0
    %v1913 = vadd.f32 %v1737, %v1899
    %v1914 = vadd.f32 %v1738, %v1902
    %v1915 = vadd.f32 %v1739, %v1907
    %v1916 = vadd.f32 %v1740, %v1910
    %v1917 = vlaneseq
    %v1918 = vshrl.u32 %v1917, 7
    %v1919 = vsub.s32 0, %v1918
    %v1920 = vrot.slane %v1913, %v1919
    %v1921 = vlaneseq
    %v1922 = vshrl.u32 %v1921, 7
    %v1923 = vsub.s32 0, %v1922
    %v1924 = vrot.slane %v1914, %v1923
    %v1925 = vlaneseq
    %v1926 = vshrl.u32 %v1925, 7
    %v1927 = vsub.s32 0, %v1926
    %v1928 = vrot.slane %v1915, %v1927
    %v1929 = vlaneseq
    %v1930 = vshrl.u32 %v1929, 7
    %v1931 = vsub.s32 0, %v1930
    %v1932 = vrot.slane %v1916, %v1931
    %v1933 = vlaneseq
    %v1934 = vshrl.u32 %v1933, 7
    %v1935 = vsub.s32 7, %v1934
    %v1936 = vrot.slane %v1913, %v1935
    %v1937 = vlaneseq
    %v1938 = vshrl.u32 %v1937, 7
    %v1939 = vsub.s32 7, %v1938
    %v1940 = vrot.slane %v1914, %v1939
    %v1941 = vlaneseq
    %v1942 = vshrl.u32 %v1941, 7
    %v1943 = vsub.s32 7, %v1942
    %v1944 = vrot.slane %v1915, %v1943
    %v1945 = vlaneseq
    %v1946 = vshrl.u32 %v1945, 7
    %v1947 = vsub.s32 7, %v1946
    %v1948 = vrot.slane %v1916, %v1947
    %v1953 = vrot.slane %v1913, 1
    %v1954 = vrot.slane %v1914, 1
    %v1955 = vrot.slane %v1915, 1
    %v1956 = vrot.slane %v1916, 1
    %v1961 = vsel %vm1019, %v1953, %v1953
    %v1962 = vsel %vm1019, %v1954, %v1954
    %v1963 = vsel %vm1019, %v1955, %v1955
    %v1964 = vsel %vm1019, %v1956, %v1956
    %v1965 = vsel %vm407, %v1936, %v1961
    %v1966 = vsel %vm407, %v1940, %v1962
    %v1967 = vsel %vm407, %v1944, %v1963
    %v1968 = vsel %vm407, %v1948, %v1964
    %v1969 = vrot.slane %v1913, 7
    %v1970 = vrot.slane %v1914, 7
    %v1971 = vrot.slane %v1915, 7
    %v1972 = vrot.slane %v1916, 7
    %v1977 = vsel %vm1036, %v1969, %v1969
    %v1978 = vsel %vm1036, %v1970, %v1970
    %v1979 = vsel %vm1036, %v1971, %v1971
    %v1980 = vsel %vm1036, %v1972, %v1972
    %v1981 = vsel %vm409, %v1920, %v1977
    %v1982 = vsel %vm409, %v1924, %v1978
    %v1983 = vsel %vm409, %v1928, %v1979
    %v1984 = vsel %vm409, %v1932, %v1980
    %v1985 = vadd.f32 %v1913, %v1965
    %v1986 = vadd.f32 %v1914, %v1966
    %v1987 = vadd.f32 %v1915, %v1967
    %v1988 = vadd.f32 %v1916, %v1968
    %v1989 = vadd.f32 %v1985, %v1981
    %v1990 = vadd.f32 %v1986, %v1982
    %v1991 = vadd.f32 %v1987, %v1983
    %v1992 = vadd.f32 %v1988, %v1984
    %v1993 = vrot.slane %v1913, 2
    %v1994 = vrot.slane %v1914, 2
    %v1995 = vrot.slane %v1915, 2
    %v1996 = vrot.slane %v1916, 2
    %v2001 = vsel %vm1061, %v1993, %v1993
    %v2002 = vsel %vm1061, %v1994, %v1994
    %v2003 = vsel %vm1061, %v1995, %v1995
    %v2004 = vsel %vm1061, %v1996, %v1996
    %v2005 = vsel %vm408, %v1936, %v2001
    %v2006 = vsel %vm408, %v1940, %v2002
    %v2007 = vsel %vm408, %v1944, %v2003
    %v2008 = vsel %vm408, %v1948, %v2004
    %v2009 = vrot.slane %v1913, 6
    %v2010 = vrot.slane %v1914, 6
    %v2011 = vrot.slane %v1915, 6
    %v2012 = vrot.slane %v1916, 6
    %v2017 = vsel %vm1078, %v2009, %v2009
    %v2018 = vsel %vm1078, %v2010, %v2010
    %v2019 = vsel %vm1078, %v2011, %v2011
    %v2020 = vsel %vm1078, %v2012, %v2012
    %v2021 = vsel %vm410, %v1920, %v2017
    %v2022 = vsel %vm410, %v1924, %v2018
    %v2023 = vsel %vm410, %v1928, %v2019
    %v2024 = vsel %vm410, %v1932, %v2020
    %v2025 = vadd.f32 %v1989, %v2005
    %v2026 = vadd.f32 %v1990, %v2006
    %v2027 = vadd.f32 %v1991, %v2007
    %v2028 = vadd.f32 %v1992, %v2008
    %v2029 = vadd.f32 %v2025, %v2021
    %v2030 = vadd.f32 %v2026, %v2022
    %v2031 = vadd.f32 %v2027, %v2023
    %v2032 = vadd.f32 %v2028, %v2024
    %v2033 = vmul.f32 %v2029, 0.2
    %v2034 = vmul.f32 %v2030, 0.2
    %v2035 = vmul.f32 %v2031, 0.2
    %v2036 = vmul.f32 %v2032, 0.2
    %v2037 = vsub.f32 %v1913, %v2033
    %v2038 = vsub.f32 %v1914, %v2034
    %v2039 = vsub.f32 %v1915, %v2035
    %v2040 = vsub.f32 %v1916, %v2036
    %2041 = vst.msk [vmem:[#allocation16] sm:$0xff] %vm209, %v2037
    %2042 = vst.msk [vmem:[#allocation16 + $0x8] sm:$0xff] %vm209, %v2038
    %2043 = vst.msk [vmem:[#allocation16 + $0x10] sm:$0xff] %vm209, %v2039
    %2044 = vst.msk [vmem:[#allocation16 + $0x18] sm:$0xff] %vm209, %v2040
    %v2045 = vadd.f32 %v1095, %v1733
    %v2046 = vadd.f32 %v1096, %v1734
    %v2047 = vadd.f32 %v1097, %v1735
    %v2048 = vadd.f32 %v1098, %v1736
    %v2049 = vadd.f32 %v2045, %v2033
    %v2050 = vadd.f32 %v2046, %v2034
    %v2051 = vadd.f32 %v2047, %v2035
    %v2052 = vadd.f32 %v2048, %v2036
    %v2057 = vrot.slane %v2049, 7
    %v2058 = vrot.slane %v2050, 7
    %v2059 = vrot.slane %v2051, 7
    %v2060 = vrot.slane %v2052, 7
    %v2065 = vsel %vm1036, %v2057, %v2057
    %v2066 = vsel %vm1036, %v2058, %v2058
    %v2067 = vsel %vm1036, %v2059, %v2059
    %v2068 = vsel %vm1036, %v2060, %v2060
    %v2069 = vrot.slane %v2049, 1
    %v2070 = vrot.slane %v2050, 1
    %v2071 = vrot.slane %v2051, 1
    %v2072 = vrot.slane %v2052, 1
    %v2077 = vsel %vm1019, %v2069, %v2069
    %v2078 = vsel %vm1019, %v2070, %v2070
    %v2079 = vsel %vm1019, %v2071, %v2071
    %v2080 = vsel %vm1019, %v2072, %v2072
    %2081 = vrot.lane.b32.xlu0 %v2049, 32
    %v2082 = vpop.permute.xlu0 %2081
    %2083 = vrot.lane.b32.xlu0 %v2050, 32
    %v2084 = vpop.permute.xlu0 %2083
    %2085 = vrot.lane.b32.xlu0 %v2051, 32
    %v2086 = vpop.permute.xlu0 %2085
    %2087 = vrot.lane.b32.xlu0 %v2052, 32
    %v2088 = vpop.permute.xlu0 %2087
    %2097 = vrot.lane.b32.xlu0 %v2077, 64
    %v2098 = vpop.permute.xlu0 %2097
    %2099 = vrot.lane.b32.xlu0 %v2078, 64
    %v2100 = vpop.permute.xlu0 %2099
    %2101 = vrot.lane.b32.xlu0 %v2079, 64
    %v2102 = vpop.permute.xlu0 %2101
    %2103 = vrot.lane.b32.xlu0 %v2080, 64
    %v2104 = vpop.permute.xlu0 %2103
    %v2109 = vsel %vm209, %v2065, %v2082
    %v2110 = vsel %vm209, %v2066, %v2084
    %v2111 = vsel %vm209, %v2067, %v2086
    %v2112 = vsel %vm209, %v2068, %v2088
    %vm2113 = vcmask 523264
    %v2114 = vsel %vm2113, %v2109, %v2098
    %v2115 = vsel %vm2113, %v2110, %v2100
    %v2116 = vsel %vm2113, %v2111, %v2102
    %v2117 = vsel %vm2113, %v2112, %v2104
    %v2118 = vpack.c.bf16 %v2115, %v2114
    %v2119 = vpack.c.bf16 %v2117, %v2116
    %v2132 = vunpack.c.l.b16 %v183
    %v2133 = vunpack.c.l.b16 %v184
    %v2134 = vunpack.c.l.b16 %v185
    %v2135 = vunpack.c.l.b16 %v186
    %v2136 = vunpack.c.l.b16 %v187
    %v2137 = vunpack.c.l.b16 %v188
    %v2138 = vunpack.c.l.b16 %v189
    %v2139 = vunpack.c.l.b16 %v190
    %v2140 = vunpack.c.l.b16 %v191
    %v2141 = vunpack.c.l.b16 %v192
    %v2142 = vunpack.c.l.b16 %v193
    %v2143 = vunpack.c.l.b16 %v194
    %v2144 = vpack.c.b16 %v2133, %v2132
    %v2145 = vpack.c.b16 %v2135, %v2134
    %v2146 = vpack.c.b16 %v2137, %v2136
    %v2147 = vpack.c.b16 %v2139, %v2138
    %v2148 = vpack.c.b16 %v2141, %v2140
    %v2149 = vpack.c.b16 %v2143, %v2142
    %vm2156 = vcmask 785408
    %v2158 = vsel %vm2156, %v2118, 0
    %v2161 = vsel %vm2156, %v2119, 0
    %2163 = vmatprep.subr.bf16.mxu0 0
    %2164 = vmatpush1.bf16.msra.mxu0 %v2144
    %2165 = vmatprep.subr.bf16.mxu0 0
    %2166 = vmatpush1.bf16.msra.mxu0 %v2145
    %2167 = vmatprep.subr.bf16.mxu0 0
    %2168 = vmatpush1.bf16.msra.mxu0 %v2146
    %2169 = vmatprep.subr.bf16.mxu0 0
    %2170 = vmatpush1.bf16.msra.mxu0 %v2147
    %2171 = vmatprep.subr.bf16.mxu0 0
    %2172 = vmatpush1.bf16.msra.mxu0 %v2148
    %2173 = vmatprep.subr.bf16.mxu0 0
    %2174 = vmatpush1.bf16.msra.mxu0 %v2149
    %2175 = vmatprep.subr.bf16.mxu0 0
    %2176 = vmatpush1.bf16.msra.mxu0 0
    %2177 = vmatprep.subr.bf16.mxu0 0
    %2178 = vmatpush1.bf16.msra.mxu0 0
    %2179 = vmatprep.subr.bf16.mxu0 0
    %2180 = vmatpush1.bf16.msra.mxu0 0
    %2181 = vmatprep.subr.bf16.mxu0 0
    %2182 = vmatpush1.bf16.msra.mxu0 0
    %2183 = vmatprep.subr.bf16.mxu0 0
    %2184 = vmatpush1.bf16.msra.mxu0 0
    %2185 = vmatprep.subr.bf16.mxu0 0
    %2186 = vmatpush1.bf16.msra.mxu0 0
    %2187 = vmatprep.subr.bf16.mxu0 0
    %2188 = vmatpush1.bf16.msra.mxu0 0
    %2189 = vmatprep.subr.bf16.mxu0 0
    %2190 = vmatpush1.bf16.msra.mxu0 0
    %2191 = vmatprep.subr.bf16.mxu0 0
    %2192 = vmatpush1.bf16.msra.mxu0 0
    %2193 = vmatprep.subr.bf16.mxu0 0
    %2194 = vmatpush1.bf16.msra.mxu0 0
    %2195 = vmatprep.mubr.bf16.mxu0 0
    %2196 = vmatmul.mubr.bf16.gmra.mrb[0].mxu0 %v2158
    %v2197 = vpop.f32.mrb[0].mxu0
    %v2198 = vadd.f32 0.0, %v2197
    %v2199 = vpop.f32.mrb[0].mxu0
    %v2200 = vpop.f32.mrb[0].mxu0
    %v2201 = vadd.f32 0.0, %v2200
    %v2202 = vpop.f32.mrb[0].mxu0
    %2203 = vmatprep.mubr.bf16.mxu0 0
    %2204 = vmatmul.mubr.bf16.gmra.mrb[0].mxu0 %v2161
    %v2205 = vpop.f32.mrb[0].mxu0
    %v2206 = vadd.f32 0.0, %v2205
    %v2207 = vpop.f32.mrb[0].mxu0
    %v2208 = vpop.f32.mrb[0].mxu0
    %v2209 = vadd.f32 0.0, %v2208
    %v2210 = vpop.f32.mrb[0].mxu0
    %2211 = vdwg.mxu0
    %2212 = vst [vmem:[#allocation17] sm:$0xff] %v2198
    %2213 = vst [vmem:[#allocation17 + $0x8] sm:$0xff] %v2201
    %2214 = vst [vmem:[#allocation17 + $0x10] sm:$0xff] %v2206
    %2215 = vst [vmem:[#allocation17 + $0x18] sm:$0xff] %v2209
    // Predicated region
    $region66: #{tpu_custom_call.1} parent=1 // pred_check
      _
    $region67: #{tpu_custom_call.1} parent=1 // pred_check_branch
      %2217 = sbr.rel (0) target = $region69
    $region68: #{tpu_custom_call.1} parent=1 // pred_region
      %s2219 = ssub.s32 512, 512
      %2220 = vsyncadd [#allocation4], %s2219
      %s2221 = sshll.u32 [#allocation16], 4
      %s2222 = int_to_ptr.vmem [resolvable:$true] %s2221
      %2227 = dma.vmem_to_hbm [thread:$0]  %s2222, 512, %s8, [#allocation4], 128, 128, 8
    $region69: #{tpu_custom_call.1} parent=1 // pred_fallthru
      _
    // Predicated region
    $region70: #{tpu_custom_call.1} parent=1 // pred_check
      _
    $region71: #{tpu_custom_call.1} parent=1 // pred_check_branch
      %2229 = sbr.rel (0) target = $region73
    $region72: #{tpu_custom_call.1} parent=1 // pred_region
      %s2231 = ssub.s32 512, 512
      %2232 = vsyncadd [#allocation18], %s2231
      %s2233 = sshll.u32 [#allocation17], 4
      %s2234 = int_to_ptr.vmem [resolvable:$true] %s2233
      %2239 = dma.vmem_to_hbm [thread:$0]  %s2234, 512, %s9, [#allocation18], 128, 128, 8
    $region73: #{tpu_custom_call.1} parent=1 // pred_fallthru
      _
    // Predicated region
    $region74: #{tpu_custom_call.1} parent=1 // pred_check
      _
    $region75: #{tpu_custom_call.1} parent=1 // pred_check_branch
      %2241 = sbr.rel (0) target = $region77
    $region76: #{tpu_custom_call.1} parent=1 // pred_region
      %2242 = dma.done [#allocation4], 512
    $region77: #{tpu_custom_call.1} parent=1 // pred_fallthru
      _
    // Predicated region
    $region78: #{tpu_custom_call.1} parent=1 // pred_check
      _
    $region79: #{tpu_custom_call.1} parent=1 // pred_check_branch
      %2244 = sbr.rel (0) target = $region81
    $region80: #{tpu_custom_call.1} parent=1 // pred_region
      %2245 = dma.done [#allocation18], 512
    $region81: #{tpu_custom_call.1} parent=1 // pred_fallthru
      _
    %2246 = vsyncpa [#allocation3], 1
    %2247 = vsyncpa [#allocation6], 1
    %2248 = vsyncpa [#allocation9], 1
    %2249 = vsyncpa [#allocation12], 1
    %2250 = vsyncpa [#allocation15], 1
    %2251 = vsyncpa [#allocation4], 1
    %2252 = vsyncpa [#allocation18], 1

</llo_original>
